<compile_context>
chip_gen: v7x
topology: tpu7x:2x2x1
jax: 0.10.0
libtpu: 0.0.40
codegen_flags: <defaults>
</compile_context>

<pallas_src>
import functools
import math

import jax
import jax.numpy as jnp
from jax.experimental import pallas as pl
from jax.experimental.pallas import tpu as pltpu

# ----------------- small ViT configuration (consistent with the module) -----
IMAGE_SIZE = 16
PATCH_SIZE = 4
IN_CHANNELS = 4
EMBED_DIM = 32
DEPTH = 2
NUM_HEADS = 4
MLP_RATIO = 4.0
NUM_CLASSES = 16

HEAD_DIM = EMBED_DIM // NUM_HEADS
FFN_DIM = int(EMBED_DIM * MLP_RATIO)
NUM_PATCHES = (IMAGE_SIZE // PATCH_SIZE) ** 2
SEQ_LEN = NUM_PATCHES + 1                      # 17
SEQ_PAD = 24                                   # next multiple of 8 (padded keys masked)
PATCH_DIM = IN_CHANNELS * PATCH_SIZE * PATCH_SIZE
LN_EPS = 1e-5                                  # PyTorch LayerNorm default

LAYER_KEYS = ("wq", "bq", "wk", "bk", "wv", "bv", "wo", "bo",
              "ln1g", "ln1b", "ln2g", "ln2b", "w1", "b1", "w2", "b2")
PER_LAYER = len(LAYER_KEYS)
NUM_INPUTS = 3 + DEPTH * PER_LAYER + 4


def _layernorm(x, gamma, beta):
    mu = jnp.mean(x, axis=-1, keepdims=True)
    var = jnp.mean((x - mu) ** 2, axis=-1, keepdims=True)
    return (x - mu) * jax.lax.rsqrt(var + LN_EPS) * gamma + beta


def _mm(x_bf16, w_bf16):
    # bf16 MXU operands, f32 accumulation.
    return jnp.dot(x_bf16, w_bf16, preferred_element_type=jnp.float32)


# ----------------- the fused kernel (one batch tile per grid step) ----------
def vit_kernel(*refs, batch_tile):
    in_refs = refs[:NUM_INPUTS]
    logits_ref, probs_ref, feat_ref = refs[NUM_INPUTS:]

    patches_ref, patch_w_ref, tok_add_ref = in_refs[:3]
    lnfg_ref, lnfb_ref, head_w_ref, head_b_ref = in_refs[3 + DEPTH * PER_LAYER:]

    bt = batch_tile
    rows = bt * SEQ_PAD

    # ---- patch embedding + folded (conv bias, cls token, pos embedding) add
    proj = _mm(patches_ref[...].astype(jnp.bfloat16), patch_w_ref[...])   # (rows, E)
    x = proj + tok_add_ref[...]                                           # single VPU add

    # key-padding bias: columns >= SEQ_LEN are masked out of every softmax.
    col_ids = jax.lax.broadcasted_iota(jnp.int32, (SEQ_PAD, SEQ_PAD), 1)
    key_bias = jnp.where(col_ids < SEQ_LEN, 0.0, -1e30).astype(jnp.float32)[None]

    # ---- transformer encoder layers (post-norm, ReLU FFN) -------------------
    for li in range(DEPTH):
        base = 3 + li * PER_LAYER
        (wq, bq, wk, bk, wv, bv, wo, bo,
         ln1g, ln1b, ln2g, ln2b, w1, b1, w2, b2) = [
            in_refs[base + j][...] for j in range(PER_LAYER)]

        x_bf = x.astype(jnp.bfloat16)            # hoisted: feeds all 3 projections
        q = (_mm(x_bf, wq) + bq).astype(jnp.bfloat16)   # 1/sqrt(Dh) folded into wq/bq
        k = (_mm(x_bf, wk) + bk).astype(jnp.bfloat16)
        v = (_mm(x_bf, wv) + bv).astype(jnp.bfloat16)

        q3 = q.reshape(bt, SEQ_PAD, EMBED_DIM)
        k3 = k.reshape(bt, SEQ_PAD, EMBED_DIM)
        v3 = v.reshape(bt, SEQ_PAD, EMBED_DIM)

        def heads(a):
            # (bt, S, E) -> (H*bt, S, Dh); batch index n = h*bt + b
            return jnp.concatenate(
                [a[:, :, h * HEAD_DIM:(h + 1) * HEAD_DIM] for h in range(NUM_HEADS)],
                axis=0)

        qn, kn, vn = heads(q3), heads(k3), heads(v3)

        # one batched QK^T, one softmax pass, one batched P*V per layer
        s = jnp.einsum('nqd,nkd->nqk', qn, kn,
                       preferred_element_type=jnp.float32)                # (H*bt,S,S)
        s = s + key_bias
        s = s - jnp.max(s, axis=-1, keepdims=True)
        p = jnp.exp(s)
        p = p * pl.reciprocal(jnp.sum(p, axis=-1, keepdims=True), approx=True)
        on = jnp.einsum('nqk,nkd->nqd', p.astype(jnp.bfloat16), vn,
                        preferred_element_type=jnp.float32)               # (H*bt,S,Dh)

        # merge heads back to (rows, E) and apply W_o in ONE contraction-32 matmul
        merged = jnp.concatenate(
            [on[h * bt:(h + 1) * bt] for h in range(NUM_HEADS)], axis=-1) # (bt,S,E)
        merged = merged.reshape(rows, EMBED_DIM)
        attn = _mm(merged.astype(jnp.bfloat16), wo) + bo

        # TODO(synk): dropout layers (p=0.1) are treated as identity (inference).
        x1 = _layernorm(x + attn, ln1g, ln1b)
        ff = jnp.maximum(_mm(x1.astype(jnp.bfloat16), w1) + b1, 0.0)
        ff = _mm(ff.astype(jnp.bfloat16), w2) + b2
        x = _layernorm(x1 + ff, ln2g, ln2b)

    # ---- batched classifier tail: final LN + head + softmax (cls rows only) --
    cls = x.reshape(bt, SEQ_PAD, EMBED_DIM)[:, 0:1, :].reshape(bt, EMBED_DIM)
    feat = _layernorm(cls, lnfg_ref[...], lnfb_ref[...])
    logits = _mm(feat.astype(jnp.bfloat16), head_w_ref[...]) + head_b_ref[...]
    m = jnp.max(logits, axis=-1, keepdims=True)
    e = jnp.exp(logits - m)
    probs = e / jnp.sum(e, axis=-1, keepdims=True)

    logits_ref[...] = logits.reshape(bt, 1, NUM_CLASSES)
    probs_ref[...] = probs.reshape(bt, 1, NUM_CLASSES)
    feat_ref[...] = feat.reshape(bt, 1, EMBED_DIM)


# ----------------- deterministic parameter construction ---------------------
def init_params(key):
    keys = iter(jax.random.split(key, 64))

    def nrm(shape, scale=0.02):
        return scale * jax.random.normal(next(keys), shape, dtype=jnp.float32)

    params = {}
    # PatchEmbedding: Conv2d(C, E, kernel=P, stride=P) == matmul over patches
    conv_w = nrm((EMBED_DIM, IN_CHANNELS, PATCH_SIZE, PATCH_SIZE))
    patch_w = conv_w.reshape(EMBED_DIM, -1).T                  # (C*P*P, E)
    patch_b = jnp.zeros((EMBED_DIM,), jnp.float32)
    cls_token = nrm((EMBED_DIM,), 1.0)
    pos_embed = nrm((SEQ_LEN, EMBED_DIM), 1.0)

    # fold conv bias + cls token + positional embedding into one additive table
    tok_add = jnp.zeros((SEQ_PAD, EMBED_DIM), jnp.float32)
    tok_add = tok_add.at[0].set(cls_token + pos_embed[0])
    tok_add = tok_add.at[1:SEQ_LEN].set(pos_embed[1:] + patch_b)

    params["patch_w"] = patch_w.astype(jnp.bfloat16)
    params["tok_add"] = tok_add

    scale = 1.0 / math.sqrt(HEAD_DIM)          # folded into the Q projection
    layers = []
    for _ in range(DEPTH):
        layers.append({
            "wq": (nrm((EMBED_DIM, EMBED_DIM)).T * scale).astype(jnp.bfloat16),
            "bq": nrm((1, EMBED_DIM)) * scale,
            "wk": nrm((EMBED_DIM, EMBED_DIM)).T.astype(jnp.bfloat16),
            "bk": nrm((1, EMBED_DIM)),
            "wv": nrm((EMBED_DIM, EMBED_DIM)).T.astype(jnp.bfloat16),
            "bv": nrm((1, EMBED_DIM)),
            "wo": nrm((EMBED_DIM, EMBED_DIM)).T.astype(jnp.bfloat16),
            "bo": jnp.zeros((1, EMBED_DIM), jnp.float32),
            "ln1g": jnp.ones((1, EMBED_DIM), jnp.float32),
            "ln1b": jnp.zeros((1, EMBED_DIM), jnp.float32),
            "ln2g": jnp.ones((1, EMBED_DIM), jnp.float32),
            "ln2b": jnp.zeros((1, EMBED_DIM), jnp.float32),
            "w1": nrm((FFN_DIM, EMBED_DIM)).T.astype(jnp.bfloat16),
            "b1": jnp.zeros((1, FFN_DIM), jnp.float32),
            "w2": nrm((EMBED_DIM, FFN_DIM)).T.astype(jnp.bfloat16),
            "b2": jnp.zeros((1, EMBED_DIM), jnp.float32),
        })
    params["layers"] = layers

    params["ln_f_g"] = jnp.ones((1, EMBED_DIM), jnp.float32)
    params["ln_f_b"] = jnp.zeros((1, EMBED_DIM), jnp.float32)
    params["head_w"] = nrm((NUM_CLASSES, EMBED_DIM)).T.astype(jnp.bfloat16)
    params["head_b"] = jnp.zeros((1, NUM_CLASSES), jnp.float32)
    return params


# ----------------- full forward pass (single pallas_call, batch grid) -------
def vit_forward(x, params, *, batch_tile=1):
    b, c, h, w = x.shape
    assert b % batch_tile == 0, "batch must be divisible by batch_tile"
    gh, gw = h // PATCH_SIZE, w // PATCH_SIZE
    grid_n = b // batch_tile
    rows = batch_tile * SEQ_PAD

    # unfold non-overlapping patches: (B,C,H,W) -> (B, N, C*P*P), order (c,ph,pw)
    patches = x.reshape(b, c, gh, PATCH_SIZE, gw, PATCH_SIZE)
    patches = patches.transpose(0, 2, 4, 1, 3, 5)
    patches = patches.reshape(b, gh * gw, c * PATCH_SIZE * PATCH_SIZE)
    patches = patches.astype(jnp.float32)
    # zero rows for the cls slot (row 0) and the sequence padding (rows 17..23)
    patches = jnp.pad(patches, ((0, 0), (1, SEQ_PAD - 1 - NUM_PATCHES), (0, 0)))
    patches = patches.reshape(b * SEQ_PAD, PATCH_DIM)

    # pre-tiled additive table -> single full-block add in the kernel
    tok_add_tiled = jnp.tile(params["tok_add"], (batch_tile, 1))       # (rows, E)

    inputs = [patches, params["patch_w"], tok_add_tiled]
    for lp in params["layers"]:
        inputs.extend(lp[k] for k in LAYER_KEYS)
    inputs.extend([params["ln_f_g"], params["ln_f_b"],
                   params["head_w"], params["head_b"]])

    def const_spec(arr):                       # whole array resident in VMEM
        zeros = (0,) * arr.ndim
        return pl.BlockSpec(arr.shape, lambda i: zeros)

    in_specs = [pl.BlockSpec((rows, PATCH_DIM), lambda i: (i, 0))]
    in_specs += [const_spec(a) for a in inputs[1:]]

    out_specs = (
        pl.BlockSpec((batch_tile, 1, NUM_CLASSES), lambda i: (i, 0, 0)),
        pl.BlockSpec((batch_tile, 1, NUM_CLASSES), lambda i: (i, 0, 0)),
        pl.BlockSpec((batch_tile, 1, EMBED_DIM), lambda i: (i, 0, 0)),
    )

    logits3, probs3, feat3 = pl.pallas_call(
        functools.partial(vit_kernel, batch_tile=batch_tile),
        grid=(grid_n,),
        in_specs=in_specs,
        out_specs=out_specs,
        out_shape=(
            jax.ShapeDtypeStruct((b, 1, NUM_CLASSES), jnp.float32),    # logits
            jax.ShapeDtypeStruct((b, 1, NUM_CLASSES), jnp.float32),    # confidence
            jax.ShapeDtypeStruct((b, 1, EMBED_DIM), jnp.float32),      # features
        ),
        compiler_params=pltpu.CompilerParams(
            dimension_semantics=("parallel",)),                        # 2 TCs on v7x
    )(*inputs)

    return {"logits": logits3[:, 0, :],
            "confidence_scores": probs3[:, 0, :],
            "features": feat3[:, 0, :]}


if __name__ == "__main__":
    key = jax.random.PRNGKey(0)
    pkey, xkey = jax.random.split(key)
    params = init_params(pkey)

    x = jax.random.normal(
        xkey, (2, IN_CHANNELS, IMAGE_SIZE, IMAGE_SIZE), dtype=jnp.float32)

    fwd = jax.jit(functools.partial(vit_forward, batch_tile=1))
    out = fwd(x, params)
    out = jax.block_until_ready(out)

    assert out["logits"].shape == (2, NUM_CLASSES)
    assert out["confidence_scores"].shape == (2, NUM_CLASSES)
    assert out["features"].shape == (2, EMBED_DIM)
    assert bool(jnp.all(jnp.isfinite(out["logits"])))
    assert bool(jnp.all(jnp.isfinite(out["confidence_scores"])))
    print("KERNEL_OK")
</pallas_src>

<mosaic_0001>
module attributes {stable_mosaic.version = 11 : i64} {
  func.func @vit_kernel(%arg0: i32, %arg1: memref<24x64xf32, #tpu.memory_space<vmem>>, %arg2: memref<64x32xbf16, #tpu.memory_space<vmem>>, %arg3: memref<24x32xf32, #tpu.memory_space<vmem>>, %arg4: memref<32x32xbf16, #tpu.memory_space<vmem>>, %arg5: memref<1x32xf32, #tpu.memory_space<vmem>>, %arg6: memref<32x32xbf16, #tpu.memory_space<vmem>>, %arg7: memref<1x32xf32, #tpu.memory_space<vmem>>, %arg8: memref<32x32xbf16, #tpu.memory_space<vmem>>, %arg9: memref<1x32xf32, #tpu.memory_space<vmem>>, %arg10: memref<32x32xbf16, #tpu.memory_space<vmem>>, %arg11: memref<1x32xf32, #tpu.memory_space<vmem>>, %arg12: memref<1x32xf32, #tpu.memory_space<vmem>>, %arg13: memref<1x32xf32, #tpu.memory_space<vmem>>, %arg14: memref<1x32xf32, #tpu.memory_space<vmem>>, %arg15: memref<1x32xf32, #tpu.memory_space<vmem>>, %arg16: memref<32x128xbf16, #tpu.memory_space<vmem>>, %arg17: memref<1x128xf32, #tpu.memory_space<vmem>>, %arg18: memref<128x32xbf16, #tpu.memory_space<vmem>>, %arg19: memref<1x32xf32, #tpu.memory_space<vmem>>, %arg20: memref<32x32xbf16, #tpu.memory_space<vmem>>, %arg21: memref<1x32xf32, #tpu.memory_space<vmem>>, %arg22: memref<32x32xbf16, #tpu.memory_space<vmem>>, %arg23: memref<1x32xf32, #tpu.memory_space<vmem>>, %arg24: memref<32x32xbf16, #tpu.memory_space<vmem>>, %arg25: memref<1x32xf32, #tpu.memory_space<vmem>>, %arg26: memref<32x32xbf16, #tpu.memory_space<vmem>>, %arg27: memref<1x32xf32, #tpu.memory_space<vmem>>, %arg28: memref<1x32xf32, #tpu.memory_space<vmem>>, %arg29: memref<1x32xf32, #tpu.memory_space<vmem>>, %arg30: memref<1x32xf32, #tpu.memory_space<vmem>>, %arg31: memref<1x32xf32, #tpu.memory_space<vmem>>, %arg32: memref<32x128xbf16, #tpu.memory_space<vmem>>, %arg33: memref<1x128xf32, #tpu.memory_space<vmem>>, %arg34: memref<128x32xbf16, #tpu.memory_space<vmem>>, %arg35: memref<1x32xf32, #tpu.memory_space<vmem>>, %arg36: memref<1x32xf32, #tpu.memory_space<vmem>>, %arg37: memref<1x32xf32, #tpu.memory_space<vmem>>, %arg38: memref<32x16xbf16, #tpu.memory_space<vmem>>, %arg39: memref<1x16xf32, #tpu.memory_space<vmem>>, %arg40: memref<1x1x16xf32, #tpu.memory_space<vmem>>, %arg41: memref<1x1x16xf32, #tpu.memory_space<vmem>>, %arg42: memref<1x1x32xf32, #tpu.memory_space<vmem>>) attributes {dimension_semantics = [#tpu.dimension_semantics<parallel>], iteration_bounds = array<i64: 2>, scalar_prefetch = 0 : i64, scratch_operands = 0 : i64, tpu.core_type = #tpu.core_type<tc>, window_params = [{transform_indices = @transform_0, window_bounds = array<i64: 24, 64>}, {pipeline_mode = #tpu.pipeline_mode<synchronous>, transform_indices = @transform_1, window_bounds = array<i64: 64, 32>}, {pipeline_mode = #tpu.pipeline_mode<synchronous>, transform_indices = @transform_2, window_bounds = array<i64: 24, 32>}, {pipeline_mode = #tpu.pipeline_mode<synchronous>, transform_indices = @transform_3, window_bounds = array<i64: 32, 32>}, {pipeline_mode = #tpu.pipeline_mode<synchronous>, transform_indices = @transform_4, window_bounds = array<i64: 1, 32>}, {pipeline_mode = #tpu.pipeline_mode<synchronous>, transform_indices = @transform_5, window_bounds = array<i64: 32, 32>}, {pipeline_mode = #tpu.pipeline_mode<synchronous>, transform_indices = @transform_6, window_bounds = array<i64: 1, 32>}, {pipeline_mode = #tpu.pipeline_mode<synchronous>, transform_indices = @transform_7, window_bounds = array<i64: 32, 32>}, {pipeline_mode = #tpu.pipeline_mode<synchronous>, transform_indices = @transform_8, window_bounds = array<i64: 1, 32>}, {pipeline_mode = #tpu.pipeline_mode<synchronous>, transform_indices = @transform_9, window_bounds = array<i64: 32, 32>}, {pipeline_mode = #tpu.pipeline_mode<synchronous>, transform_indices = @transform_10, window_bounds = array<i64: 1, 32>}, {pipeline_mode = #tpu.pipeline_mode<synchronous>, transform_indices = @transform_11, window_bounds = array<i64: 1, 32>}, {pipeline_mode = #tpu.pipeline_mode<synchronous>, transform_indices = @transform_12, window_bounds = array<i64: 1, 32>}, {pipeline_mode = #tpu.pipeline_mode<synchronous>, transform_indices = @transform_13, window_bounds = array<i64: 1, 32>}, {pipeline_mode = #tpu.pipeline_mode<synchronous>, transform_indices = @transform_14, window_bounds = array<i64: 1, 32>}, {pipeline_mode = #tpu.pipeline_mode<synchronous>, transform_indices = @transform_15, window_bounds = array<i64: 32, 128>}, {pipeline_mode = #tpu.pipeline_mode<synchronous>, transform_indices = @transform_16, window_bounds = array<i64: 1, 128>}, {pipeline_mode = #tpu.pipeline_mode<synchronous>, transform_indices = @transform_17, window_bounds = array<i64: 128, 32>}, {pipeline_mode = #tpu.pipeline_mode<synchronous>, transform_indices = @transform_18, window_bounds = array<i64: 1, 32>}, {pipeline_mode = #tpu.pipeline_mode<synchronous>, transform_indices = @transform_19, window_bounds = array<i64: 32, 32>}, {pipeline_mode = #tpu.pipeline_mode<synchronous>, transform_indices = @transform_20, window_bounds = array<i64: 1, 32>}, {pipeline_mode = #tpu.pipeline_mode<synchronous>, transform_indices = @transform_21, window_bounds = array<i64: 32, 32>}, {pipeline_mode = #tpu.pipeline_mode<synchronous>, transform_indices = @transform_22, window_bounds = array<i64: 1, 32>}, {pipeline_mode = #tpu.pipeline_mode<synchronous>, transform_indices = @transform_23, window_bounds = array<i64: 32, 32>}, {pipeline_mode = #tpu.pipeline_mode<synchronous>, transform_indices = @transform_24, window_bounds = array<i64: 1, 32>}, {pipeline_mode = #tpu.pipeline_mode<synchronous>, transform_indices = @transform_25, window_bounds = array<i64: 32, 32>}, {pipeline_mode = #tpu.pipeline_mode<synchronous>, transform_indices = @transform_26, window_bounds = array<i64: 1, 32>}, {pipeline_mode = #tpu.pipeline_mode<synchronous>, transform_indices = @transform_27, window_bounds = array<i64: 1, 32>}, {pipeline_mode = #tpu.pipeline_mode<synchronous>, transform_indices = @transform_28, window_bounds = array<i64: 1, 32>}, {pipeline_mode = #tpu.pipeline_mode<synchronous>, transform_indices = @transform_29, window_bounds = array<i64: 1, 32>}, {pipeline_mode = #tpu.pipeline_mode<synchronous>, transform_indices = @transform_30, window_bounds = array<i64: 1, 32>}, {pipeline_mode = #tpu.pipeline_mode<synchronous>, transform_indices = @transform_31, window_bounds = array<i64: 32, 128>}, {pipeline_mode = #tpu.pipeline_mode<synchronous>, transform_indices = @transform_32, window_bounds = array<i64: 1, 128>}, {pipeline_mode = #tpu.pipeline_mode<synchronous>, transform_indices = @transform_33, window_bounds = array<i64: 128, 32>}, {pipeline_mode = #tpu.pipeline_mode<synchronous>, transform_indices = @transform_34, window_bounds = array<i64: 1, 32>}, {pipeline_mode = #tpu.pipeline_mode<synchronous>, transform_indices = @transform_35, window_bounds = array<i64: 1, 32>}, {pipeline_mode = #tpu.pipeline_mode<synchronous>, transform_indices = @transform_36, window_bounds = array<i64: 1, 32>}, {pipeline_mode = #tpu.pipeline_mode<synchronous>, transform_indices = @transform_37, window_bounds = array<i64: 32, 16>}, {pipeline_mode = #tpu.pipeline_mode<synchronous>, transform_indices = @transform_38, window_bounds = array<i64: 1, 16>}, {transform_indices = @transform_39, window_bounds = array<i64: 1, 1, 16>}, {transform_indices = @transform_40, window_bounds = array<i64: 1, 1, 16>}, {transform_indices = @transform_41, window_bounds = array<i64: 1, 1, 32>}]} {
    %c0 = arith.constant 0 : index
    %c0_0 = arith.constant 0 : index
    %0 = vector.load %arg1[%c0, %c0_0] : memref<24x64xf32, #tpu.memory_space<vmem>>, vector<24x64xf32>
    %1 = arith.truncf %0 : vector<24x64xf32> to vector<24x64xbf16>
    %c0_1 = arith.constant 0 : index
    %c0_2 = arith.constant 0 : index
    %2 = vector.load %arg2[%c0_1, %c0_2] : memref<64x32xbf16, #tpu.memory_space<vmem>>, vector<64x32xbf16>
    %cst = arith.constant dense<0.000000e+00> : vector<24x32xf32>
    %3 = tpu.matmul %1, %2, %cst {dimension_numbers = #tpu.dot_dimension_numbers<[1], [0], [0], [1], [0, 0, 1, 1], [], []>} : vector<24x64xbf16>, vector<64x32xbf16>, vector<24x32xf32> -> vector<24x32xf32>
    %c0_3 = arith.constant 0 : index
    %c0_4 = arith.constant 0 : index
    %4 = vector.load %arg3[%c0_3, %c0_4] : memref<24x32xf32, #tpu.memory_space<vmem>>, vector<24x32xf32>
    %5 = arith.addf %3, %4 : vector<24x32xf32>
    %6 = tpu.iota {dimensions = array<i32: 1>} : vector<24x24xi32>
    %c17_i32 = arith.constant 17 : i32
    %7 = vector.broadcast %c17_i32 : i32 to vector<24x24xi32>
    %8 = arith.cmpi slt, %6, %7 : vector<24x24xi32>
    %cst_5 = arith.constant 0.000000e+00 : f32
    %cst_6 = arith.constant -1.000000e+30 : f32
    %9 = vector.broadcast %cst_5 : f32 to vector<24x24xf32>
    %10 = vector.broadcast %cst_6 : f32 to vector<24x24xf32>
    %11 = arith.select %8, %9, %10 : vector<24x24xi1>, vector<24x24xf32>
    %12 = vector.shape_cast %11 : vector<24x24xf32> to vector<1x24x24xf32>
    %c0_7 = arith.constant 0 : index
    %c0_8 = arith.constant 0 : index
    %13 = vector.load %arg4[%c0_7, %c0_8] : memref<32x32xbf16, #tpu.memory_space<vmem>>, vector<32x32xbf16>
    %c0_9 = arith.constant 0 : index
    %c0_10 = arith.constant 0 : index
    %14 = vector.load %arg5[%c0_9, %c0_10] : memref<1x32xf32, #tpu.memory_space<vmem>>, vector<1x32xf32>
    %c0_11 = arith.constant 0 : index
    %c0_12 = arith.constant 0 : index
    %15 = vector.load %arg6[%c0_11, %c0_12] : memref<32x32xbf16, #tpu.memory_space<vmem>>, vector<32x32xbf16>
    %c0_13 = arith.constant 0 : index
    %c0_14 = arith.constant 0 : index
    %16 = vector.load %arg7[%c0_13, %c0_14] : memref<1x32xf32, #tpu.memory_space<vmem>>, vector<1x32xf32>
    %c0_15 = arith.constant 0 : index
    %c0_16 = arith.constant 0 : index
    %17 = vector.load %arg8[%c0_15, %c0_16] : memref<32x32xbf16, #tpu.memory_space<vmem>>, vector<32x32xbf16>
    %c0_17 = arith.constant 0 : index
    %c0_18 = arith.constant 0 : index
    %18 = vector.load %arg9[%c0_17, %c0_18] : memref<1x32xf32, #tpu.memory_space<vmem>>, vector<1x32xf32>
    %c0_19 = arith.constant 0 : index
    %c0_20 = arith.constant 0 : index
    %19 = vector.load %arg10[%c0_19, %c0_20] : memref<32x32xbf16, #tpu.memory_space<vmem>>, vector<32x32xbf16>
    %c0_21 = arith.constant 0 : index
    %c0_22 = arith.constant 0 : index
    %20 = vector.load %arg11[%c0_21, %c0_22] : memref<1x32xf32, #tpu.memory_space<vmem>>, vector<1x32xf32>
    %c0_23 = arith.constant 0 : index
    %c0_24 = arith.constant 0 : index
    %21 = vector.load %arg12[%c0_23, %c0_24] : memref<1x32xf32, #tpu.memory_space<vmem>>, vector<1x32xf32>
    %c0_25 = arith.constant 0 : index
    %c0_26 = arith.constant 0 : index
    %22 = vector.load %arg13[%c0_25, %c0_26] : memref<1x32xf32, #tpu.memory_space<vmem>>, vector<1x32xf32>
    %c0_27 = arith.constant 0 : index
    %c0_28 = arith.constant 0 : index
    %23 = vector.load %arg14[%c0_27, %c0_28] : memref<1x32xf32, #tpu.memory_space<vmem>>, vector<1x32xf32>
    %c0_29 = arith.constant 0 : index
    %c0_30 = arith.constant 0 : index
    %24 = vector.load %arg15[%c0_29, %c0_30] : memref<1x32xf32, #tpu.memory_space<vmem>>, vector<1x32xf32>
    %c0_31 = arith.constant 0 : index
    %c0_32 = arith.constant 0 : index
    %25 = vector.load %arg16[%c0_31, %c0_32] : memref<32x128xbf16, #tpu.memory_space<vmem>>, vector<32x128xbf16>
    %c0_33 = arith.constant 0 : index
    %c0_34 = arith.constant 0 : index
    %26 = vector.load %arg17[%c0_33, %c0_34] : memref<1x128xf32, #tpu.memory_space<vmem>>, vector<1x128xf32>
    %c0_35 = arith.constant 0 : index
    %c0_36 = arith.constant 0 : index
    %27 = vector.load %arg18[%c0_35, %c0_36] : memref<128x32xbf16, #tpu.memory_space<vmem>>, vector<128x32xbf16>
    %c0_37 = arith.constant 0 : index
    %c0_38 = arith.constant 0 : index
    %28 = vector.load %arg19[%c0_37, %c0_38] : memref<1x32xf32, #tpu.memory_space<vmem>>, vector<1x32xf32>
    %29 = arith.truncf %5 : vector<24x32xf32> to vector<24x32xbf16>
    %cst_39 = arith.constant dense<0.000000e+00> : vector<24x32xf32>
    %30 = tpu.matmul %29, %13, %cst_39 {dimension_numbers = #tpu.dot_dimension_numbers<[1], [0], [0], [1], [0, 0, 1, 1], [], []>} : vector<24x32xbf16>, vector<32x32xbf16>, vector<24x32xf32> -> vector<24x32xf32>
    %31 = vector.broadcast %14 : vector<1x32xf32> to vector<24x32xf32>
    %32 = arith.addf %30, %31 : vector<24x32xf32>
    %33 = arith.truncf %32 : vector<24x32xf32> to vector<24x32xbf16>
    %cst_40 = arith.constant dense<0.000000e+00> : vector<24x32xf32>
    %34 = tpu.matmul %29, %15, %cst_40 {dimension_numbers = #tpu.dot_dimension_numbers<[1], [0], [0], [1], [0, 0, 1, 1], [], []>} : vector<24x32xbf16>, vector<32x32xbf16>, vector<24x32xf32> -> vector<24x32xf32>
    %35 = vector.broadcast %16 : vector<1x32xf32> to vector<24x32xf32>
    %36 = arith.addf %34, %35 : vector<24x32xf32>
    %37 = arith.truncf %36 : vector<24x32xf32> to vector<24x32xbf16>
    %cst_41 = arith.constant dense<0.000000e+00> : vector<24x32xf32>
    %38 = tpu.matmul %29, %17, %cst_41 {dimension_numbers = #tpu.dot_dimension_numbers<[1], [0], [0], [1], [0, 0, 1, 1], [], []>} : vector<24x32xbf16>, vector<32x32xbf16>, vector<24x32xf32> -> vector<24x32xf32>
    %39 = vector.broadcast %18 : vector<1x32xf32> to vector<24x32xf32>
    %40 = arith.addf %38, %39 : vector<24x32xf32>
    %41 = arith.truncf %40 : vector<24x32xf32> to vector<24x32xbf16>
    %42 = vector.shape_cast %33 : vector<24x32xbf16> to vector<1x24x32xbf16>
    %43 = vector.shape_cast %37 : vector<24x32xbf16> to vector<1x24x32xbf16>
    %44 = vector.shape_cast %41 : vector<24x32xbf16> to vector<1x24x32xbf16>
    %45 = vector.extract_strided_slice %42 {offsets = [0, 0, 0], sizes = [1, 24, 8], strides = [1, 1, 1]} : vector<1x24x32xbf16> to vector<1x24x8xbf16>
    %46 = vector.extract_strided_slice %42 {offsets = [0, 0, 8], sizes = [1, 24, 8], strides = [1, 1, 1]} : vector<1x24x32xbf16> to vector<1x24x8xbf16>
    %47 = vector.extract_strided_slice %42 {offsets = [0, 0, 16], sizes = [1, 24, 8], strides = [1, 1, 1]} : vector<1x24x32xbf16> to vector<1x24x8xbf16>
    %48 = vector.extract_strided_slice %42 {offsets = [0, 0, 24], sizes = [1, 24, 8], strides = [1, 1, 1]} : vector<1x24x32xbf16> to vector<1x24x8xbf16>
    %49 = tpu.concatenate %45, %46, %47, %48 in 0 : vector<1x24x8xbf16>, vector<1x24x8xbf16>, vector<1x24x8xbf16>, vector<1x24x8xbf16> -> vector<4x24x8xbf16>
    %50 = vector.extract_strided_slice %43 {offsets = [0, 0, 0], sizes = [1, 24, 8], strides = [1, 1, 1]} : vector<1x24x32xbf16> to vector<1x24x8xbf16>
    %51 = vector.extract_strided_slice %43 {offsets = [0, 0, 8], sizes = [1, 24, 8], strides = [1, 1, 1]} : vector<1x24x32xbf16> to vector<1x24x8xbf16>
    %52 = vector.extract_strided_slice %43 {offsets = [0, 0, 16], sizes = [1, 24, 8], strides = [1, 1, 1]} : vector<1x24x32xbf16> to vector<1x24x8xbf16>
    %53 = vector.extract_strided_slice %43 {offsets = [0, 0, 24], sizes = [1, 24, 8], strides = [1, 1, 1]} : vector<1x24x32xbf16> to vector<1x24x8xbf16>
    %54 = tpu.concatenate %50, %51, %52, %53 in 0 : vector<1x24x8xbf16>, vector<1x24x8xbf16>, vector<1x24x8xbf16>, vector<1x24x8xbf16> -> vector<4x24x8xbf16>
    %55 = vector.extract_strided_slice %44 {offsets = [0, 0, 0], sizes = [1, 24, 8], strides = [1, 1, 1]} : vector<1x24x32xbf16> to vector<1x24x8xbf16>
    %56 = vector.extract_strided_slice %44 {offsets = [0, 0, 8], sizes = [1, 24, 8], strides = [1, 1, 1]} : vector<1x24x32xbf16> to vector<1x24x8xbf16>
    %57 = vector.extract_strided_slice %44 {offsets = [0, 0, 16], sizes = [1, 24, 8], strides = [1, 1, 1]} : vector<1x24x32xbf16> to vector<1x24x8xbf16>
    %58 = vector.extract_strided_slice %44 {offsets = [0, 0, 24], sizes = [1, 24, 8], strides = [1, 1, 1]} : vector<1x24x32xbf16> to vector<1x24x8xbf16>
    %59 = tpu.concatenate %55, %56, %57, %58 in 0 : vector<1x24x8xbf16>, vector<1x24x8xbf16>, vector<1x24x8xbf16>, vector<1x24x8xbf16> -> vector<4x24x8xbf16>
    "tpu.trace_start"() <{level = 10 : i32, message = "nqd,nkd->nqk"}> : () -> ()
    %cst_42 = arith.constant dense<0.000000e+00> : vector<4x24x24xf32>
    %60 = tpu.matmul %49, %54, %cst_42 {dimension_numbers = #tpu.dot_dimension_numbers<[2], [2], [1], [1], [0, 0, 0, 1, 1, 1], [0], [0]>} : vector<4x24x8xbf16>, vector<4x24x8xbf16>, vector<4x24x24xf32> -> vector<4x24x24xf32>
    "tpu.trace_stop"() : () -> ()
    %61 = vector.broadcast %12 : vector<1x24x24xf32> to vector<4x24x24xf32>
    %62 = arith.addf %60, %61 : vector<4x24x24xf32>
    %cst_43 = arith.constant dense<0xFF800000> : vector<4x24xf32>
    %63 = vector.multi_reduction <maximumf>, %62, %cst_43 [2] : vector<4x24x24xf32> to vector<4x24xf32>
    %64 = vector.shape_cast %63 : vector<4x24xf32> to vector<4x24x1xf32>
    %65 = vector.broadcast %64 : vector<4x24x1xf32> to vector<4x24x24xf32>
    %66 = arith.subf %62, %65 : vector<4x24x24xf32>
    %67 = math.exp %66 : vector<4x24x24xf32>
    %cst_44 = arith.constant dense<0.000000e+00> : vector<4x24xf32>
    %68 = vector.multi_reduction <add>, %67, %cst_44 [2] : vector<4x24x24xf32> to vector<4x24xf32>
    %69 = vector.shape_cast %68 : vector<4x24xf32> to vector<4x24x1xf32>
    %70 = tpu.reciprocal %69 {approx = true} : vector<4x24x1xf32> -> vector<4x24x1xf32>
    %71 = vector.broadcast %70 : vector<4x24x1xf32> to vector<4x24x24xf32>
    %72 = arith.mulf %67, %71 : vector<4x24x24xf32>
    %73 = arith.truncf %72 : vector<4x24x24xf32> to vector<4x24x24xbf16>
    "tpu.trace_start"() <{level = 10 : i32, message = "nqk,nkd->nqd"}> : () -> ()
    %cst_45 = arith.constant dense<0.000000e+00> : vector<4x24x8xf32>
    %74 = tpu.matmul %73, %59, %cst_45 {dimension_numbers = #tpu.dot_dimension_numbers<[2], [1], [1], [2], [0, 0, 0, 1, 1, 2], [0], [0]>} : vector<4x24x24xbf16>, vector<4x24x8xbf16>, vector<4x24x8xf32> -> vector<4x24x8xf32>
    "tpu.trace_stop"() : () -> ()
    %75 = vector.extract_strided_slice %74 {offsets = [0, 0, 0], sizes = [1, 24, 8], strides = [1, 1, 1]} : vector<4x24x8xf32> to vector<1x24x8xf32>
    %76 = vector.extract_strided_slice %74 {offsets = [1, 0, 0], sizes = [1, 24, 8], strides = [1, 1, 1]} : vector<4x24x8xf32> to vector<1x24x8xf32>
    %77 = vector.extract_strided_slice %74 {offsets = [2, 0, 0], sizes = [1, 24, 8], strides = [1, 1, 1]} : vector<4x24x8xf32> to vector<1x24x8xf32>
    %78 = vector.extract_strided_slice %74 {offsets = [3, 0, 0], sizes = [1, 24, 8], strides = [1, 1, 1]} : vector<4x24x8xf32> to vector<1x24x8xf32>
    %79 = tpu.concatenate %75, %76, %77, %78 in 2 : vector<1x24x8xf32>, vector<1x24x8xf32>, vector<1x24x8xf32>, vector<1x24x8xf32> -> vector<1x24x32xf32>
    %80 = vector.shape_cast %79 : vector<1x24x32xf32> to vector<24x32xf32>
    %81 = arith.truncf %80 : vector<24x32xf32> to vector<24x32xbf16>
    %cst_46 = arith.constant dense<0.000000e+00> : vector<24x32xf32>
    %82 = tpu.matmul %81, %19, %cst_46 {dimension_numbers = #tpu.dot_dimension_numbers<[1], [0], [0], [1], [0, 0, 1, 1], [], []>} : vector<24x32xbf16>, vector<32x32xbf16>, vector<24x32xf32> -> vector<24x32xf32>
    %83 = vector.broadcast %20 : vector<1x32xf32> to vector<24x32xf32>
    %84 = arith.addf %82, %83 : vector<24x32xf32>
    %85 = arith.addf %5, %84 : vector<24x32xf32>
    %cst_47 = arith.constant dense<0.000000e+00> : vector<24xf32>
    %86 = vector.multi_reduction <add>, %85, %cst_47 [1] : vector<24x32xf32> to vector<24xf32>
    %87 = vector.shape_cast %86 : vector<24xf32> to vector<24x1xf32>
    %cst_48 = arith.constant 3.200000e+01 : f32
    %88 = vector.broadcast %cst_48 : f32 to vector<24x1xf32>
    %89 = arith.divf %87, %88 : vector<24x1xf32>
    %90 = vector.broadcast %89 : vector<24x1xf32> to vector<24x32xf32>
    %91 = arith.subf %85, %90 : vector<24x32xf32>
    %92 = arith.mulf %91, %91 : vector<24x32xf32>
    %cst_49 = arith.constant dense<0.000000e+00> : vector<24xf32>
    %93 = vector.multi_reduction <add>, %92, %cst_49 [1] : vector<24x32xf32> to vector<24xf32>
    %94 = vector.shape_cast %93 : vector<24xf32> to vector<24x1xf32>
    %cst_50 = arith.constant 3.200000e+01 : f32
    %95 = vector.broadcast %cst_50 : f32 to vector<24x1xf32>
    %96 = arith.divf %94, %95 : vector<24x1xf32>
    %97 = vector.broadcast %89 : vector<24x1xf32> to vector<24x32xf32>
    %98 = arith.subf %85, %97 : vector<24x32xf32>
    %cst_51 = arith.constant 9.99999974E-6 : f32
    %99 = vector.broadcast %cst_51 : f32 to vector<24x1xf32>
    %100 = arith.addf %96, %99 : vector<24x1xf32>
    %101 = math.rsqrt %100 : vector<24x1xf32>
    %102 = vector.broadcast %101 : vector<24x1xf32> to vector<24x32xf32>
    %103 = arith.mulf %98, %102 : vector<24x32xf32>
    %104 = vector.broadcast %21 : vector<1x32xf32> to vector<24x32xf32>
    %105 = arith.mulf %103, %104 : vector<24x32xf32>
    %106 = vector.broadcast %22 : vector<1x32xf32> to vector<24x32xf32>
    %107 = arith.addf %105, %106 : vector<24x32xf32>
    %108 = arith.truncf %107 : vector<24x32xf32> to vector<24x32xbf16>
    %cst_52 = arith.constant dense<0.000000e+00> : vector<24x128xf32>
    %109 = tpu.matmul %108, %25, %cst_52 {dimension_numbers = #tpu.dot_dimension_numbers<[1], [0], [0], [1], [0, 0, 1, 1], [], []>} : vector<24x32xbf16>, vector<32x128xbf16>, vector<24x128xf32> -> vector<24x128xf32>
    %110 = vector.broadcast %26 : vector<1x128xf32> to vector<24x128xf32>
    %111 = arith.addf %109, %110 : vector<24x128xf32>
    %cst_53 = arith.constant 0.000000e+00 : f32
    %112 = vector.broadcast %cst_53 : f32 to vector<24x128xf32>
    %113 = arith.maximumf %111, %112 : vector<24x128xf32>
    %114 = arith.truncf %113 : vector<24x128xf32> to vector<24x128xbf16>
    %cst_54 = arith.constant dense<0.000000e+00> : vector<24x32xf32>
    %115 = tpu.matmul %114, %27, %cst_54 {dimension_numbers = #tpu.dot_dimension_numbers<[1], [0], [0], [1], [0, 0, 1, 1], [], []>} : vector<24x128xbf16>, vector<128x32xbf16>, vector<24x32xf32> -> vector<24x32xf32>
    %116 = vector.broadcast %28 : vector<1x32xf32> to vector<24x32xf32>
    %117 = arith.addf %115, %116 : vector<24x32xf32>
    %118 = arith.addf %107, %117 : vector<24x32xf32>
    %cst_55 = arith.constant dense<0.000000e+00> : vector<24xf32>
    %119 = vector.multi_reduction <add>, %118, %cst_55 [1] : vector<24x32xf32> to vector<24xf32>
    %120 = vector.shape_cast %119 : vector<24xf32> to vector<24x1xf32>
    %cst_56 = arith.constant 3.200000e+01 : f32
    %121 = vector.broadcast %cst_56 : f32 to vector<24x1xf32>
    %122 = arith.divf %120, %121 : vector<24x1xf32>
    %123 = vector.broadcast %122 : vector<24x1xf32> to vector<24x32xf32>
    %124 = arith.subf %118, %123 : vector<24x32xf32>
    %125 = arith.mulf %124, %124 : vector<24x32xf32>
    %cst_57 = arith.constant dense<0.000000e+00> : vector<24xf32>
    %126 = vector.multi_reduction <add>, %125, %cst_57 [1] : vector<24x32xf32> to vector<24xf32>
    %127 = vector.shape_cast %126 : vector<24xf32> to vector<24x1xf32>
    %cst_58 = arith.constant 3.200000e+01 : f32
    %128 = vector.broadcast %cst_58 : f32 to vector<24x1xf32>
    %129 = arith.divf %127, %128 : vector<24x1xf32>
    %130 = vector.broadcast %122 : vector<24x1xf32> to vector<24x32xf32>
    %131 = arith.subf %118, %130 : vector<24x32xf32>
    %cst_59 = arith.constant 9.99999974E-6 : f32
    %132 = vector.broadcast %cst_59 : f32 to vector<24x1xf32>
    %133 = arith.addf %129, %132 : vector<24x1xf32>
    %134 = math.rsqrt %133 : vector<24x1xf32>
    %135 = vector.broadcast %134 : vector<24x1xf32> to vector<24x32xf32>
    %136 = arith.mulf %131, %135 : vector<24x32xf32>
    %137 = vector.broadcast %23 : vector<1x32xf32> to vector<24x32xf32>
    %138 = arith.mulf %136, %137 : vector<24x32xf32>
    %139 = vector.broadcast %24 : vector<1x32xf32> to vector<24x32xf32>
    %140 = arith.addf %138, %139 : vector<24x32xf32>
    %c0_60 = arith.constant 0 : index
    %c0_61 = arith.constant 0 : index
    %141 = vector.load %arg20[%c0_60, %c0_61] : memref<32x32xbf16, #tpu.memory_space<vmem>>, vector<32x32xbf16>
    %c0_62 = arith.constant 0 : index
    %c0_63 = arith.constant 0 : index
    %142 = vector.load %arg21[%c0_62, %c0_63] : memref<1x32xf32, #tpu.memory_space<vmem>>, vector<1x32xf32>
    %c0_64 = arith.constant 0 : index
    %c0_65 = arith.constant 0 : index
    %143 = vector.load %arg22[%c0_64, %c0_65] : memref<32x32xbf16, #tpu.memory_space<vmem>>, vector<32x32xbf16>
    %c0_66 = arith.constant 0 : index
    %c0_67 = arith.constant 0 : index
    %144 = vector.load %arg23[%c0_66, %c0_67] : memref<1x32xf32, #tpu.memory_space<vmem>>, vector<1x32xf32>
    %c0_68 = arith.constant 0 : index
    %c0_69 = arith.constant 0 : index
    %145 = vector.load %arg24[%c0_68, %c0_69] : memref<32x32xbf16, #tpu.memory_space<vmem>>, vector<32x32xbf16>
    %c0_70 = arith.constant 0 : index
    %c0_71 = arith.constant 0 : index
    %146 = vector.load %arg25[%c0_70, %c0_71] : memref<1x32xf32, #tpu.memory_space<vmem>>, vector<1x32xf32>
    %c0_72 = arith.constant 0 : index
    %c0_73 = arith.constant 0 : index
    %147 = vector.load %arg26[%c0_72, %c0_73] : memref<32x32xbf16, #tpu.memory_space<vmem>>, vector<32x32xbf16>
    %c0_74 = arith.constant 0 : index
    %c0_75 = arith.constant 0 : index
    %148 = vector.load %arg27[%c0_74, %c0_75] : memref<1x32xf32, #tpu.memory_space<vmem>>, vector<1x32xf32>
    %c0_76 = arith.constant 0 : index
    %c0_77 = arith.constant 0 : index
    %149 = vector.load %arg28[%c0_76, %c0_77] : memref<1x32xf32, #tpu.memory_space<vmem>>, vector<1x32xf32>
    %c0_78 = arith.constant 0 : index
    %c0_79 = arith.constant 0 : index
    %150 = vector.load %arg29[%c0_78, %c0_79] : memref<1x32xf32, #tpu.memory_space<vmem>>, vector<1x32xf32>
    %c0_80 = arith.constant 0 : index
    %c0_81 = arith.constant 0 : index
    %151 = vector.load %arg30[%c0_80, %c0_81] : memref<1x32xf32, #tpu.memory_space<vmem>>, vector<1x32xf32>
    %c0_82 = arith.constant 0 : index
    %c0_83 = arith.constant 0 : index
    %152 = vector.load %arg31[%c0_82, %c0_83] : memref<1x32xf32, #tpu.memory_space<vmem>>, vector<1x32xf32>
    %c0_84 = arith.constant 0 : index
    %c0_85 = arith.constant 0 : index
    %153 = vector.load %arg32[%c0_84, %c0_85] : memref<32x128xbf16, #tpu.memory_space<vmem>>, vector<32x128xbf16>
    %c0_86 = arith.constant 0 : index
    %c0_87 = arith.constant 0 : index
    %154 = vector.load %arg33[%c0_86, %c0_87] : memref<1x128xf32, #tpu.memory_space<vmem>>, vector<1x128xf32>
    %c0_88 = arith.constant 0 : index
    %c0_89 = arith.constant 0 : index
    %155 = vector.load %arg34[%c0_88, %c0_89] : memref<128x32xbf16, #tpu.memory_space<vmem>>, vector<128x32xbf16>
    %c0_90 = arith.constant 0 : index
    %c0_91 = arith.constant 0 : index
    %156 = vector.load %arg35[%c0_90, %c0_91] : memref<1x32xf32, #tpu.memory_space<vmem>>, vector<1x32xf32>
    %157 = arith.truncf %140 : vector<24x32xf32> to vector<24x32xbf16>
    %cst_92 = arith.constant dense<0.000000e+00> : vector<24x32xf32>
    %158 = tpu.matmul %157, %141, %cst_92 {dimension_numbers = #tpu.dot_dimension_numbers<[1], [0], [0], [1], [0, 0, 1, 1], [], []>} : vector<24x32xbf16>, vector<32x32xbf16>, vector<24x32xf32> -> vector<24x32xf32>
    %159 = vector.broadcast %142 : vector<1x32xf32> to vector<24x32xf32>
    %160 = arith.addf %158, %159 : vector<24x32xf32>
    %161 = arith.truncf %160 : vector<24x32xf32> to vector<24x32xbf16>
    %cst_93 = arith.constant dense<0.000000e+00> : vector<24x32xf32>
    %162 = tpu.matmul %157, %143, %cst_93 {dimension_numbers = #tpu.dot_dimension_numbers<[1], [0], [0], [1], [0, 0, 1, 1], [], []>} : vector<24x32xbf16>, vector<32x32xbf16>, vector<24x32xf32> -> vector<24x32xf32>
    %163 = vector.broadcast %144 : vector<1x32xf32> to vector<24x32xf32>
    %164 = arith.addf %162, %163 : vector<24x32xf32>
    %165 = arith.truncf %164 : vector<24x32xf32> to vector<24x32xbf16>
    %cst_94 = arith.constant dense<0.000000e+00> : vector<24x32xf32>
    %166 = tpu.matmul %157, %145, %cst_94 {dimension_numbers = #tpu.dot_dimension_numbers<[1], [0], [0], [1], [0, 0, 1, 1], [], []>} : vector<24x32xbf16>, vector<32x32xbf16>, vector<24x32xf32> -> vector<24x32xf32>
    %167 = vector.broadcast %146 : vector<1x32xf32> to vector<24x32xf32>
    %168 = arith.addf %166, %167 : vector<24x32xf32>
    %169 = arith.truncf %168 : vector<24x32xf32> to vector<24x32xbf16>
    %170 = vector.shape_cast %161 : vector<24x32xbf16> to vector<1x24x32xbf16>
    %171 = vector.shape_cast %165 : vector<24x32xbf16> to vector<1x24x32xbf16>
    %172 = vector.shape_cast %169 : vector<24x32xbf16> to vector<1x24x32xbf16>
    %173 = vector.extract_strided_slice %170 {offsets = [0, 0, 0], sizes = [1, 24, 8], strides = [1, 1, 1]} : vector<1x24x32xbf16> to vector<1x24x8xbf16>
    %174 = vector.extract_strided_slice %170 {offsets = [0, 0, 8], sizes = [1, 24, 8], strides = [1, 1, 1]} : vector<1x24x32xbf16> to vector<1x24x8xbf16>
    %175 = vector.extract_strided_slice %170 {offsets = [0, 0, 16], sizes = [1, 24, 8], strides = [1, 1, 1]} : vector<1x24x32xbf16> to vector<1x24x8xbf16>
    %176 = vector.extract_strided_slice %170 {offsets = [0, 0, 24], sizes = [1, 24, 8], strides = [1, 1, 1]} : vector<1x24x32xbf16> to vector<1x24x8xbf16>
    %177 = tpu.concatenate %173, %174, %175, %176 in 0 : vector<1x24x8xbf16>, vector<1x24x8xbf16>, vector<1x24x8xbf16>, vector<1x24x8xbf16> -> vector<4x24x8xbf16>
    %178 = vector.extract_strided_slice %171 {offsets = [0, 0, 0], sizes = [1, 24, 8], strides = [1, 1, 1]} : vector<1x24x32xbf16> to vector<1x24x8xbf16>
    %179 = vector.extract_strided_slice %171 {offsets = [0, 0, 8], sizes = [1, 24, 8], strides = [1, 1, 1]} : vector<1x24x32xbf16> to vector<1x24x8xbf16>
    %180 = vector.extract_strided_slice %171 {offsets = [0, 0, 16], sizes = [1, 24, 8], strides = [1, 1, 1]} : vector<1x24x32xbf16> to vector<1x24x8xbf16>
    %181 = vector.extract_strided_slice %171 {offsets = [0, 0, 24], sizes = [1, 24, 8], strides = [1, 1, 1]} : vector<1x24x32xbf16> to vector<1x24x8xbf16>
    %182 = tpu.concatenate %178, %179, %180, %181 in 0 : vector<1x24x8xbf16>, vector<1x24x8xbf16>, vector<1x24x8xbf16>, vector<1x24x8xbf16> -> vector<4x24x8xbf16>
    %183 = vector.extract_strided_slice %172 {offsets = [0, 0, 0], sizes = [1, 24, 8], strides = [1, 1, 1]} : vector<1x24x32xbf16> to vector<1x24x8xbf16>
    %184 = vector.extract_strided_slice %172 {offsets = [0, 0, 8], sizes = [1, 24, 8], strides = [1, 1, 1]} : vector<1x24x32xbf16> to vector<1x24x8xbf16>
    %185 = vector.extract_strided_slice %172 {offsets = [0, 0, 16], sizes = [1, 24, 8], strides = [1, 1, 1]} : vector<1x24x32xbf16> to vector<1x24x8xbf16>
    %186 = vector.extract_strided_slice %172 {offsets = [0, 0, 24], sizes = [1, 24, 8], strides = [1, 1, 1]} : vector<1x24x32xbf16> to vector<1x24x8xbf16>
    %187 = tpu.concatenate %183, %184, %185, %186 in 0 : vector<1x24x8xbf16>, vector<1x24x8xbf16>, vector<1x24x8xbf16>, vector<1x24x8xbf16> -> vector<4x24x8xbf16>
    "tpu.trace_start"() <{level = 10 : i32, message = "nqd,nkd->nqk"}> : () -> ()
    %cst_95 = arith.constant dense<0.000000e+00> : vector<4x24x24xf32>
    %188 = tpu.matmul %177, %182, %cst_95 {dimension_numbers = #tpu.dot_dimension_numbers<[2], [2], [1], [1], [0, 0, 0, 1, 1, 1], [0], [0]>} : vector<4x24x8xbf16>, vector<4x24x8xbf16>, vector<4x24x24xf32> -> vector<4x24x24xf32>
    "tpu.trace_stop"() : () -> ()
    %189 = vector.broadcast %12 : vector<1x24x24xf32> to vector<4x24x24xf32>
    %190 = arith.addf %188, %189 : vector<4x24x24xf32>
    %cst_96 = arith.constant dense<0xFF800000> : vector<4x24xf32>
    %191 = vector.multi_reduction <maximumf>, %190, %cst_96 [2] : vector<4x24x24xf32> to vector<4x24xf32>
    %192 = vector.shape_cast %191 : vector<4x24xf32> to vector<4x24x1xf32>
    %193 = vector.broadcast %192 : vector<4x24x1xf32> to vector<4x24x24xf32>
    %194 = arith.subf %190, %193 : vector<4x24x24xf32>
    %195 = math.exp %194 : vector<4x24x24xf32>
    %cst_97 = arith.constant dense<0.000000e+00> : vector<4x24xf32>
    %196 = vector.multi_reduction <add>, %195, %cst_97 [2] : vector<4x24x24xf32> to vector<4x24xf32>
    %197 = vector.shape_cast %196 : vector<4x24xf32> to vector<4x24x1xf32>
    %198 = tpu.reciprocal %197 {approx = true} : vector<4x24x1xf32> -> vector<4x24x1xf32>
    %199 = vector.broadcast %198 : vector<4x24x1xf32> to vector<4x24x24xf32>
    %200 = arith.mulf %195, %199 : vector<4x24x24xf32>
    %201 = arith.truncf %200 : vector<4x24x24xf32> to vector<4x24x24xbf16>
    "tpu.trace_start"() <{level = 10 : i32, message = "nqk,nkd->nqd"}> : () -> ()
    %cst_98 = arith.constant dense<0.000000e+00> : vector<4x24x8xf32>
    %202 = tpu.matmul %201, %187, %cst_98 {dimension_numbers = #tpu.dot_dimension_numbers<[2], [1], [1], [2], [0, 0, 0, 1, 1, 2], [0], [0]>} : vector<4x24x24xbf16>, vector<4x24x8xbf16>, vector<4x24x8xf32> -> vector<4x24x8xf32>
    "tpu.trace_stop"() : () -> ()
    %203 = vector.extract_strided_slice %202 {offsets = [0, 0, 0], sizes = [1, 24, 8], strides = [1, 1, 1]} : vector<4x24x8xf32> to vector<1x24x8xf32>
    %204 = vector.extract_strided_slice %202 {offsets = [1, 0, 0], sizes = [1, 24, 8], strides = [1, 1, 1]} : vector<4x24x8xf32> to vector<1x24x8xf32>
    %205 = vector.extract_strided_slice %202 {offsets = [2, 0, 0], sizes = [1, 24, 8], strides = [1, 1, 1]} : vector<4x24x8xf32> to vector<1x24x8xf32>
    %206 = vector.extract_strided_slice %202 {offsets = [3, 0, 0], sizes = [1, 24, 8], strides = [1, 1, 1]} : vector<4x24x8xf32> to vector<1x24x8xf32>
    %207 = tpu.concatenate %203, %204, %205, %206 in 2 : vector<1x24x8xf32>, vector<1x24x8xf32>, vector<1x24x8xf32>, vector<1x24x8xf32> -> vector<1x24x32xf32>
    %208 = vector.shape_cast %207 : vector<1x24x32xf32> to vector<24x32xf32>
    %209 = arith.truncf %208 : vector<24x32xf32> to vector<24x32xbf16>
    %cst_99 = arith.constant dense<0.000000e+00> : vector<24x32xf32>
    %210 = tpu.matmul %209, %147, %cst_99 {dimension_numbers = #tpu.dot_dimension_numbers<[1], [0], [0], [1], [0, 0, 1, 1], [], []>} : vector<24x32xbf16>, vector<32x32xbf16>, vector<24x32xf32> -> vector<24x32xf32>
    %211 = vector.broadcast %148 : vector<1x32xf32> to vector<24x32xf32>
    %212 = arith.addf %210, %211 : vector<24x32xf32>
    %213 = arith.addf %140, %212 : vector<24x32xf32>
    %cst_100 = arith.constant dense<0.000000e+00> : vector<24xf32>
    %214 = vector.multi_reduction <add>, %213, %cst_100 [1] : vector<24x32xf32> to vector<24xf32>
    %215 = vector.shape_cast %214 : vector<24xf32> to vector<24x1xf32>
    %cst_101 = arith.constant 3.200000e+01 : f32
    %216 = vector.broadcast %cst_101 : f32 to vector<24x1xf32>
    %217 = arith.divf %215, %216 : vector<24x1xf32>
    %218 = vector.broadcast %217 : vector<24x1xf32> to vector<24x32xf32>
    %219 = arith.subf %213, %218 : vector<24x32xf32>
    %220 = arith.mulf %219, %219 : vector<24x32xf32>
    %cst_102 = arith.constant dense<0.000000e+00> : vector<24xf32>
    %221 = vector.multi_reduction <add>, %220, %cst_102 [1] : vector<24x32xf32> to vector<24xf32>
    %222 = vector.shape_cast %221 : vector<24xf32> to vector<24x1xf32>
    %cst_103 = arith.constant 3.200000e+01 : f32
    %223 = vector.broadcast %cst_103 : f32 to vector<24x1xf32>
    %224 = arith.divf %222, %223 : vector<24x1xf32>
    %225 = vector.broadcast %217 : vector<24x1xf32> to vector<24x32xf32>
    %226 = arith.subf %213, %225 : vector<24x32xf32>
    %cst_104 = arith.constant 9.99999974E-6 : f32
    %227 = vector.broadcast %cst_104 : f32 to vector<24x1xf32>
    %228 = arith.addf %224, %227 : vector<24x1xf32>
    %229 = math.rsqrt %228 : vector<24x1xf32>
    %230 = vector.broadcast %229 : vector<24x1xf32> to vector<24x32xf32>
    %231 = arith.mulf %226, %230 : vector<24x32xf32>
    %232 = vector.broadcast %149 : vector<1x32xf32> to vector<24x32xf32>
    %233 = arith.mulf %231, %232 : vector<24x32xf32>
    %234 = vector.broadcast %150 : vector<1x32xf32> to vector<24x32xf32>
    %235 = arith.addf %233, %234 : vector<24x32xf32>
    %236 = arith.truncf %235 : vector<24x32xf32> to vector<24x32xbf16>
    %cst_105 = arith.constant dense<0.000000e+00> : vector<24x128xf32>
    %237 = tpu.matmul %236, %153, %cst_105 {dimension_numbers = #tpu.dot_dimension_numbers<[1], [0], [0], [1], [0, 0, 1, 1], [], []>} : vector<24x32xbf16>, vector<32x128xbf16>, vector<24x128xf32> -> vector<24x128xf32>
    %238 = vector.broadcast %154 : vector<1x128xf32> to vector<24x128xf32>
    %239 = arith.addf %237, %238 : vector<24x128xf32>
    %cst_106 = arith.constant 0.000000e+00 : f32
    %240 = vector.broadcast %cst_106 : f32 to vector<24x128xf32>
    %241 = arith.maximumf %239, %240 : vector<24x128xf32>
    %242 = arith.truncf %241 : vector<24x128xf32> to vector<24x128xbf16>
    %cst_107 = arith.constant dense<0.000000e+00> : vector<24x32xf32>
    %243 = tpu.matmul %242, %155, %cst_107 {dimension_numbers = #tpu.dot_dimension_numbers<[1], [0], [0], [1], [0, 0, 1, 1], [], []>} : vector<24x128xbf16>, vector<128x32xbf16>, vector<24x32xf32> -> vector<24x32xf32>
    %244 = vector.broadcast %156 : vector<1x32xf32> to vector<24x32xf32>
    %245 = arith.addf %243, %244 : vector<24x32xf32>
    %246 = arith.addf %235, %245 : vector<24x32xf32>
    %cst_108 = arith.constant dense<0.000000e+00> : vector<24xf32>
    %247 = vector.multi_reduction <add>, %246, %cst_108 [1] : vector<24x32xf32> to vector<24xf32>
    %248 = vector.shape_cast %247 : vector<24xf32> to vector<24x1xf32>
    %cst_109 = arith.constant 3.200000e+01 : f32
    %249 = vector.broadcast %cst_109 : f32 to vector<24x1xf32>
    %250 = arith.divf %248, %249 : vector<24x1xf32>
    %251 = vector.broadcast %250 : vector<24x1xf32> to vector<24x32xf32>
    %252 = arith.subf %246, %251 : vector<24x32xf32>
    %253 = arith.mulf %252, %252 : vector<24x32xf32>
    %cst_110 = arith.constant dense<0.000000e+00> : vector<24xf32>
    %254 = vector.multi_reduction <add>, %253, %cst_110 [1] : vector<24x32xf32> to vector<24xf32>
    %255 = vector.shape_cast %254 : vector<24xf32> to vector<24x1xf32>
    %cst_111 = arith.constant 3.200000e+01 : f32
    %256 = vector.broadcast %cst_111 : f32 to vector<24x1xf32>
    %257 = arith.divf %255, %256 : vector<24x1xf32>
    %258 = vector.broadcast %250 : vector<24x1xf32> to vector<24x32xf32>
    %259 = arith.subf %246, %258 : vector<24x32xf32>
    %cst_112 = arith.constant 9.99999974E-6 : f32
    %260 = vector.broadcast %cst_112 : f32 to vector<24x1xf32>
    %261 = arith.addf %257, %260 : vector<24x1xf32>
    %262 = math.rsqrt %261 : vector<24x1xf32>
    %263 = vector.broadcast %262 : vector<24x1xf32> to vector<24x32xf32>
    %264 = arith.mulf %259, %263 : vector<24x32xf32>
    %265 = vector.broadcast %151 : vector<1x32xf32> to vector<24x32xf32>
    %266 = arith.mulf %264, %265 : vector<24x32xf32>
    %267 = vector.broadcast %152 : vector<1x32xf32> to vector<24x32xf32>
    %268 = arith.addf %266, %267 : vector<24x32xf32>
    %269 = vector.shape_cast %268 : vector<24x32xf32> to vector<1x24x32xf32>
    %270 = vector.extract_strided_slice %269 {offsets = [0, 0, 0], sizes = [1, 1, 32], strides = [1, 1, 1]} : vector<1x24x32xf32> to vector<1x1x32xf32>
    %271 = vector.shape_cast %270 : vector<1x1x32xf32> to vector<1x32xf32>
    %c0_113 = arith.constant 0 : index
    %c0_114 = arith.constant 0 : index
    %272 = vector.load %arg36[%c0_113, %c0_114] : memref<1x32xf32, #tpu.memory_space<vmem>>, vector<1x32xf32>
    %c0_115 = arith.constant 0 : index
    %c0_116 = arith.constant 0 : index
    %273 = vector.load %arg37[%c0_115, %c0_116] : memref<1x32xf32, #tpu.memory_space<vmem>>, vector<1x32xf32>
    %cst_117 = arith.constant dense<0.000000e+00> : vector<1xf32>
    %274 = vector.multi_reduction <add>, %271, %cst_117 [1] : vector<1x32xf32> to vector<1xf32>
    %275 = vector.shape_cast %274 : vector<1xf32> to vector<1x1xf32>
    %cst_118 = arith.constant 3.200000e+01 : f32
    %276 = vector.broadcast %cst_118 : f32 to vector<1x1xf32>
    %277 = arith.divf %275, %276 : vector<1x1xf32>
    %278 = vector.broadcast %277 : vector<1x1xf32> to vector<1x32xf32>
    %279 = arith.subf %271, %278 : vector<1x32xf32>
    %280 = arith.mulf %279, %279 : vector<1x32xf32>
    %cst_119 = arith.constant dense<0.000000e+00> : vector<1xf32>
    %281 = vector.multi_reduction <add>, %280, %cst_119 [1] : vector<1x32xf32> to vector<1xf32>
    %282 = vector.shape_cast %281 : vector<1xf32> to vector<1x1xf32>
    %cst_120 = arith.constant 3.200000e+01 : f32
    %283 = vector.broadcast %cst_120 : f32 to vector<1x1xf32>
    %284 = arith.divf %282, %283 : vector<1x1xf32>
    %285 = vector.broadcast %277 : vector<1x1xf32> to vector<1x32xf32>
    %286 = arith.subf %271, %285 : vector<1x32xf32>
    %cst_121 = arith.constant 9.99999974E-6 : f32
    %287 = vector.broadcast %cst_121 : f32 to vector<1x1xf32>
    %288 = arith.addf %284, %287 : vector<1x1xf32>
    %289 = math.rsqrt %288 : vector<1x1xf32>
    %290 = vector.broadcast %289 : vector<1x1xf32> to vector<1x32xf32>
    %291 = arith.mulf %286, %290 : vector<1x32xf32>
    %292 = arith.mulf %291, %272 : vector<1x32xf32>
    %293 = arith.addf %292, %273 : vector<1x32xf32>
    %294 = arith.truncf %293 : vector<1x32xf32> to vector<1x32xbf16>
    %c0_122 = arith.constant 0 : index
    %c0_123 = arith.constant 0 : index
    %295 = vector.load %arg38[%c0_122, %c0_123] : memref<32x16xbf16, #tpu.memory_space<vmem>>, vector<32x16xbf16>
    %cst_124 = arith.constant dense<0.000000e+00> : vector<1x16xf32>
    %296 = tpu.matmul %294, %295, %cst_124 {dimension_numbers = #tpu.dot_dimension_numbers<[1], [0], [0], [1], [0, 0, 1, 1], [], []>} : vector<1x32xbf16>, vector<32x16xbf16>, vector<1x16xf32> -> vector<1x16xf32>
    %c0_125 = arith.constant 0 : index
    %c0_126 = arith.constant 0 : index
    %297 = vector.load %arg39[%c0_125, %c0_126] : memref<1x16xf32, #tpu.memory_space<vmem>>, vector<1x16xf32>
    %298 = arith.addf %296, %297 : vector<1x16xf32>
    %cst_127 = arith.constant dense<0xFF800000> : vector<1xf32>
    %299 = vector.multi_reduction <maximumf>, %298, %cst_127 [1] : vector<1x16xf32> to vector<1xf32>
    %300 = vector.shape_cast %299 : vector<1xf32> to vector<1x1xf32>
    %301 = vector.broadcast %300 : vector<1x1xf32> to vector<1x16xf32>
    %302 = arith.subf %298, %301 : vector<1x16xf32>
    %303 = math.exp %302 : vector<1x16xf32>
    %cst_128 = arith.constant dense<0.000000e+00> : vector<1xf32>
    %304 = vector.multi_reduction <add>, %303, %cst_128 [1] : vector<1x16xf32> to vector<1xf32>
    %305 = vector.shape_cast %304 : vector<1xf32> to vector<1x1xf32>
    %306 = vector.broadcast %305 : vector<1x1xf32> to vector<1x16xf32>
    %307 = arith.divf %303, %306 : vector<1x16xf32>
    %308 = vector.shape_cast %298 : vector<1x16xf32> to vector<1x1x16xf32>
    %c0_129 = arith.constant 0 : index
    %c0_130 = arith.constant 0 : index
    %c0_131 = arith.constant 0 : index
    %309 = vector.load %arg40[%c0_129, %c0_130, %c0_131] : memref<1x1x16xf32, #tpu.memory_space<vmem>>, vector<1x1x16xf32>
    tpu.vector_store %arg40[%c0_129, %c0_130, %c0_131], %308 {strides = array<i32>} : memref<1x1x16xf32, #tpu.memory_space<vmem>>, vector<1x1x16xf32>,
    %310 = vector.shape_cast %307 : vector<1x16xf32> to vector<1x1x16xf32>
    %c0_132 = arith.constant 0 : index
    %c0_133 = arith.constant 0 : index
    %c0_134 = arith.constant 0 : index
    %311 = vector.load %arg41[%c0_132, %c0_133, %c0_134] : memref<1x1x16xf32, #tpu.memory_space<vmem>>, vector<1x1x16xf32>
    tpu.vector_store %arg41[%c0_132, %c0_133, %c0_134], %310 {strides = array<i32>} : memref<1x1x16xf32, #tpu.memory_space<vmem>>, vector<1x1x16xf32>,
    %312 = vector.shape_cast %293 : vector<1x32xf32> to vector<1x1x32xf32>
    %c0_135 = arith.constant 0 : index
    %c0_136 = arith.constant 0 : index
    %c0_137 = arith.constant 0 : index
    %313 = vector.load %arg42[%c0_135, %c0_136, %c0_137] : memref<1x1x32xf32, #tpu.memory_space<vmem>>, vector<1x1x32xf32>
    tpu.vector_store %arg42[%c0_135, %c0_136, %c0_137], %312 {strides = array<i32>} : memref<1x1x32xf32, #tpu.memory_space<vmem>>, vector<1x1x32xf32>,
    return
  }
  func.func @transform_0(%arg0: i32) -> (i32, i32) {
    %c0_i32 = arith.constant 0 : i32
    %c0_i32_0 = arith.constant 0 : i32
    return %arg0, %c0_i32 : i32, i32
  }
  func.func @transform_1(%arg0: i32) -> (i32, i32) {
    %c0_i32 = arith.constant 0 : i32
    %c0_i32_0 = arith.constant 0 : i32
    %c0_i32_1 = arith.constant 0 : i32
    return %c0_i32, %c0_i32_0 : i32, i32
  }
  func.func @transform_2(%arg0: i32) -> (i32, i32) {
    %c0_i32 = arith.constant 0 : i32
    %c0_i32_0 = arith.constant 0 : i32
    %c0_i32_1 = arith.constant 0 : i32
    return %c0_i32, %c0_i32_0 : i32, i32
  }
  func.func @transform_3(%arg0: i32) -> (i32, i32) {
    %c0_i32 = arith.constant 0 : i32
    %c0_i32_0 = arith.constant 0 : i32
    %c0_i32_1 = arith.constant 0 : i32
    return %c0_i32, %c0_i32_0 : i32, i32
  }
  func.func @transform_4(%arg0: i32) -> (i32, i32) {
    %c0_i32 = arith.constant 0 : i32
    %c0_i32_0 = arith.constant 0 : i32
    %c0_i32_1 = arith.constant 0 : i32
    return %c0_i32, %c0_i32_0 : i32, i32
  }
  func.func @transform_5(%arg0: i32) -> (i32, i32) {
    %c0_i32 = arith.constant 0 : i32
    %c0_i32_0 = arith.constant 0 : i32
    %c0_i32_1 = arith.constant 0 : i32
    return %c0_i32, %c0_i32_0 : i32, i32
  }
  func.func @transform_6(%arg0: i32) -> (i32, i32) {
    %c0_i32 = arith.constant 0 : i32
    %c0_i32_0 = arith.constant 0 : i32
    %c0_i32_1 = arith.constant 0 : i32
    return %c0_i32, %c0_i32_0 : i32, i32
  }
  func.func @transform_7(%arg0: i32) -> (i32, i32) {
    %c0_i32 = arith.constant 0 : i32
    %c0_i32_0 = arith.constant 0 : i32
    %c0_i32_1 = arith.constant 0 : i32
    return %c0_i32, %c0_i32_0 : i32, i32
  }
  func.func @transform_8(%arg0: i32) -> (i32, i32) {
    %c0_i32 = arith.constant 0 : i32
    %c0_i32_0 = arith.constant 0 : i32
    %c0_i32_1 = arith.constant 0 : i32
    return %c0_i32, %c0_i32_0 : i32, i32
  }
  func.func @transform_9(%arg0: i32) -> (i32, i32) {
    %c0_i32 = arith.constant 0 : i32
    %c0_i32_0 = arith.constant 0 : i32
    %c0_i32_1 = arith.constant 0 : i32
    return %c0_i32, %c0_i32_0 : i32, i32
  }
  func.func @transform_10(%arg0: i32) -> (i32, i32) {
    %c0_i32 = arith.constant 0 : i32
    %c0_i32_0 = arith.constant 0 : i32
    %c0_i32_1 = arith.constant 0 : i32
    return %c0_i32, %c0_i32_0 : i32, i32
  }
  func.func @transform_11(%arg0: i32) -> (i32, i32) {
    %c0_i32 = arith.constant 0 : i32
    %c0_i32_0 = arith.constant 0 : i32
    %c0_i32_1 = arith.constant 0 : i32
    return %c0_i32, %c0_i32_0 : i32, i32
  }
  func.func @transform_12(%arg0: i32) -> (i32, i32) {
    %c0_i32 = arith.constant 0 : i32
    %c0_i32_0 = arith.constant 0 : i32
    %c0_i32_1 = arith.constant 0 : i32
    return %c0_i32, %c0_i32_0 : i32, i32
  }
  func.func @transform_13(%arg0: i32) -> (i32, i32) {
    %c0_i32 = arith.constant 0 : i32
    %c0_i32_0 = arith.constant 0 : i32
    %c0_i32_1 = arith.constant 0 : i32
    return %c0_i32, %c0_i32_0 : i32, i32
  }
  func.func @transform_14(%arg0: i32) -> (i32, i32) {
    %c0_i32 = arith.constant 0 : i32
    %c0_i32_0 = arith.constant 0 : i32
    %c0_i32_1 = arith.constant 0 : i32
    return %c0_i32, %c0_i32_0 : i32, i32
  }
  func.func @transform_15(%arg0: i32) -> (i32, i32) {
    %c0_i32 = arith.constant 0 : i32
    %c0_i32_0 = arith.constant 0 : i32
    %c0_i32_1 = arith.constant 0 : i32
    return %c0_i32, %c0_i32_0 : i32, i32
  }
  func.func @transform_16(%arg0: i32) -> (i32, i32) {
    %c0_i32 = arith.constant 0 : i32
    %c0_i32_0 = arith.constant 0 : i32
    %c0_i32_1 = arith.constant 0 : i32
    return %c0_i32, %c0_i32_0 : i32, i32
  }
  func.func @transform_17(%arg0: i32) -> (i32, i32) {
    %c0_i32 = arith.constant 0 : i32
    %c0_i32_0 = arith.constant 0 : i32
    %c0_i32_1 = arith.constant 0 : i32
    return %c0_i32, %c0_i32_0 : i32, i32
  }
  func.func @transform_18(%arg0: i32) -> (i32, i32) {
    %c0_i32 = arith.constant 0 : i32
    %c0_i32_0 = arith.constant 0 : i32
    %c0_i32_1 = arith.constant 0 : i32
    return %c0_i32, %c0_i32_0 : i32, i32
  }
  func.func @transform_19(%arg0: i32) -> (i32, i32) {
    %c0_i32 = arith.constant 0 : i32
    %c0_i32_0 = arith.constant 0 : i32
    %c0_i32_1 = arith.constant 0 : i32
    return %c0_i32, %c0_i32_0 : i32, i32
  }
  func.func @transform_20(%arg0: i32) -> (i32, i32) {
    %c0_i32 = arith.constant 0 : i32
    %c0_i32_0 = arith.constant 0 : i32
    %c0_i32_1 = arith.constant 0 : i32
    return %c0_i32, %c0_i32_0 : i32, i32
  }
  func.func @transform_21(%arg0: i32) -> (i32, i32) {
    %c0_i32 = arith.constant 0 : i32
    %c0_i32_0 = arith.constant 0 : i32
    %c0_i32_1 = arith.constant 0 : i32
    return %c0_i32, %c0_i32_0 : i32, i32
  }
  func.func @transform_22(%arg0: i32) -> (i32, i32) {
    %c0_i32 = arith.constant 0 : i32
    %c0_i32_0 = arith.constant 0 : i32
    %c0_i32_1 = arith.constant 0 : i32
    return %c0_i32, %c0_i32_0 : i32, i32
  }
  func.func @transform_23(%arg0: i32) -> (i32, i32) {
    %c0_i32 = arith.constant 0 : i32
    %c0_i32_0 = arith.constant 0 : i32
    %c0_i32_1 = arith.constant 0 : i32
    return %c0_i32, %c0_i32_0 : i32, i32
  }
  func.func @transform_24(%arg0: i32) -> (i32, i32) {
    %c0_i32 = arith.constant 0 : i32
    %c0_i32_0 = arith.constant 0 : i32
    %c0_i32_1 = arith.constant 0 : i32
    return %c0_i32, %c0_i32_0 : i32, i32
  }
  func.func @transform_25(%arg0: i32) -> (i32, i32) {
    %c0_i32 = arith.constant 0 : i32
    %c0_i32_0 = arith.constant 0 : i32
    %c0_i32_1 = arith.constant 0 : i32
    return %c0_i32, %c0_i32_0 : i32, i32
  }
  func.func @transform_26(%arg0: i32) -> (i32, i32) {
    %c0_i32 = arith.constant 0 : i32
    %c0_i32_0 = arith.constant 0 : i32
    %c0_i32_1 = arith.constant 0 : i32
    return %c0_i32, %c0_i32_0 : i32, i32
  }
  func.func @transform_27(%arg0: i32) -> (i32, i32) {
    %c0_i32 = arith.constant 0 : i32
    %c0_i32_0 = arith.constant 0 : i32
    %c0_i32_1 = arith.constant 0 : i32
    return %c0_i32, %c0_i32_0 : i32, i32
  }
  func.func @transform_28(%arg0: i32) -> (i32, i32) {
    %c0_i32 = arith.constant 0 : i32
    %c0_i32_0 = arith.constant 0 : i32
    %c0_i32_1 = arith.constant 0 : i32
    return %c0_i32, %c0_i32_0 : i32, i32
  }
  func.func @transform_29(%arg0: i32) -> (i32, i32) {
    %c0_i32 = arith.constant 0 : i32
    %c0_i32_0 = arith.constant 0 : i32
    %c0_i32_1 = arith.constant 0 : i32
    return %c0_i32, %c0_i32_0 : i32, i32
  }
  func.func @transform_30(%arg0: i32) -> (i32, i32) {
    %c0_i32 = arith.constant 0 : i32
    %c0_i32_0 = arith.constant 0 : i32
    %c0_i32_1 = arith.constant 0 : i32
    return %c0_i32, %c0_i32_0 : i32, i32
  }
  func.func @transform_31(%arg0: i32) -> (i32, i32) {
    %c0_i32 = arith.constant 0 : i32
    %c0_i32_0 = arith.constant 0 : i32
    %c0_i32_1 = arith.constant 0 : i32
    return %c0_i32, %c0_i32_0 : i32, i32
  }
  func.func @transform_32(%arg0: i32) -> (i32, i32) {
    %c0_i32 = arith.constant 0 : i32
    %c0_i32_0 = arith.constant 0 : i32
    %c0_i32_1 = arith.constant 0 : i32
    return %c0_i32, %c0_i32_0 : i32, i32
  }
  func.func @transform_33(%arg0: i32) -> (i32, i32) {
    %c0_i32 = arith.constant 0 : i32
    %c0_i32_0 = arith.constant 0 : i32
    %c0_i32_1 = arith.constant 0 : i32
    return %c0_i32, %c0_i32_0 : i32, i32
  }
  func.func @transform_34(%arg0: i32) -> (i32, i32) {
    %c0_i32 = arith.constant 0 : i32
    %c0_i32_0 = arith.constant 0 : i32
    %c0_i32_1 = arith.constant 0 : i32
    return %c0_i32, %c0_i32_0 : i32, i32
  }
  func.func @transform_35(%arg0: i32) -> (i32, i32) {
    %c0_i32 = arith.constant 0 : i32
    %c0_i32_0 = arith.constant 0 : i32
    %c0_i32_1 = arith.constant 0 : i32
    return %c0_i32, %c0_i32_0 : i32, i32
  }
  func.func @transform_36(%arg0: i32) -> (i32, i32) {
    %c0_i32 = arith.constant 0 : i32
    %c0_i32_0 = arith.constant 0 : i32
    %c0_i32_1 = arith.constant 0 : i32
    return %c0_i32, %c0_i32_0 : i32, i32
  }
  func.func @transform_37(%arg0: i32) -> (i32, i32) {
    %c0_i32 = arith.constant 0 : i32
    %c0_i32_0 = arith.constant 0 : i32
    %c0_i32_1 = arith.constant 0 : i32
    return %c0_i32, %c0_i32_0 : i32, i32
  }
  func.func @transform_38(%arg0: i32) -> (i32, i32) {
    %c0_i32 = arith.constant 0 : i32
    %c0_i32_0 = arith.constant 0 : i32
    %c0_i32_1 = arith.constant 0 : i32
    return %c0_i32, %c0_i32_0 : i32, i32
  }
  func.func @transform_39(%arg0: i32) -> (i32, i32, i32) {
    %c0_i32 = arith.constant 0 : i32
    %c0_i32_0 = arith.constant 0 : i32
    %c0_i32_1 = arith.constant 0 : i32
    return %arg0, %c0_i32, %c0_i32_0 : i32, i32, i32
  }
  func.func @transform_40(%arg0: i32) -> (i32, i32, i32) {
    %c0_i32 = arith.constant 0 : i32
    %c0_i32_0 = arith.constant 0 : i32
    %c0_i32_1 = arith.constant 0 : i32
    return %arg0, %c0_i32, %c0_i32_0 : i32, i32, i32
  }
  func.func @transform_41(%arg0: i32) -> (i32, i32, i32) {
    %c0_i32 = arith.constant 0 : i32
    %c0_i32_0 = arith.constant 0 : i32
    %c0_i32_1 = arith.constant 0 : i32
    return %arg0, %c0_i32, %c0_i32_0 : i32, i32, i32
  }
}

</mosaic_0001>

<llo_original>
// kernel: vit_forward.1
$region0: #{vit_forward.1}
  #allocation0 [shape = 'u32[]', space=smem, size = 0x4, offset = 0x4, fixed_abs, tag = 'smem constant byte address 0x4 - core index']
  #allocation1 [shape = 'u32[144,128]{1,0:T(1,128)}', space=vmem, size = 0x12000, scoped, tag = 'internal scratch']
  %s0 = inlined_call_operand.smem [shape: u32[42], index: -1, kind: input, shape index: {}]
  %s1 = sld [smem:[%s0]]
  %s2 = scalar_lea.smem %s0, 1
  %s3 = sld [smem:[%s2]]
  %s4 = scalar_lea.smem %s0, 2
  %s5 = sld [smem:[%s4]]
  %s6 = scalar_lea.smem %s0, 3
  %s7 = sld [smem:[%s6]]
  %s8 = scalar_lea.smem %s0, 4
  %s9 = sld [smem:[%s8]]
  %s10 = scalar_lea.smem %s0, 5
  %s11 = sld [smem:[%s10]]
  %s12 = scalar_lea.smem %s0, 6
  %s13 = sld [smem:[%s12]]
  %s14 = scalar_lea.smem %s0, 7
  %s15 = sld [smem:[%s14]]
  %s16 = scalar_lea.smem %s0, 8
  %s17 = sld [smem:[%s16]]
  %s18 = scalar_lea.smem %s0, 9
  %s19 = sld [smem:[%s18]]
  %s20 = scalar_lea.smem %s0, 10
  %s21 = sld [smem:[%s20]]
  %s22 = scalar_lea.smem %s0, 11
  %s23 = sld [smem:[%s22]]
  %s24 = scalar_lea.smem %s0, 12
  %s25 = sld [smem:[%s24]]
  %s26 = scalar_lea.smem %s0, 13
  %s27 = sld [smem:[%s26]]
  %s28 = scalar_lea.smem %s0, 14
  %s29 = sld [smem:[%s28]]
  %s30 = scalar_lea.smem %s0, 15
  %s31 = sld [smem:[%s30]]
  %s32 = scalar_lea.smem %s0, 16
  %s33 = sld [smem:[%s32]]
  %s34 = scalar_lea.smem %s0, 17
  %s35 = sld [smem:[%s34]]
  %s36 = scalar_lea.smem %s0, 18
  %s37 = sld [smem:[%s36]]
  %s38 = scalar_lea.smem %s0, 19
  %s39 = sld [smem:[%s38]]
  %s40 = scalar_lea.smem %s0, 20
  %s41 = sld [smem:[%s40]]
  %s42 = scalar_lea.smem %s0, 21
  %s43 = sld [smem:[%s42]]
  %s44 = scalar_lea.smem %s0, 22
  %s45 = sld [smem:[%s44]]
  %s46 = scalar_lea.smem %s0, 23
  %s47 = sld [smem:[%s46]]
  %s48 = scalar_lea.smem %s0, 24
  %s49 = sld [smem:[%s48]]
  %s50 = scalar_lea.smem %s0, 25
  %s51 = sld [smem:[%s50]]
  %s52 = scalar_lea.smem %s0, 26
  %s53 = sld [smem:[%s52]]
  %s54 = scalar_lea.smem %s0, 27
  %s55 = sld [smem:[%s54]]
  %s56 = scalar_lea.smem %s0, 28
  %s57 = sld [smem:[%s56]]
  %s58 = scalar_lea.smem %s0, 29
  %s59 = sld [smem:[%s58]]
  %s60 = scalar_lea.smem %s0, 30
  %s61 = sld [smem:[%s60]]
  %s62 = scalar_lea.smem %s0, 31
  %s63 = sld [smem:[%s62]]
  %s64 = scalar_lea.smem %s0, 32
  %s65 = sld [smem:[%s64]]
  %s66 = scalar_lea.smem %s0, 33
  %s67 = sld [smem:[%s66]]
  %s68 = scalar_lea.smem %s0, 34
  %s69 = sld [smem:[%s68]]
  %s70 = scalar_lea.smem %s0, 35
  %s71 = sld [smem:[%s70]]
  %s72 = scalar_lea.smem %s0, 36
  %s73 = sld [smem:[%s72]]
  %s74 = scalar_lea.smem %s0, 37
  %s75 = sld [smem:[%s74]]
  %s76 = scalar_lea.smem %s0, 38
  %s77 = sld [smem:[%s76]]
  %s78 = scalar_lea.smem %s0, 39
  %s79 = sld [smem:[%s78]]
  %s80 = scalar_lea.smem %s0, 40
  %s81 = sld [smem:[%s80]]
  %s82 = scalar_lea.smem %s0, 41
  %s83 = sld [smem:[%s82]]
  %84 = xla_tuple %s79, %s81, %s83
  %s85 = sld [smem:[#allocation0]]
  $region205: #{vit_forward.1} parent=0
    _
  %s87 = ssub.s32 1, %s85
  %s88 = scalar_select 0, %s87, %s85
  $region1: #{vit_forward.1} parent=0
    #allocation2 [shape = 'u8[1024]{0}', space=vmem, size = 0x400, scoped, tag = 'output window, operand 0']
    #allocation3 [shape = 's32[2]{0}', space=sflag, size = 0x8, scoped, tag = 'scoped memory for vit_forward.1']
    #allocation4 [shape = 'u8[1024]{0}', space=vmem, size = 0x400, scoped, tag = 'output window, operand 1']
    #allocation5 [shape = 's32[2]{0}', space=sflag, size = 0x8, scoped, tag = 'scoped memory for vit_forward.1']
    #allocation6 [shape = 'u8[1024]{0}', space=vmem, size = 0x400, scoped, tag = 'output window, operand 2']
    %89 = vsyncpa [#allocation3], 0
    %s90 = scalar_lea.sflag [#allocation3], 1
    %91 = vsyncpa %s90, 0
    %92 = vsyncpa [#allocation5], 0
    %s93 = scalar_lea.sflag [#allocation5], 1
    %94 = vsyncpa %s93, 0
    loop: start=0, step=1, limit=4
    $region2: #{vit_forward.1} parent=1 // loop_pre_header
      _
    $region3: #{vit_forward.1} parent=1 // loop_header
      %s96 = sphi 0, %s100
      %p97 = scmp.ge.s32.totalorder %s96, 4
      %s106 = sphi 0, %s108
      %s109 = sphi 0, %s106
      %s110 = sphi 0, %s109
      %s126 = sphi 0, %s110
      %s130 = sphi 0, %s130
      %s132 = sphi 0, %s130
      %s133 = sphi 0, %s132
      %s147 = sphi 0, %s133
      %s151 = sphi 0, %s151
      %s153 = sphi 0, %s151
      %s154 = sphi 0, %s153
      %s168 = sphi 0, %s154
      %s172 = sphi 0, %s172
      %s174 = sphi 0, %s172
      %s175 = sphi 0, %s174
      %s189 = sphi 0, %s175
      %s193 = sphi 0, %s193
      %s195 = sphi 0, %s193
      %s196 = sphi 0, %s195
      %s210 = sphi 0, %s196
      %s214 = sphi 0, %s214
      %s216 = sphi 0, %s214
      %s217 = sphi 0, %s216
      %s231 = sphi 0, %s217
      %s235 = sphi 0, %s235
      %s237 = sphi 0, %s235
      %s238 = sphi 0, %s237
      %s252 = sphi 0, %s238
      %s256 = sphi 0, %s256
      %s258 = sphi 0, %s256
      %s259 = sphi 0, %s258
      %s273 = sphi 0, %s259
      %s277 = sphi 0, %s277
      %s279 = sphi 0, %s277
      %s280 = sphi 0, %s279
      %s294 = sphi 0, %s280
      %s298 = sphi 0, %s298
      %s300 = sphi 0, %s298
      %s301 = sphi 0, %s300
      %s315 = sphi 0, %s301
      %s319 = sphi 0, %s319
      %s321 = sphi 0, %s319
      %s322 = sphi 0, %s321
      %s336 = sphi 0, %s322
      %s340 = sphi 0, %s340
      %s342 = sphi 0, %s340
      %s343 = sphi 0, %s342
      %s357 = sphi 0, %s343
      %s361 = sphi 0, %s361
      %s363 = sphi 0, %s361
      %s364 = sphi 0, %s363
      %s378 = sphi 0, %s364
      %s382 = sphi 0, %s382
      %s384 = sphi 0, %s382
      %s385 = sphi 0, %s384
      %s399 = sphi 0, %s385
      %s403 = sphi 0, %s403
      %s405 = sphi 0, %s403
      %s406 = sphi 0, %s405
      %s420 = sphi 0, %s406
      %s424 = sphi 0, %s424
      %s426 = sphi 0, %s424
      %s427 = sphi 0, %s426
      %s441 = sphi 0, %s427
      %s445 = sphi 0, %s445
      %s447 = sphi 0, %s445
      %s448 = sphi 0, %s447
      %s462 = sphi 0, %s448
      %s466 = sphi 0, %s466
      %s468 = sphi 0, %s466
      %s469 = sphi 0, %s468
      %s483 = sphi 0, %s469
      %s487 = sphi 0, %s487
      %s489 = sphi 0, %s487
      %s490 = sphi 0, %s489
      %s504 = sphi 0, %s490
      %s508 = sphi 0, %s508
      %s510 = sphi 0, %s508
      %s511 = sphi 0, %s510
      %s525 = sphi 0, %s511
      %s529 = sphi 0, %s529
      %s531 = sphi 0, %s529
      %s532 = sphi 0, %s531
      %s546 = sphi 0, %s532
      %s550 = sphi 0, %s550
      %s552 = sphi 0, %s550
      %s553 = sphi 0, %s552
      %s567 = sphi 0, %s553
      %s571 = sphi 0, %s571
      %s573 = sphi 0, %s571
      %s574 = sphi 0, %s573
      %s588 = sphi 0, %s574
      %s592 = sphi 0, %s592
      %s594 = sphi 0, %s592
      %s595 = sphi 0, %s594
      %s609 = sphi 0, %s595
      %s613 = sphi 0, %s613
      %s615 = sphi 0, %s613
      %s616 = sphi 0, %s615
      %s630 = sphi 0, %s616
      %s634 = sphi 0, %s634
      %s636 = sphi 0, %s634
      %s637 = sphi 0, %s636
      %s651 = sphi 0, %s637
      %s655 = sphi 0, %s655
      %s657 = sphi 0, %s655
      %s658 = sphi 0, %s657
      %s672 = sphi 0, %s658
      %s676 = sphi 0, %s676
      %s678 = sphi 0, %s676
      %s679 = sphi 0, %s678
      %s693 = sphi 0, %s679
      %s697 = sphi 0, %s697
      %s699 = sphi 0, %s697
      %s700 = sphi 0, %s699
      %s714 = sphi 0, %s700
      %s718 = sphi 0, %s718
      %s720 = sphi 0, %s718
      %s721 = sphi 0, %s720
      %s735 = sphi 0, %s721
      %s739 = sphi 0, %s739
      %s741 = sphi 0, %s739
      %s742 = sphi 0, %s741
      %s756 = sphi 0, %s742
      %s760 = sphi 0, %s760
      %s762 = sphi 0, %s760
      %s763 = sphi 0, %s762
      %s777 = sphi 0, %s763
      %s781 = sphi 0, %s781
      %s783 = sphi 0, %s781
      %s784 = sphi 0, %s783
      %s798 = sphi 0, %s784
      %s802 = sphi 0, %s802
      %s804 = sphi 0, %s802
      %s805 = sphi 0, %s804
      %s819 = sphi 0, %s805
      %s823 = sphi 0, %s823
      %s825 = sphi 0, %s823
      %s826 = sphi 0, %s825
      %s840 = sphi 0, %s826
      %s844 = sphi 0, %s844
      %s846 = sphi 0, %s844
      %s847 = sphi 0, %s846
      %s861 = sphi 0, %s847
      %s865 = sphi 0, %s865
      %s867 = sphi 0, %s865
      %s868 = sphi 0, %s867
      %s882 = sphi 0, %s868
      %s886 = sphi 0, %s886
      %s888 = sphi 0, %s886
      %s889 = sphi 0, %s888
      %s903 = sphi 0, %s889
      %s907 = sphi 0, %s907
      %s909 = sphi 0, %s907
      %s910 = sphi 0, %s909
      %s924 = sphi 0, %s910
      %s930 = sphi 0, %s932
      %s933 = sphi 0, %s930
      %s934 = sphi 0, %s933
      %s950 = sphi 0, %s934
      %s956 = sphi 0, %s958
      %s959 = sphi 0, %s956
      %s960 = sphi 0, %s959
      %s976 = sphi 0, %s960
      %s982 = sphi 0, %s984
      %s985 = sphi 0, %s982
      %s986 = sphi 0, %s985
      %s1002 = sphi 0, %s986
    $region4: #{vit_forward.1} parent=1 // loop_header_branch
      %99 = sbr.rel (%p97) target = $region8
    $region5: #{vit_forward.1} parent=1 // loop_body
      %s101 = ssub.s32 %s96, 1
      %s102 = ssub.s32 %s96, 2
      %s103 = sadd.s32 %s96, 1
      %s104 = ssub.s32 %s96, %s103
      %p105 = scmp.eq.s32.totalorder %s104, 0
      %s107 = sadd.s32 %s106, 1
      %s108 = scalar_select %p105, %s106, %s107
      %p111 = pneg %p105
      %p112 = scmp.eq.s32.totalorder %s96, 1
      %p113 = por %p111, %p112
      %p114 = scmp.ne.s32.totalorder %s106, %s109
      %p115 = scmp.eq.s32.totalorder %s96, 0
      %p116 = por %p114, %p115
      %p117 = scmp.ne.s32.totalorder %s106, %s109
      %p118 = scmp.eq.s32.totalorder %s101, 1
      %p119 = por %p117, %p118
      %p120 = scmp.ne.s32.totalorder %s109, %s110
      %p121 = scmp.eq.s32.totalorder %s101, 0
      %p122 = por %p120, %p121
      %p123 = scmp.ne.s32.totalorder %s109, %s110
      %p124 = scmp.eq.s32.totalorder %s102, 1
      %p125 = por %p123, %p124
      %p127 = scmp.ne.s32.totalorder %s110, %s126
      %p128 = scmp.eq.s32.totalorder %s102, 0
      %p129 = por %p127, %p128
      %s131 = sadd.s32 %s130, 1
      %p134 = scmp.eq.s32.totalorder %s96, 1
      %p135 = scmp.ne.s32.totalorder %s130, %s132
      %p136 = scmp.eq.s32.totalorder %s96, 0
      %p137 = por %p135, %p136
      %p138 = scmp.ne.s32.totalorder %s130, %s132
      %p139 = scmp.eq.s32.totalorder %s101, 1
      %p140 = por %p138, %p139
      %p141 = scmp.ne.s32.totalorder %s132, %s133
      %p142 = scmp.eq.s32.totalorder %s101, 0
      %p143 = por %p141, %p142
      %p144 = scmp.ne.s32.totalorder %s132, %s133
      %p145 = scmp.eq.s32.totalorder %s102, 1
      %p146 = por %p144, %p145
      %p148 = scmp.ne.s32.totalorder %s133, %s147
      %p149 = scmp.eq.s32.totalorder %s102, 0
      %p150 = por %p148, %p149
      %s152 = sadd.s32 %s151, 1
      %p155 = scmp.eq.s32.totalorder %s96, 1
      %p156 = scmp.ne.s32.totalorder %s151, %s153
      %p157 = scmp.eq.s32.totalorder %s96, 0
      %p158 = por %p156, %p157
      %p159 = scmp.ne.s32.totalorder %s151, %s153
      %p160 = scmp.eq.s32.totalorder %s101, 1
      %p161 = por %p159, %p160
      %p162 = scmp.ne.s32.totalorder %s153, %s154
      %p163 = scmp.eq.s32.totalorder %s101, 0
      %p164 = por %p162, %p163
      %p165 = scmp.ne.s32.totalorder %s153, %s154
      %p166 = scmp.eq.s32.totalorder %s102, 1
      %p167 = por %p165, %p166
      %p169 = scmp.ne.s32.totalorder %s154, %s168
      %p170 = scmp.eq.s32.totalorder %s102, 0
      %p171 = por %p169, %p170
      %s173 = sadd.s32 %s172, 1
      %p176 = scmp.eq.s32.totalorder %s96, 1
      %p177 = scmp.ne.s32.totalorder %s172, %s174
      %p178 = scmp.eq.s32.totalorder %s96, 0
      %p179 = por %p177, %p178
      %p180 = scmp.ne.s32.totalorder %s172, %s174
      %p181 = scmp.eq.s32.totalorder %s101, 1
      %p182 = por %p180, %p181
      %p183 = scmp.ne.s32.totalorder %s174, %s175
      %p184 = scmp.eq.s32.totalorder %s101, 0
      %p185 = por %p183, %p184
      %p186 = scmp.ne.s32.totalorder %s174, %s175
      %p187 = scmp.eq.s32.totalorder %s102, 1
      %p188 = por %p186, %p187
      %p190 = scmp.ne.s32.totalorder %s175, %s189
      %p191 = scmp.eq.s32.totalorder %s102, 0
      %p192 = por %p190, %p191
      %s194 = sadd.s32 %s193, 1
      %p197 = scmp.eq.s32.totalorder %s96, 1
      %p198 = scmp.ne.s32.totalorder %s193, %s195
      %p199 = scmp.eq.s32.totalorder %s96, 0
      %p200 = por %p198, %p199
      %p201 = scmp.ne.s32.totalorder %s193, %s195
      %p202 = scmp.eq.s32.totalorder %s101, 1
      %p203 = por %p201, %p202
      %p204 = scmp.ne.s32.totalorder %s195, %s196
      %p205 = scmp.eq.s32.totalorder %s101, 0
      %p206 = por %p204, %p205
      %p207 = scmp.ne.s32.totalorder %s195, %s196
      %p208 = scmp.eq.s32.totalorder %s102, 1
      %p209 = por %p207, %p208
      %p211 = scmp.ne.s32.totalorder %s196, %s210
      %p212 = scmp.eq.s32.totalorder %s102, 0
      %p213 = por %p211, %p212
      %s215 = sadd.s32 %s214, 1
      %p218 = scmp.eq.s32.totalorder %s96, 1
      %p219 = scmp.ne.s32.totalorder %s214, %s216
      %p220 = scmp.eq.s32.totalorder %s96, 0
      %p221 = por %p219, %p220
      %p222 = scmp.ne.s32.totalorder %s214, %s216
      %p223 = scmp.eq.s32.totalorder %s101, 1
      %p224 = por %p222, %p223
      %p225 = scmp.ne.s32.totalorder %s216, %s217
      %p226 = scmp.eq.s32.totalorder %s101, 0
      %p227 = por %p225, %p226
      %p228 = scmp.ne.s32.totalorder %s216, %s217
      %p229 = scmp.eq.s32.totalorder %s102, 1
      %p230 = por %p228, %p229
      %p232 = scmp.ne.s32.totalorder %s217, %s231
      %p233 = scmp.eq.s32.totalorder %s102, 0
      %p234 = por %p232, %p233
      %s236 = sadd.s32 %s235, 1
      %p239 = scmp.eq.s32.totalorder %s96, 1
      %p240 = scmp.ne.s32.totalorder %s235, %s237
      %p241 = scmp.eq.s32.totalorder %s96, 0
      %p242 = por %p240, %p241
      %p243 = scmp.ne.s32.totalorder %s235, %s237
      %p244 = scmp.eq.s32.totalorder %s101, 1
      %p245 = por %p243, %p244
      %p246 = scmp.ne.s32.totalorder %s237, %s238
      %p247 = scmp.eq.s32.totalorder %s101, 0
      %p248 = por %p246, %p247
      %p249 = scmp.ne.s32.totalorder %s237, %s238
      %p250 = scmp.eq.s32.totalorder %s102, 1
      %p251 = por %p249, %p250
      %p253 = scmp.ne.s32.totalorder %s238, %s252
      %p254 = scmp.eq.s32.totalorder %s102, 0
      %p255 = por %p253, %p254
      %s257 = sadd.s32 %s256, 1
      %p260 = scmp.eq.s32.totalorder %s96, 1
      %p261 = scmp.ne.s32.totalorder %s256, %s258
      %p262 = scmp.eq.s32.totalorder %s96, 0
      %p263 = por %p261, %p262
      %p264 = scmp.ne.s32.totalorder %s256, %s258
      %p265 = scmp.eq.s32.totalorder %s101, 1
      %p266 = por %p264, %p265
      %p267 = scmp.ne.s32.totalorder %s258, %s259
      %p268 = scmp.eq.s32.totalorder %s101, 0
      %p269 = por %p267, %p268
      %p270 = scmp.ne.s32.totalorder %s258, %s259
      %p271 = scmp.eq.s32.totalorder %s102, 1
      %p272 = por %p270, %p271
      %p274 = scmp.ne.s32.totalorder %s259, %s273
      %p275 = scmp.eq.s32.totalorder %s102, 0
      %p276 = por %p274, %p275
      %s278 = sadd.s32 %s277, 1
      %p281 = scmp.eq.s32.totalorder %s96, 1
      %p282 = scmp.ne.s32.totalorder %s277, %s279
      %p283 = scmp.eq.s32.totalorder %s96, 0
      %p284 = por %p282, %p283
      %p285 = scmp.ne.s32.totalorder %s277, %s279
      %p286 = scmp.eq.s32.totalorder %s101, 1
      %p287 = por %p285, %p286
      %p288 = scmp.ne.s32.totalorder %s279, %s280
      %p289 = scmp.eq.s32.totalorder %s101, 0
      %p290 = por %p288, %p289
      %p291 = scmp.ne.s32.totalorder %s279, %s280
      %p292 = scmp.eq.s32.totalorder %s102, 1
      %p293 = por %p291, %p292
      %p295 = scmp.ne.s32.totalorder %s280, %s294
      %p296 = scmp.eq.s32.totalorder %s102, 0
      %p297 = por %p295, %p296
      %s299 = sadd.s32 %s298, 1
      %p302 = scmp.eq.s32.totalorder %s96, 1
      %p303 = scmp.ne.s32.totalorder %s298, %s300
      %p304 = scmp.eq.s32.totalorder %s96, 0
      %p305 = por %p303, %p304
      %p306 = scmp.ne.s32.totalorder %s298, %s300
      %p307 = scmp.eq.s32.totalorder %s101, 1
      %p308 = por %p306, %p307
      %p309 = scmp.ne.s32.totalorder %s300, %s301
      %p310 = scmp.eq.s32.totalorder %s101, 0
      %p311 = por %p309, %p310
      %p312 = scmp.ne.s32.totalorder %s300, %s301
      %p313 = scmp.eq.s32.totalorder %s102, 1
      %p314 = por %p312, %p313
      %p316 = scmp.ne.s32.totalorder %s301, %s315
      %p317 = scmp.eq.s32.totalorder %s102, 0
      %p318 = por %p316, %p317
      %s320 = sadd.s32 %s319, 1
      %p323 = scmp.eq.s32.totalorder %s96, 1
      %p324 = scmp.ne.s32.totalorder %s319, %s321
      %p325 = scmp.eq.s32.totalorder %s96, 0
      %p326 = por %p324, %p325
      %p327 = scmp.ne.s32.totalorder %s319, %s321
      %p328 = scmp.eq.s32.totalorder %s101, 1
      %p329 = por %p327, %p328
      %p330 = scmp.ne.s32.totalorder %s321, %s322
      %p331 = scmp.eq.s32.totalorder %s101, 0
      %p332 = por %p330, %p331
      %p333 = scmp.ne.s32.totalorder %s321, %s322
      %p334 = scmp.eq.s32.totalorder %s102, 1
      %p335 = por %p333, %p334
      %p337 = scmp.ne.s32.totalorder %s322, %s336
      %p338 = scmp.eq.s32.totalorder %s102, 0
      %p339 = por %p337, %p338
      %s341 = sadd.s32 %s340, 1
      %p344 = scmp.eq.s32.totalorder %s96, 1
      %p345 = scmp.ne.s32.totalorder %s340, %s342
      %p346 = scmp.eq.s32.totalorder %s96, 0
      %p347 = por %p345, %p346
      %p348 = scmp.ne.s32.totalorder %s340, %s342
      %p349 = scmp.eq.s32.totalorder %s101, 1
      %p350 = por %p348, %p349
      %p351 = scmp.ne.s32.totalorder %s342, %s343
      %p352 = scmp.eq.s32.totalorder %s101, 0
      %p353 = por %p351, %p352
      %p354 = scmp.ne.s32.totalorder %s342, %s343
      %p355 = scmp.eq.s32.totalorder %s102, 1
      %p356 = por %p354, %p355
      %p358 = scmp.ne.s32.totalorder %s343, %s357
      %p359 = scmp.eq.s32.totalorder %s102, 0
      %p360 = por %p358, %p359
      %s362 = sadd.s32 %s361, 1
      %p365 = scmp.eq.s32.totalorder %s96, 1
      %p366 = scmp.ne.s32.totalorder %s361, %s363
      %p367 = scmp.eq.s32.totalorder %s96, 0
      %p368 = por %p366, %p367
      %p369 = scmp.ne.s32.totalorder %s361, %s363
      %p370 = scmp.eq.s32.totalorder %s101, 1
      %p371 = por %p369, %p370
      %p372 = scmp.ne.s32.totalorder %s363, %s364
      %p373 = scmp.eq.s32.totalorder %s101, 0
      %p374 = por %p372, %p373
      %p375 = scmp.ne.s32.totalorder %s363, %s364
      %p376 = scmp.eq.s32.totalorder %s102, 1
      %p377 = por %p375, %p376
      %p379 = scmp.ne.s32.totalorder %s364, %s378
      %p380 = scmp.eq.s32.totalorder %s102, 0
      %p381 = por %p379, %p380
      %s383 = sadd.s32 %s382, 1
      %p386 = scmp.eq.s32.totalorder %s96, 1
      %p387 = scmp.ne.s32.totalorder %s382, %s384
      %p388 = scmp.eq.s32.totalorder %s96, 0
      %p389 = por %p387, %p388
      %p390 = scmp.ne.s32.totalorder %s382, %s384
      %p391 = scmp.eq.s32.totalorder %s101, 1
      %p392 = por %p390, %p391
      %p393 = scmp.ne.s32.totalorder %s384, %s385
      %p394 = scmp.eq.s32.totalorder %s101, 0
      %p395 = por %p393, %p394
      %p396 = scmp.ne.s32.totalorder %s384, %s385
      %p397 = scmp.eq.s32.totalorder %s102, 1
      %p398 = por %p396, %p397
      %p400 = scmp.ne.s32.totalorder %s385, %s399
      %p401 = scmp.eq.s32.totalorder %s102, 0
      %p402 = por %p400, %p401
      %s404 = sadd.s32 %s403, 1
      %p407 = scmp.eq.s32.totalorder %s96, 1
      %p408 = scmp.ne.s32.totalorder %s403, %s405
      %p409 = scmp.eq.s32.totalorder %s96, 0
      %p410 = por %p408, %p409
      %p411 = scmp.ne.s32.totalorder %s403, %s405
      %p412 = scmp.eq.s32.totalorder %s101, 1
      %p413 = por %p411, %p412
      %p414 = scmp.ne.s32.totalorder %s405, %s406
      %p415 = scmp.eq.s32.totalorder %s101, 0
      %p416 = por %p414, %p415
      %p417 = scmp.ne.s32.totalorder %s405, %s406
      %p418 = scmp.eq.s32.totalorder %s102, 1
      %p419 = por %p417, %p418
      %p421 = scmp.ne.s32.totalorder %s406, %s420
      %p422 = scmp.eq.s32.totalorder %s102, 0
      %p423 = por %p421, %p422
      %s425 = sadd.s32 %s424, 1
      %p428 = scmp.eq.s32.totalorder %s96, 1
      %p429 = scmp.ne.s32.totalorder %s424, %s426
      %p430 = scmp.eq.s32.totalorder %s96, 0
      %p431 = por %p429, %p430
      %p432 = scmp.ne.s32.totalorder %s424, %s426
      %p433 = scmp.eq.s32.totalorder %s101, 1
      %p434 = por %p432, %p433
      %p435 = scmp.ne.s32.totalorder %s426, %s427
      %p436 = scmp.eq.s32.totalorder %s101, 0
      %p437 = por %p435, %p436
      %p438 = scmp.ne.s32.totalorder %s426, %s427
      %p439 = scmp.eq.s32.totalorder %s102, 1
      %p440 = por %p438, %p439
      %p442 = scmp.ne.s32.totalorder %s427, %s441
      %p443 = scmp.eq.s32.totalorder %s102, 0
      %p444 = por %p442, %p443
      %s446 = sadd.s32 %s445, 1
      %p449 = scmp.eq.s32.totalorder %s96, 1
      %p450 = scmp.ne.s32.totalorder %s445, %s447
      %p451 = scmp.eq.s32.totalorder %s96, 0
      %p452 = por %p450, %p451
      %p453 = scmp.ne.s32.totalorder %s445, %s447
      %p454 = scmp.eq.s32.totalorder %s101, 1
      %p455 = por %p453, %p454
      %p456 = scmp.ne.s32.totalorder %s447, %s448
      %p457 = scmp.eq.s32.totalorder %s101, 0
      %p458 = por %p456, %p457
      %p459 = scmp.ne.s32.totalorder %s447, %s448
      %p460 = scmp.eq.s32.totalorder %s102, 1
      %p461 = por %p459, %p460
      %p463 = scmp.ne.s32.totalorder %s448, %s462
      %p464 = scmp.eq.s32.totalorder %s102, 0
      %p465 = por %p463, %p464
      %s467 = sadd.s32 %s466, 1
      %p470 = scmp.eq.s32.totalorder %s96, 1
      %p471 = scmp.ne.s32.totalorder %s466, %s468
      %p472 = scmp.eq.s32.totalorder %s96, 0
      %p473 = por %p471, %p472
      %p474 = scmp.ne.s32.totalorder %s466, %s468
      %p475 = scmp.eq.s32.totalorder %s101, 1
      %p476 = por %p474, %p475
      %p477 = scmp.ne.s32.totalorder %s468, %s469
      %p478 = scmp.eq.s32.totalorder %s101, 0
      %p479 = por %p477, %p478
      %p480 = scmp.ne.s32.totalorder %s468, %s469
      %p481 = scmp.eq.s32.totalorder %s102, 1
      %p482 = por %p480, %p481
      %p484 = scmp.ne.s32.totalorder %s469, %s483
      %p485 = scmp.eq.s32.totalorder %s102, 0
      %p486 = por %p484, %p485
      %s488 = sadd.s32 %s487, 1
      %p491 = scmp.eq.s32.totalorder %s96, 1
      %p492 = scmp.ne.s32.totalorder %s487, %s489
      %p493 = scmp.eq.s32.totalorder %s96, 0
      %p494 = por %p492, %p493
      %p495 = scmp.ne.s32.totalorder %s487, %s489
      %p496 = scmp.eq.s32.totalorder %s101, 1
      %p497 = por %p495, %p496
      %p498 = scmp.ne.s32.totalorder %s489, %s490
      %p499 = scmp.eq.s32.totalorder %s101, 0
      %p500 = por %p498, %p499
      %p501 = scmp.ne.s32.totalorder %s489, %s490
      %p502 = scmp.eq.s32.totalorder %s102, 1
      %p503 = por %p501, %p502
      %p505 = scmp.ne.s32.totalorder %s490, %s504
      %p506 = scmp.eq.s32.totalorder %s102, 0
      %p507 = por %p505, %p506
      %s509 = sadd.s32 %s508, 1
      %p512 = scmp.eq.s32.totalorder %s96, 1
      %p513 = scmp.ne.s32.totalorder %s508, %s510
      %p514 = scmp.eq.s32.totalorder %s96, 0
      %p515 = por %p513, %p514
      %p516 = scmp.ne.s32.totalorder %s508, %s510
      %p517 = scmp.eq.s32.totalorder %s101, 1
      %p518 = por %p516, %p517
      %p519 = scmp.ne.s32.totalorder %s510, %s511
      %p520 = scmp.eq.s32.totalorder %s101, 0
      %p521 = por %p519, %p520
      %p522 = scmp.ne.s32.totalorder %s510, %s511
      %p523 = scmp.eq.s32.totalorder %s102, 1
      %p524 = por %p522, %p523
      %p526 = scmp.ne.s32.totalorder %s511, %s525
      %p527 = scmp.eq.s32.totalorder %s102, 0
      %p528 = por %p526, %p527
      %s530 = sadd.s32 %s529, 1
      %p533 = scmp.eq.s32.totalorder %s96, 1
      %p534 = scmp.ne.s32.totalorder %s529, %s531
      %p535 = scmp.eq.s32.totalorder %s96, 0
      %p536 = por %p534, %p535
      %p537 = scmp.ne.s32.totalorder %s529, %s531
      %p538 = scmp.eq.s32.totalorder %s101, 1
      %p539 = por %p537, %p538
      %p540 = scmp.ne.s32.totalorder %s531, %s532
      %p541 = scmp.eq.s32.totalorder %s101, 0
      %p542 = por %p540, %p541
      %p543 = scmp.ne.s32.totalorder %s531, %s532
      %p544 = scmp.eq.s32.totalorder %s102, 1
      %p545 = por %p543, %p544
      %p547 = scmp.ne.s32.totalorder %s532, %s546
      %p548 = scmp.eq.s32.totalorder %s102, 0
      %p549 = por %p547, %p548
      %s551 = sadd.s32 %s550, 1
      %p554 = scmp.eq.s32.totalorder %s96, 1
      %p555 = scmp.ne.s32.totalorder %s550, %s552
      %p556 = scmp.eq.s32.totalorder %s96, 0
      %p557 = por %p555, %p556
      %p558 = scmp.ne.s32.totalorder %s550, %s552
      %p559 = scmp.eq.s32.totalorder %s101, 1
      %p560 = por %p558, %p559
      %p561 = scmp.ne.s32.totalorder %s552, %s553
      %p562 = scmp.eq.s32.totalorder %s101, 0
      %p563 = por %p561, %p562
      %p564 = scmp.ne.s32.totalorder %s552, %s553
      %p565 = scmp.eq.s32.totalorder %s102, 1
      %p566 = por %p564, %p565
      %p568 = scmp.ne.s32.totalorder %s553, %s567
      %p569 = scmp.eq.s32.totalorder %s102, 0
      %p570 = por %p568, %p569
      %s572 = sadd.s32 %s571, 1
      %p575 = scmp.eq.s32.totalorder %s96, 1
      %p576 = scmp.ne.s32.totalorder %s571, %s573
      %p577 = scmp.eq.s32.totalorder %s96, 0
      %p578 = por %p576, %p577
      %p579 = scmp.ne.s32.totalorder %s571, %s573
      %p580 = scmp.eq.s32.totalorder %s101, 1
      %p581 = por %p579, %p580
      %p582 = scmp.ne.s32.totalorder %s573, %s574
      %p583 = scmp.eq.s32.totalorder %s101, 0
      %p584 = por %p582, %p583
      %p585 = scmp.ne.s32.totalorder %s573, %s574
      %p586 = scmp.eq.s32.totalorder %s102, 1
      %p587 = por %p585, %p586
      %p589 = scmp.ne.s32.totalorder %s574, %s588
      %p590 = scmp.eq.s32.totalorder %s102, 0
      %p591 = por %p589, %p590
      %s593 = sadd.s32 %s592, 1
      %p596 = scmp.eq.s32.totalorder %s96, 1
      %p597 = scmp.ne.s32.totalorder %s592, %s594
      %p598 = scmp.eq.s32.totalorder %s96, 0
      %p599 = por %p597, %p598
      %p600 = scmp.ne.s32.totalorder %s592, %s594
      %p601 = scmp.eq.s32.totalorder %s101, 1
      %p602 = por %p600, %p601
      %p603 = scmp.ne.s32.totalorder %s594, %s595
      %p604 = scmp.eq.s32.totalorder %s101, 0
      %p605 = por %p603, %p604
      %p606 = scmp.ne.s32.totalorder %s594, %s595
      %p607 = scmp.eq.s32.totalorder %s102, 1
      %p608 = por %p606, %p607
      %p610 = scmp.ne.s32.totalorder %s595, %s609
      %p611 = scmp.eq.s32.totalorder %s102, 0
      %p612 = por %p610, %p611
      %s614 = sadd.s32 %s613, 1
      %p617 = scmp.eq.s32.totalorder %s96, 1
      %p618 = scmp.ne.s32.totalorder %s613, %s615
      %p619 = scmp.eq.s32.totalorder %s96, 0
      %p620 = por %p618, %p619
      %p621 = scmp.ne.s32.totalorder %s613, %s615
      %p622 = scmp.eq.s32.totalorder %s101, 1
      %p623 = por %p621, %p622
      %p624 = scmp.ne.s32.totalorder %s615, %s616
      %p625 = scmp.eq.s32.totalorder %s101, 0
      %p626 = por %p624, %p625
      %p627 = scmp.ne.s32.totalorder %s615, %s616
      %p628 = scmp.eq.s32.totalorder %s102, 1
      %p629 = por %p627, %p628
      %p631 = scmp.ne.s32.totalorder %s616, %s630
      %p632 = scmp.eq.s32.totalorder %s102, 0
      %p633 = por %p631, %p632
      %s635 = sadd.s32 %s634, 1
      %p638 = scmp.eq.s32.totalorder %s96, 1
      %p639 = scmp.ne.s32.totalorder %s634, %s636
      %p640 = scmp.eq.s32.totalorder %s96, 0
      %p641 = por %p639, %p640
      %p642 = scmp.ne.s32.totalorder %s634, %s636
      %p643 = scmp.eq.s32.totalorder %s101, 1
      %p644 = por %p642, %p643
      %p645 = scmp.ne.s32.totalorder %s636, %s637
      %p646 = scmp.eq.s32.totalorder %s101, 0
      %p647 = por %p645, %p646
      %p648 = scmp.ne.s32.totalorder %s636, %s637
      %p649 = scmp.eq.s32.totalorder %s102, 1
      %p650 = por %p648, %p649
      %p652 = scmp.ne.s32.totalorder %s637, %s651
      %p653 = scmp.eq.s32.totalorder %s102, 0
      %p654 = por %p652, %p653
      %s656 = sadd.s32 %s655, 1
      %p659 = scmp.eq.s32.totalorder %s96, 1
      %p660 = scmp.ne.s32.totalorder %s655, %s657
      %p661 = scmp.eq.s32.totalorder %s96, 0
      %p662 = por %p660, %p661
      %p663 = scmp.ne.s32.totalorder %s655, %s657
      %p664 = scmp.eq.s32.totalorder %s101, 1
      %p665 = por %p663, %p664
      %p666 = scmp.ne.s32.totalorder %s657, %s658
      %p667 = scmp.eq.s32.totalorder %s101, 0
      %p668 = por %p666, %p667
      %p669 = scmp.ne.s32.totalorder %s657, %s658
      %p670 = scmp.eq.s32.totalorder %s102, 1
      %p671 = por %p669, %p670
      %p673 = scmp.ne.s32.totalorder %s658, %s672
      %p674 = scmp.eq.s32.totalorder %s102, 0
      %p675 = por %p673, %p674
      %s677 = sadd.s32 %s676, 1
      %p680 = scmp.eq.s32.totalorder %s96, 1
      %p681 = scmp.ne.s32.totalorder %s676, %s678
      %p682 = scmp.eq.s32.totalorder %s96, 0
      %p683 = por %p681, %p682
      %p684 = scmp.ne.s32.totalorder %s676, %s678
      %p685 = scmp.eq.s32.totalorder %s101, 1
      %p686 = por %p684, %p685
      %p687 = scmp.ne.s32.totalorder %s678, %s679
      %p688 = scmp.eq.s32.totalorder %s101, 0
      %p689 = por %p687, %p688
      %p690 = scmp.ne.s32.totalorder %s678, %s679
      %p691 = scmp.eq.s32.totalorder %s102, 1
      %p692 = por %p690, %p691
      %p694 = scmp.ne.s32.totalorder %s679, %s693
      %p695 = scmp.eq.s32.totalorder %s102, 0
      %p696 = por %p694, %p695
      %s698 = sadd.s32 %s697, 1
      %p701 = scmp.eq.s32.totalorder %s96, 1
      %p702 = scmp.ne.s32.totalorder %s697, %s699
      %p703 = scmp.eq.s32.totalorder %s96, 0
      %p704 = por %p702, %p703
      %p705 = scmp.ne.s32.totalorder %s697, %s699
      %p706 = scmp.eq.s32.totalorder %s101, 1
      %p707 = por %p705, %p706
      %p708 = scmp.ne.s32.totalorder %s699, %s700
      %p709 = scmp.eq.s32.totalorder %s101, 0
      %p710 = por %p708, %p709
      %p711 = scmp.ne.s32.totalorder %s699, %s700
      %p712 = scmp.eq.s32.totalorder %s102, 1
      %p713 = por %p711, %p712
      %p715 = scmp.ne.s32.totalorder %s700, %s714
      %p716 = scmp.eq.s32.totalorder %s102, 0
      %p717 = por %p715, %p716
      %s719 = sadd.s32 %s718, 1
      %p722 = scmp.eq.s32.totalorder %s96, 1
      %p723 = scmp.ne.s32.totalorder %s718, %s720
      %p724 = scmp.eq.s32.totalorder %s96, 0
      %p725 = por %p723, %p724
      %p726 = scmp.ne.s32.totalorder %s718, %s720
      %p727 = scmp.eq.s32.totalorder %s101, 1
      %p728 = por %p726, %p727
      %p729 = scmp.ne.s32.totalorder %s720, %s721
      %p730 = scmp.eq.s32.totalorder %s101, 0
      %p731 = por %p729, %p730
      %p732 = scmp.ne.s32.totalorder %s720, %s721
      %p733 = scmp.eq.s32.totalorder %s102, 1
      %p734 = por %p732, %p733
      %p736 = scmp.ne.s32.totalorder %s721, %s735
      %p737 = scmp.eq.s32.totalorder %s102, 0
      %p738 = por %p736, %p737
      %s740 = sadd.s32 %s739, 1
      %p743 = scmp.eq.s32.totalorder %s96, 1
      %p744 = scmp.ne.s32.totalorder %s739, %s741
      %p745 = scmp.eq.s32.totalorder %s96, 0
      %p746 = por %p744, %p745
      %p747 = scmp.ne.s32.totalorder %s739, %s741
      %p748 = scmp.eq.s32.totalorder %s101, 1
      %p749 = por %p747, %p748
      %p750 = scmp.ne.s32.totalorder %s741, %s742
      %p751 = scmp.eq.s32.totalorder %s101, 0
      %p752 = por %p750, %p751
      %p753 = scmp.ne.s32.totalorder %s741, %s742
      %p754 = scmp.eq.s32.totalorder %s102, 1
      %p755 = por %p753, %p754
      %p757 = scmp.ne.s32.totalorder %s742, %s756
      %p758 = scmp.eq.s32.totalorder %s102, 0
      %p759 = por %p757, %p758
      %s761 = sadd.s32 %s760, 1
      %p764 = scmp.eq.s32.totalorder %s96, 1
      %p765 = scmp.ne.s32.totalorder %s760, %s762
      %p766 = scmp.eq.s32.totalorder %s96, 0
      %p767 = por %p765, %p766
      %p768 = scmp.ne.s32.totalorder %s760, %s762
      %p769 = scmp.eq.s32.totalorder %s101, 1
      %p770 = por %p768, %p769
      %p771 = scmp.ne.s32.totalorder %s762, %s763
      %p772 = scmp.eq.s32.totalorder %s101, 0
      %p773 = por %p771, %p772
      %p774 = scmp.ne.s32.totalorder %s762, %s763
      %p775 = scmp.eq.s32.totalorder %s102, 1
      %p776 = por %p774, %p775
      %p778 = scmp.ne.s32.totalorder %s763, %s777
      %p779 = scmp.eq.s32.totalorder %s102, 0
      %p780 = por %p778, %p779
      %s782 = sadd.s32 %s781, 1
      %p785 = scmp.eq.s32.totalorder %s96, 1
      %p786 = scmp.ne.s32.totalorder %s781, %s783
      %p787 = scmp.eq.s32.totalorder %s96, 0
      %p788 = por %p786, %p787
      %p789 = scmp.ne.s32.totalorder %s781, %s783
      %p790 = scmp.eq.s32.totalorder %s101, 1
      %p791 = por %p789, %p790
      %p792 = scmp.ne.s32.totalorder %s783, %s784
      %p793 = scmp.eq.s32.totalorder %s101, 0
      %p794 = por %p792, %p793
      %p795 = scmp.ne.s32.totalorder %s783, %s784
      %p796 = scmp.eq.s32.totalorder %s102, 1
      %p797 = por %p795, %p796
      %p799 = scmp.ne.s32.totalorder %s784, %s798
      %p800 = scmp.eq.s32.totalorder %s102, 0
      %p801 = por %p799, %p800
      %s803 = sadd.s32 %s802, 1
      %p806 = scmp.eq.s32.totalorder %s96, 1
      %p807 = scmp.ne.s32.totalorder %s802, %s804
      %p808 = scmp.eq.s32.totalorder %s96, 0
      %p809 = por %p807, %p808
      %p810 = scmp.ne.s32.totalorder %s802, %s804
      %p811 = scmp.eq.s32.totalorder %s101, 1
      %p812 = por %p810, %p811
      %p813 = scmp.ne.s32.totalorder %s804, %s805
      %p814 = scmp.eq.s32.totalorder %s101, 0
      %p815 = por %p813, %p814
      %p816 = scmp.ne.s32.totalorder %s804, %s805
      %p817 = scmp.eq.s32.totalorder %s102, 1
      %p818 = por %p816, %p817
      %p820 = scmp.ne.s32.totalorder %s805, %s819
      %p821 = scmp.eq.s32.totalorder %s102, 0
      %p822 = por %p820, %p821
      %s824 = sadd.s32 %s823, 1
      %p827 = scmp.eq.s32.totalorder %s96, 1
      %p828 = scmp.ne.s32.totalorder %s823, %s825
      %p829 = scmp.eq.s32.totalorder %s96, 0
      %p830 = por %p828, %p829
      %p831 = scmp.ne.s32.totalorder %s823, %s825
      %p832 = scmp.eq.s32.totalorder %s101, 1
      %p833 = por %p831, %p832
      %p834 = scmp.ne.s32.totalorder %s825, %s826
      %p835 = scmp.eq.s32.totalorder %s101, 0
      %p836 = por %p834, %p835
      %p837 = scmp.ne.s32.totalorder %s825, %s826
      %p838 = scmp.eq.s32.totalorder %s102, 1
      %p839 = por %p837, %p838
      %p841 = scmp.ne.s32.totalorder %s826, %s840
      %p842 = scmp.eq.s32.totalorder %s102, 0
      %p843 = por %p841, %p842
      %s845 = sadd.s32 %s844, 1
      %p848 = scmp.eq.s32.totalorder %s96, 1
      %p849 = scmp.ne.s32.totalorder %s844, %s846
      %p850 = scmp.eq.s32.totalorder %s96, 0
      %p851 = por %p849, %p850
      %p852 = scmp.ne.s32.totalorder %s844, %s846
      %p853 = scmp.eq.s32.totalorder %s101, 1
      %p854 = por %p852, %p853
      %p855 = scmp.ne.s32.totalorder %s846, %s847
      %p856 = scmp.eq.s32.totalorder %s101, 0
      %p857 = por %p855, %p856
      %p858 = scmp.ne.s32.totalorder %s846, %s847
      %p859 = scmp.eq.s32.totalorder %s102, 1
      %p860 = por %p858, %p859
      %p862 = scmp.ne.s32.totalorder %s847, %s861
      %p863 = scmp.eq.s32.totalorder %s102, 0
      %p864 = por %p862, %p863
      %s866 = sadd.s32 %s865, 1
      %p869 = scmp.eq.s32.totalorder %s96, 1
      %p870 = scmp.ne.s32.totalorder %s865, %s867
      %p871 = scmp.eq.s32.totalorder %s96, 0
      %p872 = por %p870, %p871
      %p873 = scmp.ne.s32.totalorder %s865, %s867
      %p874 = scmp.eq.s32.totalorder %s101, 1
      %p875 = por %p873, %p874
      %p876 = scmp.ne.s32.totalorder %s867, %s868
      %p877 = scmp.eq.s32.totalorder %s101, 0
      %p878 = por %p876, %p877
      %p879 = scmp.ne.s32.totalorder %s867, %s868
      %p880 = scmp.eq.s32.totalorder %s102, 1
      %p881 = por %p879, %p880
      %p883 = scmp.ne.s32.totalorder %s868, %s882
      %p884 = scmp.eq.s32.totalorder %s102, 0
      %p885 = por %p883, %p884
      %s887 = sadd.s32 %s886, 1
      %p890 = scmp.eq.s32.totalorder %s96, 1
      %p891 = scmp.ne.s32.totalorder %s886, %s888
      %p892 = scmp.eq.s32.totalorder %s96, 0
      %p893 = por %p891, %p892
      %p894 = scmp.ne.s32.totalorder %s886, %s888
      %p895 = scmp.eq.s32.totalorder %s101, 1
      %p896 = por %p894, %p895
      %p897 = scmp.ne.s32.totalorder %s888, %s889
      %p898 = scmp.eq.s32.totalorder %s101, 0
      %p899 = por %p897, %p898
      %p900 = scmp.ne.s32.totalorder %s888, %s889
      %p901 = scmp.eq.s32.totalorder %s102, 1
      %p902 = por %p900, %p901
      %p904 = scmp.ne.s32.totalorder %s889, %s903
      %p905 = scmp.eq.s32.totalorder %s102, 0
      %p906 = por %p904, %p905
      %s908 = sadd.s32 %s907, 1
      %p911 = scmp.eq.s32.totalorder %s96, 1
      %p912 = scmp.ne.s32.totalorder %s907, %s909
      %p913 = scmp.eq.s32.totalorder %s96, 0
      %p914 = por %p912, %p913
      %p915 = scmp.ne.s32.totalorder %s907, %s909
      %p916 = scmp.eq.s32.totalorder %s101, 1
      %p917 = por %p915, %p916
      %p918 = scmp.ne.s32.totalorder %s909, %s910
      %p919 = scmp.eq.s32.totalorder %s101, 0
      %p920 = por %p918, %p919
      %p921 = scmp.ne.s32.totalorder %s909, %s910
      %p922 = scmp.eq.s32.totalorder %s102, 1
      %p923 = por %p921, %p922
      %p925 = scmp.ne.s32.totalorder %s910, %s924
      %p926 = scmp.eq.s32.totalorder %s102, 0
      %p927 = por %p925, %p926
      %s928 = ssub.s32 %s96, %s103
      %p929 = scmp.eq.s32.totalorder %s928, 0
      %s931 = sadd.s32 %s930, 1
      %s932 = scalar_select %p929, %s930, %s931
      %p935 = pneg %p929
      %p936 = scmp.eq.s32.totalorder %s96, 1
      %p937 = por %p935, %p936
      %p938 = scmp.ne.s32.totalorder %s930, %s933
      %p939 = scmp.eq.s32.totalorder %s96, 0
      %p940 = por %p938, %p939
      %p941 = scmp.ne.s32.totalorder %s930, %s933
      %p942 = scmp.eq.s32.totalorder %s101, 1
      %p943 = por %p941, %p942
      %p944 = scmp.ne.s32.totalorder %s933, %s934
      %p945 = scmp.eq.s32.totalorder %s101, 0
      %p946 = por %p944, %p945
      %p947 = scmp.ne.s32.totalorder %s933, %s934
      %p948 = scmp.eq.s32.totalorder %s102, 1
      %p949 = por %p947, %p948
      %p951 = scmp.ne.s32.totalorder %s934, %s950
      %p952 = scmp.eq.s32.totalorder %s102, 0
      %p953 = por %p951, %p952
      %s954 = ssub.s32 %s96, %s103
      %p955 = scmp.eq.s32.totalorder %s954, 0
      %s957 = sadd.s32 %s956, 1
      %s958 = scalar_select %p955, %s956, %s957
      %p961 = pneg %p955
      %p962 = scmp.eq.s32.totalorder %s96, 1
      %p963 = por %p961, %p962
      %p964 = scmp.ne.s32.totalorder %s956, %s959
      %p965 = scmp.eq.s32.totalorder %s96, 0
      %p966 = por %p964, %p965
      %p967 = scmp.ne.s32.totalorder %s956, %s959
      %p968 = scmp.eq.s32.totalorder %s101, 1
      %p969 = por %p967, %p968
      %p970 = scmp.ne.s32.totalorder %s959, %s960
      %p971 = scmp.eq.s32.totalorder %s101, 0
      %p972 = por %p970, %p971
      %p973 = scmp.ne.s32.totalorder %s959, %s960
      %p974 = scmp.eq.s32.totalorder %s102, 1
      %p975 = por %p973, %p974
      %p977 = scmp.ne.s32.totalorder %s960, %s976
      %p978 = scmp.eq.s32.totalorder %s102, 0
      %p979 = por %p977, %p978
      %s980 = ssub.s32 %s96, %s103
      %p981 = scmp.eq.s32.totalorder %s980, 0
      %s983 = sadd.s32 %s982, 1
      %s984 = scalar_select %p981, %s982, %s983
      %p987 = pneg %p981
      %p988 = scmp.eq.s32.totalorder %s96, 1
      %p989 = por %p987, %p988
      %p990 = scmp.ne.s32.totalorder %s982, %s985
      %p991 = scmp.eq.s32.totalorder %s96, 0
      %p992 = por %p990, %p991
      %p993 = scmp.ne.s32.totalorder %s982, %s985
      %p994 = scmp.eq.s32.totalorder %s101, 1
      %p995 = por %p993, %p994
      %p996 = scmp.ne.s32.totalorder %s985, %s986
      %p997 = scmp.eq.s32.totalorder %s101, 0
      %p998 = por %p996, %p997
      %p999 = scmp.ne.s32.totalorder %s985, %s986
      %p1000 = scmp.eq.s32.totalorder %s102, 1
      %p1001 = por %p999, %p1000
      %p1003 = scmp.ne.s32.totalorder %s986, %s1002
      %p1004 = scmp.eq.s32.totalorder %s102, 0
      %p1005 = por %p1003, %p1004
      %p1006 = scmp.le.s32.totalorder 1, %s96
      %p1007 = scmp.lt.s32.totalorder %s96, 3
      %p1008 = pnand %p1006, %p1007
      %p1009 = pneg %p1008
      // Predicated region
      $region9: #{vit_forward.1} parent=5 // pred_check
        _
      $region10: #{vit_forward.1} parent=5 // pred_check_branch
        %1011 = sbr.rel (%p1008) target = $region12
      $region11: #{vit_forward.1} parent=5 // pred_region
        %s1012 = ssub.s32 %s96, 1
        // Predicated region
        $region13: #{vit_forward.1} parent=11 // pred_check
          %p1013 = pneg %p143
        $region14: #{vit_forward.1} parent=11 // pred_check_branch
          %1015 = sbr.rel (%p1013) target = $region16
        $region15: #{vit_forward.1} parent=11 // pred_region
          _
        $region16: #{vit_forward.1} parent=11 // pred_fallthru
          _
        // Predicated region
        $region17: #{vit_forward.1} parent=11 // pred_check
          %p1016 = pneg %p164
        $region18: #{vit_forward.1} parent=11 // pred_check_branch
          %1018 = sbr.rel (%p1016) target = $region20
        $region19: #{vit_forward.1} parent=11 // pred_region
          _
        $region20: #{vit_forward.1} parent=11 // pred_fallthru
          _
        // Predicated region
        $region21: #{vit_forward.1} parent=11 // pred_check
          %p1019 = pneg %p185
        $region22: #{vit_forward.1} parent=11 // pred_check_branch
          %1021 = sbr.rel (%p1019) target = $region24
        $region23: #{vit_forward.1} parent=11 // pred_region
          _
        $region24: #{vit_forward.1} parent=11 // pred_fallthru
          _
        // Predicated region
        $region25: #{vit_forward.1} parent=11 // pred_check
          %p1022 = pneg %p206
        $region26: #{vit_forward.1} parent=11 // pred_check_branch
          %1024 = sbr.rel (%p1022) target = $region28
        $region27: #{vit_forward.1} parent=11 // pred_region
          _
        $region28: #{vit_forward.1} parent=11 // pred_fallthru
          _
        // Predicated region
        $region29: #{vit_forward.1} parent=11 // pred_check
          %p1025 = pneg %p227
        $region30: #{vit_forward.1} parent=11 // pred_check_branch
          %1027 = sbr.rel (%p1025) target = $region32
        $region31: #{vit_forward.1} parent=11 // pred_region
          _
        $region32: #{vit_forward.1} parent=11 // pred_fallthru
          _
        // Predicated region
        $region33: #{vit_forward.1} parent=11 // pred_check
          %p1028 = pneg %p248
        $region34: #{vit_forward.1} parent=11 // pred_check_branch
          %1030 = sbr.rel (%p1028) target = $region36
        $region35: #{vit_forward.1} parent=11 // pred_region
          _
        $region36: #{vit_forward.1} parent=11 // pred_fallthru
          _
        // Predicated region
        $region37: #{vit_forward.1} parent=11 // pred_check
          %p1031 = pneg %p269
        $region38: #{vit_forward.1} parent=11 // pred_check_branch
          %1033 = sbr.rel (%p1031) target = $region40
        $region39: #{vit_forward.1} parent=11 // pred_region
          _
        $region40: #{vit_forward.1} parent=11 // pred_fallthru
          _
        // Predicated region
        $region41: #{vit_forward.1} parent=11 // pred_check
          %p1034 = pneg %p290
        $region42: #{vit_forward.1} parent=11 // pred_check_branch
          %1036 = sbr.rel (%p1034) target = $region44
        $region43: #{vit_forward.1} parent=11 // pred_region
          _
        $region44: #{vit_forward.1} parent=11 // pred_fallthru
          _
        // Predicated region
        $region45: #{vit_forward.1} parent=11 // pred_check
          %p1037 = pneg %p311
        $region46: #{vit_forward.1} parent=11 // pred_check_branch
          %1039 = sbr.rel (%p1037) target = $region48
        $region47: #{vit_forward.1} parent=11 // pred_region
          _
        $region48: #{vit_forward.1} parent=11 // pred_fallthru
          _
        // Predicated region
        $region49: #{vit_forward.1} parent=11 // pred_check
          %p1040 = pneg %p332
        $region50: #{vit_forward.1} parent=11 // pred_check_branch
          %1042 = sbr.rel (%p1040) target = $region52
        $region51: #{vit_forward.1} parent=11 // pred_region
          _
        $region52: #{vit_forward.1} parent=11 // pred_fallthru
          _
        // Predicated region
        $region53: #{vit_forward.1} parent=11 // pred_check
          %p1043 = pneg %p353
        $region54: #{vit_forward.1} parent=11 // pred_check_branch
          %1045 = sbr.rel (%p1043) target = $region56
        $region55: #{vit_forward.1} parent=11 // pred_region
          _
        $region56: #{vit_forward.1} parent=11 // pred_fallthru
          _
        // Predicated region
        $region57: #{vit_forward.1} parent=11 // pred_check
          %p1046 = pneg %p374
        $region58: #{vit_forward.1} parent=11 // pred_check_branch
          %1048 = sbr.rel (%p1046) target = $region60
        $region59: #{vit_forward.1} parent=11 // pred_region
          _
        $region60: #{vit_forward.1} parent=11 // pred_fallthru
          _
        // Predicated region
        $region61: #{vit_forward.1} parent=11 // pred_check
          %p1049 = pneg %p395
        $region62: #{vit_forward.1} parent=11 // pred_check_branch
          %1051 = sbr.rel (%p1049) target = $region64
        $region63: #{vit_forward.1} parent=11 // pred_region
          _
        $region64: #{vit_forward.1} parent=11 // pred_fallthru
          _
        // Predicated region
        $region65: #{vit_forward.1} parent=11 // pred_check
          %p1052 = pneg %p416
        $region66: #{vit_forward.1} parent=11 // pred_check_branch
          %1054 = sbr.rel (%p1052) target = $region68
        $region67: #{vit_forward.1} parent=11 // pred_region
          _
        $region68: #{vit_forward.1} parent=11 // pred_fallthru
          _
        // Predicated region
        $region69: #{vit_forward.1} parent=11 // pred_check
          %p1055 = pneg %p437
        $region70: #{vit_forward.1} parent=11 // pred_check_branch
          %1057 = sbr.rel (%p1055) target = $region72
        $region71: #{vit_forward.1} parent=11 // pred_region
          _
        $region72: #{vit_forward.1} parent=11 // pred_fallthru
          _
        // Predicated region
        $region73: #{vit_forward.1} parent=11 // pred_check
          %p1058 = pneg %p458
        $region74: #{vit_forward.1} parent=11 // pred_check_branch
          %1060 = sbr.rel (%p1058) target = $region76
        $region75: #{vit_forward.1} parent=11 // pred_region
          _
        $region76: #{vit_forward.1} parent=11 // pred_fallthru
          _
        // Predicated region
        $region77: #{vit_forward.1} parent=11 // pred_check
          %p1061 = pneg %p479
        $region78: #{vit_forward.1} parent=11 // pred_check_branch
          %1063 = sbr.rel (%p1061) target = $region80
        $region79: #{vit_forward.1} parent=11 // pred_region
          _
        $region80: #{vit_forward.1} parent=11 // pred_fallthru
          _
        // Predicated region
        $region81: #{vit_forward.1} parent=11 // pred_check
          %p1064 = pneg %p500
        $region82: #{vit_forward.1} parent=11 // pred_check_branch
          %1066 = sbr.rel (%p1064) target = $region84
        $region83: #{vit_forward.1} parent=11 // pred_region
          _
        $region84: #{vit_forward.1} parent=11 // pred_fallthru
          _
        // Predicated region
        $region85: #{vit_forward.1} parent=11 // pred_check
          %p1067 = pneg %p521
        $region86: #{vit_forward.1} parent=11 // pred_check_branch
          %1069 = sbr.rel (%p1067) target = $region88
        $region87: #{vit_forward.1} parent=11 // pred_region
          _
        $region88: #{vit_forward.1} parent=11 // pred_fallthru
          _
        // Predicated region
        $region89: #{vit_forward.1} parent=11 // pred_check
          %p1070 = pneg %p542
        $region90: #{vit_forward.1} parent=11 // pred_check_branch
          %1072 = sbr.rel (%p1070) target = $region92
        $region91: #{vit_forward.1} parent=11 // pred_region
          _
        $region92: #{vit_forward.1} parent=11 // pred_fallthru
          _
        // Predicated region
        $region93: #{vit_forward.1} parent=11 // pred_check
          %p1073 = pneg %p563
        $region94: #{vit_forward.1} parent=11 // pred_check_branch
          %1075 = sbr.rel (%p1073) target = $region96
        $region95: #{vit_forward.1} parent=11 // pred_region
          _
        $region96: #{vit_forward.1} parent=11 // pred_fallthru
          _
        // Predicated region
        $region97: #{vit_forward.1} parent=11 // pred_check
          %p1076 = pneg %p584
        $region98: #{vit_forward.1} parent=11 // pred_check_branch
          %1078 = sbr.rel (%p1076) target = $region100
        $region99: #{vit_forward.1} parent=11 // pred_region
          _
        $region100: #{vit_forward.1} parent=11 // pred_fallthru
          _
        // Predicated region
        $region101: #{vit_forward.1} parent=11 // pred_check
          %p1079 = pneg %p605
        $region102: #{vit_forward.1} parent=11 // pred_check_branch
          %1081 = sbr.rel (%p1079) target = $region104
        $region103: #{vit_forward.1} parent=11 // pred_region
          _
        $region104: #{vit_forward.1} parent=11 // pred_fallthru
          _
        // Predicated region
        $region105: #{vit_forward.1} parent=11 // pred_check
          %p1082 = pneg %p626
        $region106: #{vit_forward.1} parent=11 // pred_check_branch
          %1084 = sbr.rel (%p1082) target = $region108
        $region107: #{vit_forward.1} parent=11 // pred_region
          _
        $region108: #{vit_forward.1} parent=11 // pred_fallthru
          _
        // Predicated region
        $region109: #{vit_forward.1} parent=11 // pred_check
          %p1085 = pneg %p647
        $region110: #{vit_forward.1} parent=11 // pred_check_branch
          %1087 = sbr.rel (%p1085) target = $region112
        $region111: #{vit_forward.1} parent=11 // pred_region
          _
        $region112: #{vit_forward.1} parent=11 // pred_fallthru
          _
        // Predicated region
        $region113: #{vit_forward.1} parent=11 // pred_check
          %p1088 = pneg %p668
        $region114: #{vit_forward.1} parent=11 // pred_check_branch
          %1090 = sbr.rel (%p1088) target = $region116
        $region115: #{vit_forward.1} parent=11 // pred_region
          _
        $region116: #{vit_forward.1} parent=11 // pred_fallthru
          _
        // Predicated region
        $region117: #{vit_forward.1} parent=11 // pred_check
          %p1091 = pneg %p689
        $region118: #{vit_forward.1} parent=11 // pred_check_branch
          %1093 = sbr.rel (%p1091) target = $region120
        $region119: #{vit_forward.1} parent=11 // pred_region
          _
        $region120: #{vit_forward.1} parent=11 // pred_fallthru
          _
        // Predicated region
        $region121: #{vit_forward.1} parent=11 // pred_check
          %p1094 = pneg %p710
        $region122: #{vit_forward.1} parent=11 // pred_check_branch
          %1096 = sbr.rel (%p1094) target = $region124
        $region123: #{vit_forward.1} parent=11 // pred_region
          _
        $region124: #{vit_forward.1} parent=11 // pred_fallthru
          _
        // Predicated region
        $region125: #{vit_forward.1} parent=11 // pred_check
          %p1097 = pneg %p731
        $region126: #{vit_forward.1} parent=11 // pred_check_branch
          %1099 = sbr.rel (%p1097) target = $region128
        $region127: #{vit_forward.1} parent=11 // pred_region
          _
        $region128: #{vit_forward.1} parent=11 // pred_fallthru
          _
        // Predicated region
        $region129: #{vit_forward.1} parent=11 // pred_check
          %p1100 = pneg %p752
        $region130: #{vit_forward.1} parent=11 // pred_check_branch
          %1102 = sbr.rel (%p1100) target = $region132
        $region131: #{vit_forward.1} parent=11 // pred_region
          _
        $region132: #{vit_forward.1} parent=11 // pred_fallthru
          _
        // Predicated region
        $region133: #{vit_forward.1} parent=11 // pred_check
          %p1103 = pneg %p773
        $region134: #{vit_forward.1} parent=11 // pred_check_branch
          %1105 = sbr.rel (%p1103) target = $region136
        $region135: #{vit_forward.1} parent=11 // pred_region
          _
        $region136: #{vit_forward.1} parent=11 // pred_fallthru
          _
        // Predicated region
        $region137: #{vit_forward.1} parent=11 // pred_check
          %p1106 = pneg %p794
        $region138: #{vit_forward.1} parent=11 // pred_check_branch
          %1108 = sbr.rel (%p1106) target = $region140
        $region139: #{vit_forward.1} parent=11 // pred_region
          _
        $region140: #{vit_forward.1} parent=11 // pred_fallthru
          _
        // Predicated region
        $region141: #{vit_forward.1} parent=11 // pred_check
          %p1109 = pneg %p815
        $region142: #{vit_forward.1} parent=11 // pred_check_branch
          %1111 = sbr.rel (%p1109) target = $region144
        $region143: #{vit_forward.1} parent=11 // pred_region
          _
        $region144: #{vit_forward.1} parent=11 // pred_fallthru
          _
        // Predicated region
        $region145: #{vit_forward.1} parent=11 // pred_check
          %p1112 = pneg %p836
        $region146: #{vit_forward.1} parent=11 // pred_check_branch
          %1114 = sbr.rel (%p1112) target = $region148
        $region147: #{vit_forward.1} parent=11 // pred_region
          _
        $region148: #{vit_forward.1} parent=11 // pred_fallthru
          _
        // Predicated region
        $region149: #{vit_forward.1} parent=11 // pred_check
          %p1115 = pneg %p857
        $region150: #{vit_forward.1} parent=11 // pred_check_branch
          %1117 = sbr.rel (%p1115) target = $region152
        $region151: #{vit_forward.1} parent=11 // pred_region
          _
        $region152: #{vit_forward.1} parent=11 // pred_fallthru
          _
        // Predicated region
        $region153: #{vit_forward.1} parent=11 // pred_check
          %p1118 = pneg %p878
        $region154: #{vit_forward.1} parent=11 // pred_check_branch
          %1120 = sbr.rel (%p1118) target = $region156
        $region155: #{vit_forward.1} parent=11 // pred_region
          _
        $region156: #{vit_forward.1} parent=11 // pred_fallthru
          _
        // Predicated region
        $region157: #{vit_forward.1} parent=11 // pred_check
          %p1121 = pneg %p899
        $region158: #{vit_forward.1} parent=11 // pred_check_branch
          %1123 = sbr.rel (%p1121) target = $region160
        $region159: #{vit_forward.1} parent=11 // pred_region
          _
        $region160: #{vit_forward.1} parent=11 // pred_fallthru
          _
        // Predicated region
        $region161: #{vit_forward.1} parent=11 // pred_check
          %p1124 = pneg %p920
        $region162: #{vit_forward.1} parent=11 // pred_check_branch
          %1126 = sbr.rel (%p1124) target = $region164
        $region163: #{vit_forward.1} parent=11 // pred_region
          _
        $region164: #{vit_forward.1} parent=11 // pred_fallthru
          _
      $region12: #{vit_forward.1} parent=5 // pred_fallthru
        _
      %p1127 = scmp.lt.s32.totalorder %s96, 2
      // Predicated region
      $region165: #{vit_forward.1} parent=5 // pred_check
        %p1128 = pneg %p1127
      $region166: #{vit_forward.1} parent=5 // pred_check_branch
        %1130 = sbr.rel (%p1128) target = $region168
      $region167: #{vit_forward.1} parent=5 // pred_region
        // Predicated region
        $region169: #{vit_forward.1} parent=167 // pred_check
          %p1131 = pneg %p116
        $region170: #{vit_forward.1} parent=167 // pred_check_branch
          %1133 = sbr.rel (%p1131) target = $region172
        $region171: #{vit_forward.1} parent=167 // pred_region
          %s1134 = smul.u32 3, %s96
          %p1135 = scmp.lt.s32.totalorder %s1134, 5
          %s1136 = scalar_select %p1135, %s1134, 5
          %s1137 = smul.addr %s1136, 8
          %s1138 = scalar_lea.vmem %s1, %s1137
          %s1139 = smul.u32 3, %s96
        $region172: #{vit_forward.1} parent=167 // pred_fallthru
          _
      $region168: #{vit_forward.1} parent=5 // pred_fallthru
        _
      %p1140 = scmp.le.s32.totalorder 1, %s96
      %p1141 = scmp.lt.s32.totalorder %s96, 3
      %p1142 = pnand %p1140, %p1141
      %p1143 = pneg %p1142
      // Predicated region
      $region173: #{vit_forward.1} parent=5 // pred_check
        _
      $region174: #{vit_forward.1} parent=5 // pred_check_branch
        %1145 = sbr.rel (%p1142) target = $region176
      $region175: #{vit_forward.1} parent=5 // pred_region
        %s1146 = ssub.s32 %s96, 1
        %s1147 = smul.u32 3, %s101
        %p1148 = scmp.lt.s32.totalorder %s1147, 5
        %s1149 = scalar_select %p1148, %s1147, 5
        %s1150 = smul.addr %s1149, 8
        %s1151 = scalar_lea.vmem %s1, %s1150
        %p1152 = pneg %p122
        %p1153 = pneg %p119
        %p1154 = pneg %p143
        %p1155 = pneg %p140
        %p1156 = pneg %p164
        %p1157 = pneg %p161
        %p1158 = pneg %p185
        %p1159 = pneg %p182
        %p1160 = pneg %p206
        %p1161 = pneg %p203
        %p1162 = pneg %p227
        %p1163 = pneg %p224
        %p1164 = pneg %p248
        %p1165 = pneg %p245
        %p1166 = pneg %p269
        %p1167 = pneg %p266
        %p1168 = pneg %p290
        %p1169 = pneg %p287
        %p1170 = pneg %p311
        %p1171 = pneg %p308
        %p1172 = pneg %p332
        %p1173 = pneg %p329
        %p1174 = pneg %p353
        %p1175 = pneg %p350
        %p1176 = pneg %p374
        %p1177 = pneg %p371
        %p1178 = pneg %p395
        %p1179 = pneg %p392
        %p1180 = pneg %p416
        %p1181 = pneg %p413
        %p1182 = pneg %p437
        %p1183 = pneg %p434
        %p1184 = pneg %p458
        %p1185 = pneg %p455
        %p1186 = pneg %p479
        %p1187 = pneg %p476
        %p1188 = pneg %p500
        %p1189 = pneg %p497
        %p1190 = pneg %p521
        %p1191 = pneg %p518
        %p1192 = pneg %p542
        %p1193 = pneg %p539
        %p1194 = pneg %p563
        %p1195 = pneg %p560
        %p1196 = pneg %p584
        %p1197 = pneg %p581
        %p1198 = pneg %p605
        %p1199 = pneg %p602
        %p1200 = pneg %p626
        %p1201 = pneg %p623
        %p1202 = pneg %p647
        %p1203 = pneg %p644
        %p1204 = pneg %p668
        %p1205 = pneg %p665
        %p1206 = pneg %p689
        %p1207 = pneg %p686
        %p1208 = pneg %p710
        %p1209 = pneg %p707
        %p1210 = pneg %p731
        %p1211 = pneg %p728
        %p1212 = pneg %p752
        %p1213 = pneg %p749
        %p1214 = pneg %p773
        %p1215 = pneg %p770
        %p1216 = pneg %p794
        %p1217 = pneg %p791
        %p1218 = pneg %p815
        %p1219 = pneg %p812
        %p1220 = pneg %p836
        %p1221 = pneg %p833
        %p1222 = pneg %p857
        %p1223 = pneg %p854
        %p1224 = pneg %p878
        %p1225 = pneg %p875
        %p1226 = pneg %p899
        %p1227 = pneg %p896
        %p1228 = pneg %p920
        %p1229 = pneg %p917
        %p1230 = pneg %p946
        %p1231 = pneg %p943
        %s1232 = sand.u32 %s933, 1
        %s1233 = scalar_lea.sflag [#allocation3], %s1232
        %s1234 = sand.u32 %s933, 1
        %s1235 = scalar_lea.vmem [#allocation2], %s1234
        %p1236 = pneg %p972
        %p1237 = pneg %p969
        %s1238 = sand.u32 %s101, 1
        %s1239 = scalar_lea.sflag [#allocation5], %s1238
        %s1240 = sand.u32 %s959, 1
        %s1241 = scalar_lea.vmem [#allocation4], %s1240
        %p1242 = pneg %p998
        %p1243 = pneg %p995
        %s1244 = sand.u32 %s101, 1
        %s1245 = scalar_lea.sflag [#allocation5], %s1244
        %s1246 = sand.u32 %s985, 1
        %s1247 = scalar_lea.vmem [#allocation6], %s1246
        %s1248 = smul.u32 3, %s101
        %p1249 = scmp.lt.s32.totalorder %s1248, 5
        %s1250 = scalar_select %p1249, %s1248, 5
        %s1251 = smul.addr %s1250, 8
        %s1252 = scalar_lea.vmem %s1, %s1251
        %s1253 = smul.u32 3, %s101
        %v1255 = vld [vmem:[%s1252] sm:$0xff]
        %v1256 = vld [vmem:[%s1252 + $0x8] sm:$0xff]
        %v1257 = vld [vmem:[%s1252 + $0x10] sm:$0xff]
        %v1258 = vpack.c.bf16 %v1256, %v1255
        %v1259 = vpack.c.bf16 %v1257, %v1257
        %v1260 = vld [vmem:[%s3] sm:$0xf]
        %v1261 = vld [vmem:[%s3 + $0x4] sm:$0xf]
        %v1262 = vld [vmem:[%s3 + $0x8] sm:$0xf]
        %v1263 = vld [vmem:[%s3 + $0xc] sm:$0xf]
        %v1264 = vld [vmem:[%s3 + $0x10] sm:$0xf]
        %v1265 = vld [vmem:[%s3 + $0x14] sm:$0xf]
        %v1266 = vld [vmem:[%s3 + $0x18] sm:$0xf]
        %v1267 = vld [vmem:[%s3 + $0x1c] sm:$0xf]
        %v1268 = vld [vmem:[%s5] sm:$0xff]
        %v1269 = vld [vmem:[%s5 + $0x8] sm:$0xff]
        %v1270 = vld [vmem:[%s5 + $0x10] sm:$0xff]
        %v1279 = vunpack.c.l.b16 %v1260
        %v1280 = vunpack.c.l.b16 %v1261
        %v1281 = vunpack.c.l.b16 %v1262
        %v1282 = vunpack.c.l.b16 %v1263
        %v1283 = vunpack.c.l.b16 %v1264
        %v1284 = vunpack.c.l.b16 %v1265
        %v1285 = vunpack.c.l.b16 %v1266
        %v1286 = vunpack.c.l.b16 %v1267
        %v1287 = vpack.c.b16 %v1280, %v1279
        %v1288 = vpack.c.b16 %v1282, %v1281
        %v1289 = vpack.c.b16 %v1284, %v1283
        %v1290 = vpack.c.b16 %v1286, %v1285
        %vm1295 = vcmask 523264
        %v1297 = vsel %vm1295, %v1258, 0
        %v1300 = vsel %vm1295, %v1259, 0
        %1302 = vmatprep.subr.bf16.mxu0 0
        %1303 = vmatpush1.bf16.msra.mxu0 %v1287
        %1304 = vmatprep.subr.bf16.mxu0 0
        %1305 = vmatpush1.bf16.msra.mxu0 %v1288
        %1306 = vmatprep.subr.bf16.mxu0 0
        %1307 = vmatpush1.bf16.msra.mxu0 %v1289
        %1308 = vmatprep.subr.bf16.mxu0 0
        %1309 = vmatpush1.bf16.msra.mxu0 %v1290
        %1310 = vmatprep.subr.bf16.mxu0 0
        %1311 = vmatpush1.bf16.msra.mxu0 0
        %1312 = vmatprep.subr.bf16.mxu0 0
        %1313 = vmatpush1.bf16.msra.mxu0 0
        %1314 = vmatprep.subr.bf16.mxu0 0
        %1315 = vmatpush1.bf16.msra.mxu0 0
        %1316 = vmatprep.subr.bf16.mxu0 0
        %1317 = vmatpush1.bf16.msra.mxu0 0
        %1318 = vmatprep.subr.bf16.mxu0 0
        %1319 = vmatpush1.bf16.msra.mxu0 0
        %1320 = vmatprep.subr.bf16.mxu0 0
        %1321 = vmatpush1.bf16.msra.mxu0 0
        %1322 = vmatprep.subr.bf16.mxu0 0
        %1323 = vmatpush1.bf16.msra.mxu0 0
        %1324 = vmatprep.subr.bf16.mxu0 0
        %1325 = vmatpush1.bf16.msra.mxu0 0
        %1326 = vmatprep.subr.bf16.mxu0 0
        %1327 = vmatpush1.bf16.msra.mxu0 0
        %1328 = vmatprep.subr.bf16.mxu0 0
        %1329 = vmatpush1.bf16.msra.mxu0 0
        %1330 = vmatprep.subr.bf16.mxu0 0
        %1331 = vmatpush1.bf16.msra.mxu0 0
        %1332 = vmatprep.subr.bf16.mxu0 0
        %1333 = vmatpush1.bf16.msra.mxu0 0
        %1334 = vmatprep.mubr.bf16.mxu0 0
        %1335 = vmatmul.mubr.bf16.gmra.mrb[0].mxu0 %v1297
        %v1336 = vpop.f32.mrb[0].mxu0
        %v1337 = vadd.f32 %v1268, %v1336
        %v1338 = vpop.f32.mrb[0].mxu0
        %v1339 = vpop.f32.mrb[0].mxu0
        %v1340 = vadd.f32 %v1269, %v1339
        %v1341 = vpop.f32.mrb[0].mxu0
        %1342 = vmatprep.mubr.bf16.mxu0 0
        %1343 = vmatmul.mubr.bf16.gmra.mrb[0].mxu0 %v1300
        %v1344 = vpop.f32.mrb[0].mxu0
        %v1345 = vadd.f32 %v1270, %v1344
        %v1346 = vpop.f32.mrb[0].mxu0
        %v1347 = vpop.f32.mrb[0].mxu0
        %v1348 = vpop.f32.mrb[0].mxu0
        %1349 = vdwg.mxu0
        %v1350 = vlaneseq
        %v1351 = vand.u32 %v1350, 127
        %vm1352 = vcmp.lt.s32.totalorder %v1351, 17
        %v1353 = vsel %vm1352, 0.0, -1e+30
        %v1354 = vld [vmem:[%s7] sm:$0xf]
        %v1355 = vld [vmem:[%s7 + $0x4] sm:$0xf]
        %v1356 = vld [vmem:[%s7 + $0x8] sm:$0xf]
        %v1357 = vld [vmem:[%s7 + $0xc] sm:$0xf]
        %v1358 = vld [vmem:[%s9] sm:$0x1]
        %v1359 = vld [vmem:[%s11] sm:$0xf]
        %v1360 = vld [vmem:[%s11 + $0x4] sm:$0xf]
        %v1361 = vld [vmem:[%s11 + $0x8] sm:$0xf]
        %v1362 = vld [vmem:[%s11 + $0xc] sm:$0xf]
        %v1363 = vld [vmem:[%s13] sm:$0x1]
        %v1364 = vld [vmem:[%s15] sm:$0xf]
        %v1365 = vld [vmem:[%s15 + $0x4] sm:$0xf]
        %v1366 = vld [vmem:[%s15 + $0x8] sm:$0xf]
        %v1367 = vld [vmem:[%s15 + $0xc] sm:$0xf]
        %v1368 = vld [vmem:[%s17] sm:$0x1]
        %v1369 = vld [vmem:[%s19] sm:$0xf]
        %v1370 = vld [vmem:[%s19 + $0x4] sm:$0xf]
        %v1371 = vld [vmem:[%s19 + $0x8] sm:$0xf]
        %v1372 = vld [vmem:[%s19 + $0xc] sm:$0xf]
        %v1373 = vld [vmem:[%s21] sm:$0x1]
        %v1374 = vld [vmem:[%s23] sm:$0x1]
        %v1375 = vld [vmem:[%s25] sm:$0x1]
        %v1376 = vld [vmem:[%s27] sm:$0x1]
        %v1377 = vld [vmem:[%s29] sm:$0x1]
        %v1378 = vld [vmem:[%s31] sm:$0xf]
        %v1379 = vld [vmem:[%s31 + $0x4] sm:$0xf]
        %v1380 = vld [vmem:[%s31 + $0x8] sm:$0xf]
        %v1381 = vld [vmem:[%s31 + $0xc] sm:$0xf]
        %v1382 = vld [vmem:[%s33] sm:$0x1]
        %v1383 = vld [vmem:[%s35] sm:$0xf]
        %v1384 = vld [vmem:[%s35 + $0x4] sm:$0xf]
        %v1385 = vld [vmem:[%s35 + $0x8] sm:$0xf]
        %v1386 = vld [vmem:[%s35 + $0xc] sm:$0xf]
        %v1387 = vld [vmem:[%s35 + $0x10] sm:$0xf]
        %v1388 = vld [vmem:[%s35 + $0x14] sm:$0xf]
        %v1389 = vld [vmem:[%s35 + $0x18] sm:$0xf]
        %v1390 = vld [vmem:[%s35 + $0x1c] sm:$0xf]
        %v1391 = vld [vmem:[%s35 + $0x20] sm:$0xf]
        %v1392 = vld [vmem:[%s35 + $0x24] sm:$0xf]
        %v1393 = vld [vmem:[%s35 + $0x28] sm:$0xf]
        %v1394 = vld [vmem:[%s35 + $0x2c] sm:$0xf]
        %v1395 = vld [vmem:[%s35 + $0x30] sm:$0xf]
        %v1396 = vld [vmem:[%s35 + $0x34] sm:$0xf]
        %v1397 = vld [vmem:[%s35 + $0x38] sm:$0xf]
        %v1398 = vld [vmem:[%s35 + $0x3c] sm:$0xf]
        %v1399 = vld [vmem:[%s37] sm:$0x1]
        %v1400 = vpack.c.bf16 %v1340, %v1337
        %v1401 = vpack.c.bf16 %v1345, %v1345
        %v1403 = vlaneseq
        %v1404 = vshrl.u32 %v1403, 7
        %v1405 = vsub.s32 0, %v1404
        %v1406 = vrot.slane %v1358, %v1405
        %v1412 = vunpack.c.l.b16 %v1354
        %v1413 = vunpack.c.l.b16 %v1355
        %v1414 = vunpack.c.l.b16 %v1356
        %v1415 = vunpack.c.l.b16 %v1357
        %v1416 = vpack.c.b16 %v1413, %v1412
        %v1417 = vpack.c.b16 %v1415, %v1414
        %vm1420 = vcmask 261120
        %v1422 = vsel %vm1420, %v1400, 0
        %v1425 = vsel %vm1420, %v1401, 0
        %1427 = vmatprep.subr.bf16.mxu0 0
        %1428 = vmatpush1.bf16.msra.mxu0 %v1416
        %1429 = vmatprep.subr.bf16.mxu0 0
        %1430 = vmatpush1.bf16.msra.mxu0 %v1417
        %1431 = vmatprep.subr.bf16.mxu0 0
        %1432 = vmatpush1.bf16.msra.mxu0 0
        %1433 = vmatprep.subr.bf16.mxu0 0
        %1434 = vmatpush1.bf16.msra.mxu0 0
        %1435 = vmatprep.subr.bf16.mxu0 0
        %1436 = vmatpush1.bf16.msra.mxu0 0
        %1437 = vmatprep.subr.bf16.mxu0 0
        %1438 = vmatpush1.bf16.msra.mxu0 0
        %1439 = vmatprep.subr.bf16.mxu0 0
        %1440 = vmatpush1.bf16.msra.mxu0 0
        %1441 = vmatprep.subr.bf16.mxu0 0
        %1442 = vmatpush1.bf16.msra.mxu0 0
        %1443 = vmatprep.subr.bf16.mxu0 0
        %1444 = vmatpush1.bf16.msra.mxu0 0
        %1445 = vmatprep.subr.bf16.mxu0 0
        %1446 = vmatpush1.bf16.msra.mxu0 0
        %1447 = vmatprep.subr.bf16.mxu0 0
        %1448 = vmatpush1.bf16.msra.mxu0 0
        %1449 = vmatprep.subr.bf16.mxu0 0
        %1450 = vmatpush1.bf16.msra.mxu0 0
        %1451 = vmatprep.subr.bf16.mxu0 0
        %1452 = vmatpush1.bf16.msra.mxu0 0
        %1453 = vmatprep.subr.bf16.mxu0 0
        %1454 = vmatpush1.bf16.msra.mxu0 0
        %1455 = vmatprep.subr.bf16.mxu0 0
        %1456 = vmatpush1.bf16.msra.mxu0 0
        %1457 = vmatprep.subr.bf16.mxu0 0
        %1458 = vmatpush1.bf16.msra.mxu0 0
        %1459 = vmatprep.mubr.bf16.mxu0 0
        %1460 = vmatmul.mubr.bf16.gmra.mrb[0].mxu0 %v1422
        %v1461 = vpop.f32.mrb[0].mxu0
        %v1462 = vadd.f32 %v1406, %v1461
        %v1463 = vpop.f32.mrb[0].mxu0
        %v1464 = vpop.f32.mrb[0].mxu0
        %v1465 = vadd.f32 %v1406, %v1464
        %v1466 = vpop.f32.mrb[0].mxu0
        %1467 = vmatprep.mubr.bf16.mxu0 0
        %1468 = vmatmul.mubr.bf16.gmra.mrb[0].mxu0 %v1425
        %v1469 = vpop.f32.mrb[0].mxu0
        %v1470 = vadd.f32 %v1406, %v1469
        %v1471 = vpop.f32.mrb[0].mxu0
        %v1472 = vpop.f32.mrb[0].mxu0
        %v1473 = vpop.f32.mrb[0].mxu0
        %1474 = vdwg.mxu0
        %v1475 = vpack.c.bf16 %v1465, %v1462
        %v1476 = vpack.c.bf16 %v1470, %v1470
        %v1478 = vlaneseq
        %v1479 = vshrl.u32 %v1478, 7
        %v1480 = vsub.s32 0, %v1479
        %v1481 = vrot.slane %v1363, %v1480
        %v1487 = vunpack.c.l.b16 %v1359
        %v1488 = vunpack.c.l.b16 %v1360
        %v1489 = vunpack.c.l.b16 %v1361
        %v1490 = vunpack.c.l.b16 %v1362
        %v1491 = vpack.c.b16 %v1488, %v1487
        %v1492 = vpack.c.b16 %v1490, %v1489
        %1495 = vmatprep.subr.bf16.mxu0 0
        %1496 = vmatpush1.bf16.msra.mxu0 %v1491
        %1497 = vmatprep.subr.bf16.mxu0 0
        %1498 = vmatpush1.bf16.msra.mxu0 %v1492
        %1499 = vmatprep.subr.bf16.mxu0 0
        %1500 = vmatpush1.bf16.msra.mxu0 0
        %1501 = vmatprep.subr.bf16.mxu0 0
        %1502 = vmatpush1.bf16.msra.mxu0 0
        %1503 = vmatprep.subr.bf16.mxu0 0
        %1504 = vmatpush1.bf16.msra.mxu0 0
        %1505 = vmatprep.subr.bf16.mxu0 0
        %1506 = vmatpush1.bf16.msra.mxu0 0
        %1507 = vmatprep.subr.bf16.mxu0 0
        %1508 = vmatpush1.bf16.msra.mxu0 0
        %1509 = vmatprep.subr.bf16.mxu0 0
        %1510 = vmatpush1.bf16.msra.mxu0 0
        %1511 = vmatprep.subr.bf16.mxu0 0
        %1512 = vmatpush1.bf16.msra.mxu0 0
        %1513 = vmatprep.subr.bf16.mxu0 0
        %1514 = vmatpush1.bf16.msra.mxu0 0
        %1515 = vmatprep.subr.bf16.mxu0 0
        %1516 = vmatpush1.bf16.msra.mxu0 0
        %1517 = vmatprep.subr.bf16.mxu0 0
        %1518 = vmatpush1.bf16.msra.mxu0 0
        %1519 = vmatprep.subr.bf16.mxu0 0
        %1520 = vmatpush1.bf16.msra.mxu0 0
        %1521 = vmatprep.subr.bf16.mxu0 0
        %1522 = vmatpush1.bf16.msra.mxu0 0
        %1523 = vmatprep.subr.bf16.mxu0 0
        %1524 = vmatpush1.bf16.msra.mxu0 0
        %1525 = vmatprep.subr.bf16.mxu0 0
        %1526 = vmatpush1.bf16.msra.mxu0 0
        %1527 = vmatprep.mubr.bf16.mxu0 0
        %1528 = vmatmul.mubr.bf16.gmra.mrb[0].mxu0 %v1422
        %v1529 = vpop.f32.mrb[0].mxu0
        %v1530 = vadd.f32 %v1481, %v1529
        %v1531 = vpop.f32.mrb[0].mxu0
        %v1532 = vpop.f32.mrb[0].mxu0
        %v1533 = vadd.f32 %v1481, %v1532
        %v1534 = vpop.f32.mrb[0].mxu0
        %1535 = vmatprep.mubr.bf16.mxu0 0
        %1536 = vmatmul.mubr.bf16.gmra.mrb[0].mxu0 %v1425
        %v1537 = vpop.f32.mrb[0].mxu0
        %v1538 = vadd.f32 %v1481, %v1537
        %v1539 = vpop.f32.mrb[0].mxu0
        %v1540 = vpop.f32.mrb[0].mxu0
        %v1541 = vpop.f32.mrb[0].mxu0
        %1542 = vdwg.mxu0
        %v1543 = vpack.c.bf16 %v1533, %v1530
        %v1544 = vpack.c.bf16 %v1538, %v1538
        %v1546 = vlaneseq
        %v1547 = vshrl.u32 %v1546, 7
        %v1548 = vsub.s32 0, %v1547
        %v1549 = vrot.slane %v1368, %v1548
        %v1555 = vunpack.c.l.b16 %v1364
        %v1556 = vunpack.c.l.b16 %v1365
        %v1557 = vunpack.c.l.b16 %v1366
        %v1558 = vunpack.c.l.b16 %v1367
        %v1559 = vpack.c.b16 %v1556, %v1555
        %v1560 = vpack.c.b16 %v1558, %v1557
        %1563 = vmatprep.subr.bf16.mxu0 0
        %1564 = vmatpush1.bf16.msra.mxu0 %v1559
        %1565 = vmatprep.subr.bf16.mxu0 0
        %1566 = vmatpush1.bf16.msra.mxu0 %v1560
        %1567 = vmatprep.subr.bf16.mxu0 0
        %1568 = vmatpush1.bf16.msra.mxu0 0
        %1569 = vmatprep.subr.bf16.mxu0 0
        %1570 = vmatpush1.bf16.msra.mxu0 0
        %1571 = vmatprep.subr.bf16.mxu0 0
        %1572 = vmatpush1.bf16.msra.mxu0 0
        %1573 = vmatprep.subr.bf16.mxu0 0
        %1574 = vmatpush1.bf16.msra.mxu0 0
        %1575 = vmatprep.subr.bf16.mxu0 0
        %1576 = vmatpush1.bf16.msra.mxu0 0
        %1577 = vmatprep.subr.bf16.mxu0 0
        %1578 = vmatpush1.bf16.msra.mxu0 0
        %1579 = vmatprep.subr.bf16.mxu0 0
        %1580 = vmatpush1.bf16.msra.mxu0 0
        %1581 = vmatprep.subr.bf16.mxu0 0
        %1582 = vmatpush1.bf16.msra.mxu0 0
        %1583 = vmatprep.subr.bf16.mxu0 0
        %1584 = vmatpush1.bf16.msra.mxu0 0
        %1585 = vmatprep.subr.bf16.mxu0 0
        %1586 = vmatpush1.bf16.msra.mxu0 0
        %1587 = vmatprep.subr.bf16.mxu0 0
        %1588 = vmatpush1.bf16.msra.mxu0 0
        %1589 = vmatprep.subr.bf16.mxu0 0
        %1590 = vmatpush1.bf16.msra.mxu0 0
        %1591 = vmatprep.subr.bf16.mxu0 0
        %1592 = vmatpush1.bf16.msra.mxu0 0
        %1593 = vmatprep.subr.bf16.mxu0 0
        %1594 = vmatpush1.bf16.msra.mxu0 0
        %1595 = vmatprep.mubr.bf16.mxu0 0
        %1596 = vmatmul.mubr.bf16.gmra.mrb[0].mxu0 %v1422
        %v1597 = vpop.f32.mrb[0].mxu0
        %v1598 = vadd.f32 %v1549, %v1597
        %v1599 = vpop.f32.mrb[0].mxu0
        %v1600 = vpop.f32.mrb[0].mxu0
        %v1601 = vadd.f32 %v1549, %v1600
        %v1602 = vpop.f32.mrb[0].mxu0
        %1603 = vmatprep.mubr.bf16.mxu0 0
        %1604 = vmatmul.mubr.bf16.gmra.mrb[0].mxu0 %v1425
        %v1605 = vpop.f32.mrb[0].mxu0
        %v1606 = vadd.f32 %v1549, %v1605
        %v1607 = vpop.f32.mrb[0].mxu0
        %v1608 = vpop.f32.mrb[0].mxu0
        %v1609 = vpop.f32.mrb[0].mxu0
        %1610 = vdwg.mxu0
        %v1611 = vpack.c.bf16 %v1601, %v1598
        %v1612 = vpack.c.bf16 %v1606, %v1606
        %1615 = vrot.lane.b32.xlu0 %v1475, 120
        %v1616 = vpop.permute.xlu0 %1615
        %1617 = vrot.lane.b32.xlu0 %v1476, 120
        %v1618 = vpop.permute.xlu0 %1617
        %1619 = vrot.lane.b32.xlu0 %v1475, 112
        %v1620 = vpop.permute.xlu0 %1619
        %1621 = vrot.lane.b32.xlu0 %v1476, 112
        %v1622 = vpop.permute.xlu0 %1621
        %1623 = vrot.lane.b32.xlu0 %v1475, 104
        %v1624 = vpop.permute.xlu0 %1623
        %1625 = vrot.lane.b32.xlu0 %v1476, 104
        %v1626 = vpop.permute.xlu0 %1625
        %1629 = vrot.lane.b32.xlu0 %v1543, 120
        %v1630 = vpop.permute.xlu0 %1629
        %1631 = vrot.lane.b32.xlu0 %v1544, 120
        %v1632 = vpop.permute.xlu0 %1631
        %1633 = vrot.lane.b32.xlu0 %v1543, 112
        %v1634 = vpop.permute.xlu0 %1633
        %1635 = vrot.lane.b32.xlu0 %v1544, 112
        %v1636 = vpop.permute.xlu0 %1635
        %1637 = vrot.lane.b32.xlu0 %v1543, 104
        %v1638 = vpop.permute.xlu0 %1637
        %1639 = vrot.lane.b32.xlu0 %v1544, 104
        %v1640 = vpop.permute.xlu0 %1639
        %1643 = vrot.lane.b32.xlu0 %v1611, 120
        %v1644 = vpop.permute.xlu0 %1643
        %1645 = vrot.lane.b32.xlu0 %v1612, 120
        %v1646 = vpop.permute.xlu0 %1645
        %1648 = vrot.lane.b32.xlu0 %v1611, 112
        %v1649 = vpop.permute.xlu0 %1648
        %1650 = vrot.lane.b32.xlu0 %v1612, 112
        %v1651 = vpop.permute.xlu0 %1650
        %1653 = vrot.lane.b32.xlu0 %v1611, 104
        %v1654 = vpop.permute.xlu0 %1653
        %1655 = vrot.lane.b32.xlu0 %v1612, 104
        %v1656 = vpop.permute.xlu0 %1655
        %vm1658 = vcmask 64512
        %v1660 = vsel %vm1658, %v1475, 0
        %v1663 = vsel %vm1658, %v1476, 0
        %v1666 = vsel %vm1658, %v1543, 0
        %v1669 = vsel %vm1658, %v1544, 0
        %1671 = vmatprep.subr.bf16.mxu0 0
        %1672 = vmatpush1.bf16.xpose.msra.mxu0 %v1666
        %1673 = vmatprep.subr.bf16.mxu0 0
        %1674 = vmatpush1.bf16.xpose.msra.mxu0 %v1669
        %1675 = vmatprep.subr.bf16.mxu0 0
        %1676 = vmatpush1.bf16.xpose.msra.mxu0 0
        %1677 = vmatprep.subr.bf16.mxu0 0
        %1678 = vmatpush1.bf16.xpose.msra.mxu0 0
        %1679 = vmatprep.subr.bf16.mxu0 0
        %1680 = vmatpush1.bf16.xpose.msra.mxu0 0
        %1681 = vmatprep.subr.bf16.mxu0 0
        %1682 = vmatpush1.bf16.xpose.msra.mxu0 0
        %1683 = vmatprep.subr.bf16.mxu0 0
        %1684 = vmatpush1.bf16.xpose.msra.mxu0 0
        %1685 = vmatprep.subr.bf16.mxu0 0
        %1686 = vmatpush1.bf16.xpose.msra.mxu0 0
        %1687 = vmatprep.subr.bf16.mxu0 0
        %1688 = vmatpush1.bf16.xpose.msra.mxu0 0
        %1689 = vmatprep.subr.bf16.mxu0 0
        %1690 = vmatpush1.bf16.xpose.msra.mxu0 0
        %1691 = vmatprep.subr.bf16.mxu0 0
        %1692 = vmatpush1.bf16.xpose.msra.mxu0 0
        %1693 = vmatprep.subr.bf16.mxu0 0
        %1694 = vmatpush1.bf16.xpose.msra.mxu0 0
        %1695 = vmatprep.subr.bf16.mxu0 0
        %1696 = vmatpush1.bf16.xpose.msra.mxu0 0
        %1697 = vmatprep.subr.bf16.mxu0 0
        %1698 = vmatpush1.bf16.xpose.msra.mxu0 0
        %1699 = vmatprep.subr.bf16.mxu0 0
        %1700 = vmatpush1.bf16.xpose.msra.mxu0 0
        %1701 = vmatprep.subr.bf16.mxu0 0
        %1702 = vmatpush1.bf16.xpose.msra.mxu0 0
        %1703 = vmatprep.mubr.bf16.mxu0 0
        %1704 = vmatmul.mubr.bf16.gmra.mrb[0].mxu0 %v1660
        %v1705 = vpop.f32.mrb[0].mxu0
        %v1706 = vadd.f32 %v1353, %v1705
        %v1707 = vpop.f32.mrb[0].mxu0
        %v1708 = vpop.f32.mrb[0].mxu0
        %v1709 = vadd.f32 %v1353, %v1708
        %v1710 = vpop.f32.mrb[0].mxu0
        %1711 = vmatprep.mubr.bf16.mxu0 0
        %1712 = vmatmul.mubr.bf16.gmra.mrb[0].mxu0 %v1663
        %v1713 = vpop.f32.mrb[0].mxu0
        %v1714 = vadd.f32 %v1353, %v1713
        %v1715 = vpop.f32.mrb[0].mxu0
        %v1716 = vpop.f32.mrb[0].mxu0
        %v1717 = vpop.f32.mrb[0].mxu0
        %1718 = vdwg.mxu0
        %v1720 = vsel %vm1658, %v1616, 0
        %v1723 = vsel %vm1658, %v1618, 0
        %v1726 = vsel %vm1658, %v1630, 0
        %v1729 = vsel %vm1658, %v1632, 0
        %1731 = vmatprep.subr.bf16.mxu0 0
        %1732 = vmatpush1.bf16.xpose.msra.mxu0 %v1726
        %1733 = vmatprep.subr.bf16.mxu0 0
        %1734 = vmatpush1.bf16.xpose.msra.mxu0 %v1729
        %1735 = vmatprep.subr.bf16.mxu0 0
        %1736 = vmatpush1.bf16.xpose.msra.mxu0 0
        %1737 = vmatprep.subr.bf16.mxu0 0
        %1738 = vmatpush1.bf16.xpose.msra.mxu0 0
        %1739 = vmatprep.subr.bf16.mxu0 0
        %1740 = vmatpush1.bf16.xpose.msra.mxu0 0
        %1741 = vmatprep.subr.bf16.mxu0 0
        %1742 = vmatpush1.bf16.xpose.msra.mxu0 0
        %1743 = vmatprep.subr.bf16.mxu0 0
        %1744 = vmatpush1.bf16.xpose.msra.mxu0 0
        %1745 = vmatprep.subr.bf16.mxu0 0
        %1746 = vmatpush1.bf16.xpose.msra.mxu0 0
        %1747 = vmatprep.subr.bf16.mxu0 0
        %1748 = vmatpush1.bf16.xpose.msra.mxu0 0
        %1749 = vmatprep.subr.bf16.mxu0 0
        %1750 = vmatpush1.bf16.xpose.msra.mxu0 0
        %1751 = vmatprep.subr.bf16.mxu0 0
        %1752 = vmatpush1.bf16.xpose.msra.mxu0 0
        %1753 = vmatprep.subr.bf16.mxu0 0
        %1754 = vmatpush1.bf16.xpose.msra.mxu0 0
        %1755 = vmatprep.subr.bf16.mxu0 0
        %1756 = vmatpush1.bf16.xpose.msra.mxu0 0
        %1757 = vmatprep.subr.bf16.mxu0 0
        %1758 = vmatpush1.bf16.xpose.msra.mxu0 0
        %1759 = vmatprep.subr.bf16.mxu0 0
        %1760 = vmatpush1.bf16.xpose.msra.mxu0 0
        %1761 = vmatprep.subr.bf16.mxu0 0
        %1762 = vmatpush1.bf16.xpose.msra.mxu0 0
        %1763 = vmatprep.mubr.bf16.mxu0 0
        %1764 = vmatmul.mubr.bf16.gmra.mrb[0].mxu0 %v1720
        %v1765 = vpop.f32.mrb[0].mxu0
        %v1766 = vadd.f32 %v1353, %v1765
        %v1767 = vpop.f32.mrb[0].mxu0
        %v1768 = vpop.f32.mrb[0].mxu0
        %v1769 = vadd.f32 %v1353, %v1768
        %v1770 = vpop.f32.mrb[0].mxu0
        %1771 = vmatprep.mubr.bf16.mxu0 0
        %1772 = vmatmul.mubr.bf16.gmra.mrb[0].mxu0 %v1723
        %v1773 = vpop.f32.mrb[0].mxu0
        %v1774 = vadd.f32 %v1353, %v1773
        %v1775 = vpop.f32.mrb[0].mxu0
        %v1776 = vpop.f32.mrb[0].mxu0
        %v1777 = vpop.f32.mrb[0].mxu0
        %1778 = vdwg.mxu0
        %v1780 = vsel %vm1658, %v1620, 0
        %v1783 = vsel %vm1658, %v1622, 0
        %v1786 = vsel %vm1658, %v1634, 0
        %v1789 = vsel %vm1658, %v1636, 0
        %1791 = vmatprep.subr.bf16.mxu0 0
        %1792 = vmatpush1.bf16.xpose.msra.mxu0 %v1786
        %1793 = vmatprep.subr.bf16.mxu0 0
        %1794 = vmatpush1.bf16.xpose.msra.mxu0 %v1789
        %1795 = vmatprep.subr.bf16.mxu0 0
        %1796 = vmatpush1.bf16.xpose.msra.mxu0 0
        %1797 = vmatprep.subr.bf16.mxu0 0
        %1798 = vmatpush1.bf16.xpose.msra.mxu0 0
        %1799 = vmatprep.subr.bf16.mxu0 0
        %1800 = vmatpush1.bf16.xpose.msra.mxu0 0
        %1801 = vmatprep.subr.bf16.mxu0 0
        %1802 = vmatpush1.bf16.xpose.msra.mxu0 0
        %1803 = vmatprep.subr.bf16.mxu0 0
        %1804 = vmatpush1.bf16.xpose.msra.mxu0 0
        %1805 = vmatprep.subr.bf16.mxu0 0
        %1806 = vmatpush1.bf16.xpose.msra.mxu0 0
        %1807 = vmatprep.subr.bf16.mxu0 0
        %1808 = vmatpush1.bf16.xpose.msra.mxu0 0
        %1809 = vmatprep.subr.bf16.mxu0 0
        %1810 = vmatpush1.bf16.xpose.msra.mxu0 0
        %1811 = vmatprep.subr.bf16.mxu0 0
        %1812 = vmatpush1.bf16.xpose.msra.mxu0 0
        %1813 = vmatprep.subr.bf16.mxu0 0
        %1814 = vmatpush1.bf16.xpose.msra.mxu0 0
        %1815 = vmatprep.subr.bf16.mxu0 0
        %1816 = vmatpush1.bf16.xpose.msra.mxu0 0
        %1817 = vmatprep.subr.bf16.mxu0 0
        %1818 = vmatpush1.bf16.xpose.msra.mxu0 0
        %1819 = vmatprep.subr.bf16.mxu0 0
        %1820 = vmatpush1.bf16.xpose.msra.mxu0 0
        %1821 = vmatprep.subr.bf16.mxu0 0
        %1822 = vmatpush1.bf16.xpose.msra.mxu0 0
        %1823 = vmatprep.mubr.bf16.mxu0 0
        %1824 = vmatmul.mubr.bf16.gmra.mrb[0].mxu0 %v1780
        %v1825 = vpop.f32.mrb[0].mxu0
        %v1826 = vadd.f32 %v1353, %v1825
        %v1827 = vpop.f32.mrb[0].mxu0
        %v1828 = vpop.f32.mrb[0].mxu0
        %v1829 = vadd.f32 %v1353, %v1828
        %v1830 = vpop.f32.mrb[0].mxu0
        %1831 = vmatprep.mubr.bf16.mxu0 0
        %1832 = vmatmul.mubr.bf16.gmra.mrb[0].mxu0 %v1783
        %v1833 = vpop.f32.mrb[0].mxu0
        %v1834 = vadd.f32 %v1353, %v1833
        %v1835 = vpop.f32.mrb[0].mxu0
        %v1836 = vpop.f32.mrb[0].mxu0
        %v1837 = vpop.f32.mrb[0].mxu0
        %1838 = vdwg.mxu0
        %v1840 = vsel %vm1658, %v1624, 0
        %v1843 = vsel %vm1658, %v1626, 0
        %v1846 = vsel %vm1658, %v1638, 0
        %v1849 = vsel %vm1658, %v1640, 0
        %1851 = vmatprep.subr.bf16.mxu0 0
        %1852 = vmatpush1.bf16.xpose.msra.mxu0 %v1846
        %1853 = vmatprep.subr.bf16.mxu0 0
        %1854 = vmatpush1.bf16.xpose.msra.mxu0 %v1849
        %1855 = vmatprep.subr.bf16.mxu0 0
        %1856 = vmatpush1.bf16.xpose.msra.mxu0 0
        %1857 = vmatprep.subr.bf16.mxu0 0
        %1858 = vmatpush1.bf16.xpose.msra.mxu0 0
        %1859 = vmatprep.subr.bf16.mxu0 0
        %1860 = vmatpush1.bf16.xpose.msra.mxu0 0
        %1861 = vmatprep.subr.bf16.mxu0 0
        %1862 = vmatpush1.bf16.xpose.msra.mxu0 0
        %1863 = vmatprep.subr.bf16.mxu0 0
        %1864 = vmatpush1.bf16.xpose.msra.mxu0 0
        %1865 = vmatprep.subr.bf16.mxu0 0
        %1866 = vmatpush1.bf16.xpose.msra.mxu0 0
        %1867 = vmatprep.subr.bf16.mxu0 0
        %1868 = vmatpush1.bf16.xpose.msra.mxu0 0
        %1869 = vmatprep.subr.bf16.mxu0 0
        %1870 = vmatpush1.bf16.xpose.msra.mxu0 0
        %1871 = vmatprep.subr.bf16.mxu0 0
        %1872 = vmatpush1.bf16.xpose.msra.mxu0 0
        %1873 = vmatprep.subr.bf16.mxu0 0
        %1874 = vmatpush1.bf16.xpose.msra.mxu0 0
        %1875 = vmatprep.subr.bf16.mxu0 0
        %1876 = vmatpush1.bf16.xpose.msra.mxu0 0
        %1877 = vmatprep.subr.bf16.mxu0 0
        %1878 = vmatpush1.bf16.xpose.msra.mxu0 0
        %1879 = vmatprep.subr.bf16.mxu0 0
        %1880 = vmatpush1.bf16.xpose.msra.mxu0 0
        %1881 = vmatprep.subr.bf16.mxu0 0
        %1882 = vmatpush1.bf16.xpose.msra.mxu0 0
        %1883 = vmatprep.mubr.bf16.mxu0 0
        %1884 = vmatmul.mubr.bf16.gmra.mrb[0].mxu0 %v1840
        %v1885 = vpop.f32.mrb[0].mxu0
        %v1886 = vadd.f32 %v1353, %v1885
        %v1887 = vpop.f32.mrb[0].mxu0
        %v1888 = vpop.f32.mrb[0].mxu0
        %v1889 = vadd.f32 %v1353, %v1888
        %v1890 = vpop.f32.mrb[0].mxu0
        %1891 = vmatprep.mubr.bf16.mxu0 0
        %1892 = vmatmul.mubr.bf16.gmra.mrb[0].mxu0 %v1843
        %v1893 = vpop.f32.mrb[0].mxu0
        %v1894 = vadd.f32 %v1353, %v1893
        %v1895 = vpop.f32.mrb[0].mxu0
        %v1896 = vpop.f32.mrb[0].mxu0
        %v1897 = vpop.f32.mrb[0].mxu0
        %1898 = vdwg.mxu0
        %vm1899 = vcmask 195584
        %v1900 = vsel %vm1899, %v1706, -inf
        %1901 = vmax.xlane.f32.xlu0 %v1900
        %v1902 = vpop.xlane.xlu0 %1901
        %v1903 = vsel %vm1899, %v1709, -inf
        %1904 = vmax.xlane.f32.xlu0 %v1903
        %v1905 = vpop.xlane.xlu0 %1904
        %v1906 = vsel %vm1899, %v1714, -inf
        %1907 = vmax.xlane.f32.xlu0 %v1906
        %v1908 = vpop.xlane.xlu0 %1907
        %v1909 = vsel %vm1899, %v1766, -inf
        %1910 = vmax.xlane.f32.xlu0 %v1909
        %v1911 = vpop.xlane.xlu0 %1910
        %v1912 = vsel %vm1899, %v1769, -inf
        %1913 = vmax.xlane.f32.xlu0 %v1912
        %v1914 = vpop.xlane.xlu0 %1913
        %v1915 = vsel %vm1899, %v1774, -inf
        %1916 = vmax.xlane.f32.xlu0 %v1915
        %v1917 = vpop.xlane.xlu0 %1916
        %v1918 = vsel %vm1899, %v1826, -inf
        %1919 = vmax.xlane.f32.xlu0 %v1918
        %v1920 = vpop.xlane.xlu0 %1919
        %v1921 = vsel %vm1899, %v1829, -inf
        %1922 = vmax.xlane.f32.xlu0 %v1921
        %v1923 = vpop.xlane.xlu0 %1922
        %v1924 = vsel %vm1899, %v1834, -inf
        %1925 = vmax.xlane.f32.xlu0 %v1924
        %v1926 = vpop.xlane.xlu0 %1925
        %v1927 = vsel %vm1899, %v1886, -inf
        %1928 = vmax.xlane.f32.xlu0 %v1927
        %v1929 = vpop.xlane.xlu0 %1928
        %v1930 = vsel %vm1899, %v1889, -inf
        %1931 = vmax.xlane.f32.xlu0 %v1930
        %v1932 = vpop.xlane.xlu0 %1931
        %v1933 = vsel %vm1899, %v1894, -inf
        %1934 = vmax.xlane.f32.xlu0 %v1933
        %v1935 = vpop.xlane.xlu0 %1934
        %v1936 = vsub.f32 %v1706, %v1902
        %v1937 = vsub.f32 %v1709, %v1905
        %v1938 = vsub.f32 %v1714, %v1908
        %v1939 = vsub.f32 %v1766, %v1911
        %v1940 = vsub.f32 %v1769, %v1914
        %v1941 = vsub.f32 %v1774, %v1917
        %v1942 = vsub.f32 %v1826, %v1920
        %v1943 = vsub.f32 %v1829, %v1923
        %v1944 = vsub.f32 %v1834, %v1926
        %v1945 = vsub.f32 %v1886, %v1929
        %v1946 = vsub.f32 %v1889, %v1932
        %v1947 = vsub.f32 %v1894, %v1935
        %v1948 = vmul.f32 %v1936, 1.442695
        %v1949 = vpow.pop %v1948
        %v1950 = vmul.f32 %v1937, 1.442695
        %v1951 = vpow.pop %v1950
        %v1952 = vmul.f32 %v1938, 1.442695
        %v1953 = vpow.pop %v1952
        %v1954 = vmul.f32 %v1939, 1.442695
        %v1955 = vpow.pop %v1954
        %v1956 = vmul.f32 %v1940, 1.442695
        %v1957 = vpow.pop %v1956
        %v1958 = vmul.f32 %v1941, 1.442695
        %v1959 = vpow.pop %v1958
        %v1960 = vmul.f32 %v1942, 1.442695
        %v1961 = vpow.pop %v1960
        %v1962 = vmul.f32 %v1943, 1.442695
        %v1963 = vpow.pop %v1962
        %v1964 = vmul.f32 %v1944, 1.442695
        %v1965 = vpow.pop %v1964
        %v1966 = vmul.f32 %v1945, 1.442695
        %v1967 = vpow.pop %v1966
        %v1968 = vmul.f32 %v1946, 1.442695
        %v1969 = vpow.pop %v1968
        %v1970 = vmul.f32 %v1947, 1.442695
        %v1971 = vpow.pop %v1970
        %v1972 = vsel %vm1899, %v1949, 0.0
        %1973 = vadd.xlane.f32.xlu0 %v1972
        %v1974 = vpop.xlane.xlu0 %1973
        %v1975 = vsel %vm1899, %v1951, 0.0
        %1976 = vadd.xlane.f32.xlu0 %v1975
        %v1977 = vpop.xlane.xlu0 %1976
        %v1978 = vsel %vm1899, %v1953, 0.0
        %1979 = vadd.xlane.f32.xlu0 %v1978
        %v1980 = vpop.xlane.xlu0 %1979
        %v1981 = vsel %vm1899, %v1955, 0.0
        %1982 = vadd.xlane.f32.xlu0 %v1981
        %v1983 = vpop.xlane.xlu0 %1982
        %v1984 = vsel %vm1899, %v1957, 0.0
        %1985 = vadd.xlane.f32.xlu0 %v1984
        %v1986 = vpop.xlane.xlu0 %1985
        %v1987 = vsel %vm1899, %v1959, 0.0
        %1988 = vadd.xlane.f32.xlu0 %v1987
        %v1989 = vpop.xlane.xlu0 %1988
        %v1990 = vsel %vm1899, %v1961, 0.0
        %1991 = vadd.xlane.f32.xlu0 %v1990
        %v1992 = vpop.xlane.xlu0 %1991
        %v1993 = vsel %vm1899, %v1963, 0.0
        %1994 = vadd.xlane.f32.xlu0 %v1993
        %v1995 = vpop.xlane.xlu0 %1994
        %v1996 = vsel %vm1899, %v1965, 0.0
        %1997 = vadd.xlane.f32.xlu0 %v1996
        %v1998 = vpop.xlane.xlu0 %1997
        %v1999 = vsel %vm1899, %v1967, 0.0
        %2000 = vadd.xlane.f32.xlu0 %v1999
        %v2001 = vpop.xlane.xlu0 %2000
        %v2002 = vsel %vm1899, %v1969, 0.0
        %2003 = vadd.xlane.f32.xlu0 %v2002
        %v2004 = vpop.xlane.xlu0 %2003
        %v2005 = vsel %vm1899, %v1971, 0.0
        %2006 = vadd.xlane.f32.xlu0 %v2005
        %v2007 = vpop.xlane.xlu0 %2006
        %v2008 = vrcp.pop %v1974
        %v2009 = vrcp.pop %v1977
        %v2010 = vrcp.pop %v1980
        %v2011 = vrcp.pop %v1983
        %v2012 = vrcp.pop %v1986
        %v2013 = vrcp.pop %v1989
        %v2014 = vrcp.pop %v1992
        %v2015 = vrcp.pop %v1995
        %v2016 = vrcp.pop %v1998
        %v2017 = vrcp.pop %v2001
        %v2018 = vrcp.pop %v2004
        %v2019 = vrcp.pop %v2007
        %v2020 = vmul.f32 %v1949, %v2008
        %v2021 = vmul.f32 %v1951, %v2009
        %v2022 = vmul.f32 %v1953, %v2010
        %v2023 = vmul.f32 %v1955, %v2011
        %v2024 = vmul.f32 %v1957, %v2012
        %v2025 = vmul.f32 %v1959, %v2013
        %v2026 = vmul.f32 %v1961, %v2014
        %v2027 = vmul.f32 %v1963, %v2015
        %v2028 = vmul.f32 %v1965, %v2016
        %v2029 = vmul.f32 %v1967, %v2017
        %v2030 = vmul.f32 %v1969, %v2018
        %v2031 = vmul.f32 %v1971, %v2019
        %v2032 = vpack.c.bf16 %v2021, %v2020
        %v2033 = vpack.c.bf16 %v2022, %v2022
        %v2034 = vpack.c.bf16 %v2024, %v2023
        %v2035 = vpack.c.bf16 %v2025, %v2025
        %v2036 = vpack.c.bf16 %v2027, %v2026
        %v2037 = vpack.c.bf16 %v2028, %v2028
        %v2038 = vpack.c.bf16 %v2030, %v2029
        %v2039 = vpack.c.bf16 %v2031, %v2031
        %v2041 = vsel %vm1899, %v2032, 0
        %v2044 = vsel %vm1899, %v2033, 0
        %vm2046 = vcmask 1043456
        %v2048 = vsel %vm2046, %v1612, 0
        %2050 = vmatprep.subr.bf16.mxu0 0
        %2051 = vmatpush1.bf16.msra.mxu0 %v1611
        %2052 = vmatprep.subr.bf16.mxu0 0
        %2053 = vmatpush1.bf16.msra.mxu0 %v2048
        %2054 = vmatprep.subr.bf16.mxu0 0
        %2055 = vmatpush1.bf16.msra.mxu0 0
        %2056 = vmatprep.subr.bf16.mxu0 0
        %2057 = vmatpush1.bf16.msra.mxu0 0
        %2058 = vmatprep.subr.bf16.mxu0 0
        %2059 = vmatpush1.bf16.msra.mxu0 0
        %2060 = vmatprep.subr.bf16.mxu0 0
        %2061 = vmatpush1.bf16.msra.mxu0 0
        %2062 = vmatprep.subr.bf16.mxu0 0
        %2063 = vmatpush1.bf16.msra.mxu0 0
        %2064 = vmatprep.subr.bf16.mxu0 0
        %2065 = vmatpush1.bf16.msra.mxu0 0
        %2066 = vmatprep.subr.bf16.mxu0 0
        %2067 = vmatpush1.bf16.msra.mxu0 0
        %2068 = vmatprep.subr.bf16.mxu0 0
        %2069 = vmatpush1.bf16.msra.mxu0 0
        %2070 = vmatprep.subr.bf16.mxu0 0
        %2071 = vmatpush1.bf16.msra.mxu0 0
        %2072 = vmatprep.subr.bf16.mxu0 0
        %2073 = vmatpush1.bf16.msra.mxu0 0
        %2074 = vmatprep.subr.bf16.mxu0 0
        %2075 = vmatpush1.bf16.msra.mxu0 0
        %2076 = vmatprep.subr.bf16.mxu0 0
        %2077 = vmatpush1.bf16.msra.mxu0 0
        %2078 = vmatprep.subr.bf16.mxu0 0
        %2079 = vmatpush1.bf16.msra.mxu0 0
        %2080 = vmatprep.subr.bf16.mxu0 0
        %2081 = vmatpush1.bf16.msra.mxu0 0
        %2082 = vmatprep.mubr.bf16.mxu0 0
        %2083 = vmatmul.mubr.bf16.gmra.mrb[0].mxu0 %v2041
        %v2084 = vpop.f32.mrb[0].mxu0
        %v2085 = vadd.f32 0.0, %v2084
        %v2086 = vpop.f32.mrb[0].mxu0
        %v2087 = vpop.f32.mrb[0].mxu0
        %v2088 = vadd.f32 0.0, %v2087
        %v2089 = vpop.f32.mrb[0].mxu0
        %2090 = vmatprep.mubr.bf16.mxu0 0
        %2091 = vmatmul.mubr.bf16.gmra.mrb[0].mxu0 %v2044
        %v2092 = vpop.f32.mrb[0].mxu0
        %v2093 = vadd.f32 0.0, %v2092
        %v2094 = vpop.f32.mrb[0].mxu0
        %v2095 = vpop.f32.mrb[0].mxu0
        %v2096 = vpop.f32.mrb[0].mxu0
        %2097 = vdwg.mxu0
        %v2099 = vsel %vm1899, %v2034, 0
        %v2102 = vsel %vm1899, %v2035, 0
        %v2105 = vsel %vm2046, %v1646, 0
        %2107 = vmatprep.subr.bf16.mxu0 0
        %2108 = vmatpush1.bf16.msra.mxu0 %v1644
        %2109 = vmatprep.subr.bf16.mxu0 0
        %2110 = vmatpush1.bf16.msra.mxu0 %v2105
        %2111 = vmatprep.subr.bf16.mxu0 0
        %2112 = vmatpush1.bf16.msra.mxu0 0
        %2113 = vmatprep.subr.bf16.mxu0 0
        %2114 = vmatpush1.bf16.msra.mxu0 0
        %2115 = vmatprep.subr.bf16.mxu0 0
        %2116 = vmatpush1.bf16.msra.mxu0 0
        %2117 = vmatprep.subr.bf16.mxu0 0
        %2118 = vmatpush1.bf16.msra.mxu0 0
        %2119 = vmatprep.subr.bf16.mxu0 0
        %2120 = vmatpush1.bf16.msra.mxu0 0
        %2121 = vmatprep.subr.bf16.mxu0 0
        %2122 = vmatpush1.bf16.msra.mxu0 0
        %2123 = vmatprep.subr.bf16.mxu0 0
        %2124 = vmatpush1.bf16.msra.mxu0 0
        %2125 = vmatprep.subr.bf16.mxu0 0
        %2126 = vmatpush1.bf16.msra.mxu0 0
        %2127 = vmatprep.subr.bf16.mxu0 0
        %2128 = vmatpush1.bf16.msra.mxu0 0
        %2129 = vmatprep.subr.bf16.mxu0 0
        %2130 = vmatpush1.bf16.msra.mxu0 0
        %2131 = vmatprep.subr.bf16.mxu0 0
        %2132 = vmatpush1.bf16.msra.mxu0 0
        %2133 = vmatprep.subr.bf16.mxu0 0
        %2134 = vmatpush1.bf16.msra.mxu0 0
        %2135 = vmatprep.subr.bf16.mxu0 0
        %2136 = vmatpush1.bf16.msra.mxu0 0
        %2137 = vmatprep.subr.bf16.mxu0 0
        %2138 = vmatpush1.bf16.msra.mxu0 0
        %2139 = vmatprep.mubr.bf16.mxu0 0
        %2140 = vmatmul.mubr.bf16.gmra.mrb[0].mxu0 %v2099
        %v2141 = vpop.f32.mrb[0].mxu0
        %v2142 = vadd.f32 0.0, %v2141
        %v2143 = vpop.f32.mrb[0].mxu0
        %v2144 = vpop.f32.mrb[0].mxu0
        %v2145 = vadd.f32 0.0, %v2144
        %v2146 = vpop.f32.mrb[0].mxu0
        %2147 = vmatprep.mubr.bf16.mxu0 0
        %2148 = vmatmul.mubr.bf16.gmra.mrb[0].mxu0 %v2102
        %v2149 = vpop.f32.mrb[0].mxu0
        %v2150 = vadd.f32 0.0, %v2149
        %v2151 = vpop.f32.mrb[0].mxu0
        %v2152 = vpop.f32.mrb[0].mxu0
        %v2153 = vpop.f32.mrb[0].mxu0
        %2154 = vdwg.mxu0
        %v2156 = vsel %vm1899, %v2036, 0
        %v2159 = vsel %vm1899, %v2037, 0
        %v2162 = vsel %vm2046, %v1651, 0
        %2164 = vmatprep.subr.bf16.mxu0 0
        %2165 = vmatpush1.bf16.msra.mxu0 %v1649
        %2166 = vmatprep.subr.bf16.mxu0 0
        %2167 = vmatpush1.bf16.msra.mxu0 %v2162
        %2168 = vmatprep.subr.bf16.mxu0 0
        %2169 = vmatpush1.bf16.msra.mxu0 0
        %2170 = vmatprep.subr.bf16.mxu0 0
        %2171 = vmatpush1.bf16.msra.mxu0 0
        %2172 = vmatprep.subr.bf16.mxu0 0
        %2173 = vmatpush1.bf16.msra.mxu0 0
        %2174 = vmatprep.subr.bf16.mxu0 0
        %2175 = vmatpush1.bf16.msra.mxu0 0
        %2176 = vmatprep.subr.bf16.mxu0 0
        %2177 = vmatpush1.bf16.msra.mxu0 0
        %2178 = vmatprep.subr.bf16.mxu0 0
        %2179 = vmatpush1.bf16.msra.mxu0 0
        %2180 = vmatprep.subr.bf16.mxu0 0
        %2181 = vmatpush1.bf16.msra.mxu0 0
        %2182 = vmatprep.subr.bf16.mxu0 0
        %2183 = vmatpush1.bf16.msra.mxu0 0
        %2184 = vmatprep.subr.bf16.mxu0 0
        %2185 = vmatpush1.bf16.msra.mxu0 0
        %2186 = vmatprep.subr.bf16.mxu0 0
        %2187 = vmatpush1.bf16.msra.mxu0 0
        %2188 = vmatprep.subr.bf16.mxu0 0
        %2189 = vmatpush1.bf16.msra.mxu0 0
        %2190 = vmatprep.subr.bf16.mxu0 0
        %2191 = vmatpush1.bf16.msra.mxu0 0
        %2192 = vmatprep.subr.bf16.mxu0 0
        %2193 = vmatpush1.bf16.msra.mxu0 0
        %2194 = vmatprep.subr.bf16.mxu0 0
        %2195 = vmatpush1.bf16.msra.mxu0 0
        %2196 = vmatprep.mubr.bf16.mxu0 0
        %2197 = vmatmul.mubr.bf16.gmra.mrb[0].mxu0 %v2156
        %v2198 = vpop.f32.mrb[0].mxu0
        %v2199 = vadd.f32 0.0, %v2198
        %v2200 = vpop.f32.mrb[0].mxu0
        %v2201 = vpop.f32.mrb[0].mxu0
        %v2202 = vadd.f32 0.0, %v2201
        %v2203 = vpop.f32.mrb[0].mxu0
        %2204 = vmatprep.mubr.bf16.mxu0 0
        %2205 = vmatmul.mubr.bf16.gmra.mrb[0].mxu0 %v2159
        %v2206 = vpop.f32.mrb[0].mxu0
        %v2207 = vadd.f32 0.0, %v2206
        %v2208 = vpop.f32.mrb[0].mxu0
        %v2209 = vpop.f32.mrb[0].mxu0
        %v2210 = vpop.f32.mrb[0].mxu0
        %2211 = vdwg.mxu0
        %v2213 = vsel %vm1899, %v2038, 0
        %v2216 = vsel %vm1899, %v2039, 0
        %v2219 = vsel %vm2046, %v1656, 0
        %2221 = vmatprep.subr.bf16.mxu0 0
        %2222 = vmatpush1.bf16.msra.mxu0 %v1654
        %2223 = vmatprep.subr.bf16.mxu0 0
        %2224 = vmatpush1.bf16.msra.mxu0 %v2219
        %2225 = vmatprep.subr.bf16.mxu0 0
        %2226 = vmatpush1.bf16.msra.mxu0 0
        %2227 = vmatprep.subr.bf16.mxu0 0
        %2228 = vmatpush1.bf16.msra.mxu0 0
        %2229 = vmatprep.subr.bf16.mxu0 0
        %2230 = vmatpush1.bf16.msra.mxu0 0
        %2231 = vmatprep.subr.bf16.mxu0 0
        %2232 = vmatpush1.bf16.msra.mxu0 0
        %2233 = vmatprep.subr.bf16.mxu0 0
        %2234 = vmatpush1.bf16.msra.mxu0 0
        %2235 = vmatprep.subr.bf16.mxu0 0
        %2236 = vmatpush1.bf16.msra.mxu0 0
        %2237 = vmatprep.subr.bf16.mxu0 0
        %2238 = vmatpush1.bf16.msra.mxu0 0
        %2239 = vmatprep.subr.bf16.mxu0 0
        %2240 = vmatpush1.bf16.msra.mxu0 0
        %2241 = vmatprep.subr.bf16.mxu0 0
        %2242 = vmatpush1.bf16.msra.mxu0 0
        %2243 = vmatprep.subr.bf16.mxu0 0
        %2244 = vmatpush1.bf16.msra.mxu0 0
        %2245 = vmatprep.subr.bf16.mxu0 0
        %2246 = vmatpush1.bf16.msra.mxu0 0
        %2247 = vmatprep.subr.bf16.mxu0 0
        %2248 = vmatpush1.bf16.msra.mxu0 0
        %2249 = vmatprep.subr.bf16.mxu0 0
        %2250 = vmatpush1.bf16.msra.mxu0 0
        %2251 = vmatprep.subr.bf16.mxu0 0
        %2252 = vmatpush1.bf16.msra.mxu0 0
        %2253 = vmatprep.mubr.bf16.mxu0 0
        %2254 = vmatmul.mubr.bf16.gmra.mrb[0].mxu0 %v2213
        %v2255 = vpop.f32.mrb[0].mxu0
        %v2256 = vadd.f32 0.0, %v2255
        %v2257 = vpop.f32.mrb[0].mxu0
        %v2258 = vpop.f32.mrb[0].mxu0
        %v2259 = vadd.f32 0.0, %v2258
        %v2260 = vpop.f32.mrb[0].mxu0
        %2261 = vmatprep.mubr.bf16.mxu0 0
        %2262 = vmatmul.mubr.bf16.gmra.mrb[0].mxu0 %v2216
        %v2263 = vpop.f32.mrb[0].mxu0
        %v2264 = vadd.f32 0.0, %v2263
        %v2265 = vpop.f32.mrb[0].mxu0
        %v2266 = vpop.f32.mrb[0].mxu0
        %v2267 = vpop.f32.mrb[0].mxu0
        %2268 = vdwg.mxu0
        %2272 = vrot.lane.b32.xlu0 %v2142, 8
        %v2273 = vpop.permute.xlu0 %2272
        %2274 = vrot.lane.b32.xlu0 %v2145, 8
        %v2275 = vpop.permute.xlu0 %2274
        %2276 = vrot.lane.b32.xlu0 %v2150, 8
        %v2277 = vpop.permute.xlu0 %2276
        %2284 = vrot.lane.b32.xlu0 %v2199, 16
        %v2285 = vpop.permute.xlu0 %2284
        %2286 = vrot.lane.b32.xlu0 %v2202, 16
        %v2287 = vpop.permute.xlu0 %2286
        %2288 = vrot.lane.b32.xlu0 %v2207, 16
        %v2289 = vpop.permute.xlu0 %2288
        %2296 = vrot.lane.b32.xlu0 %v2256, 24
        %v2297 = vpop.permute.xlu0 %2296
        %2298 = vrot.lane.b32.xlu0 %v2259, 24
        %v2299 = vpop.permute.xlu0 %2298
        %2300 = vrot.lane.b32.xlu0 %v2264, 24
        %v2301 = vpop.permute.xlu0 %2300
        %v2305 = vsel %vm1658, %v2085, %v2273
        %v2306 = vsel %vm1658, %v2088, %v2275
        %v2307 = vsel %vm1658, %v2093, %v2277
        %vm2308 = vcmask 130048
        %v2309 = vsel %vm2308, %v2305, %v2285
        %v2310 = vsel %vm2308, %v2306, %v2287
        %v2311 = vsel %vm2308, %v2307, %v2289
        %v2312 = vsel %vm1899, %v2309, %v2297
        %v2313 = vsel %vm1899, %v2310, %v2299
        %v2314 = vsel %vm1899, %v2311, %v2301
        %v2315 = vpack.c.bf16 %v2313, %v2312
        %v2316 = vpack.c.bf16 %v2314, %v2314
        %v2318 = vlaneseq
        %v2319 = vshrl.u32 %v2318, 7
        %v2320 = vsub.s32 0, %v2319
        %v2321 = vrot.slane %v1373, %v2320
        %v2327 = vunpack.c.l.b16 %v1369
        %v2328 = vunpack.c.l.b16 %v1370
        %v2329 = vunpack.c.l.b16 %v1371
        %v2330 = vunpack.c.l.b16 %v1372
        %v2331 = vpack.c.b16 %v2328, %v2327
        %v2332 = vpack.c.b16 %v2330, %v2329
        %v2336 = vsel %vm1420, %v2315, 0
        %v2339 = vsel %vm1420, %v2316, 0
        %2341 = vmatprep.subr.bf16.mxu0 0
        %2342 = vmatpush1.bf16.msra.mxu0 %v2331
        %2343 = vmatprep.subr.bf16.mxu0 0
        %2344 = vmatpush1.bf16.msra.mxu0 %v2332
        %2345 = vmatprep.subr.bf16.mxu0 0
        %2346 = vmatpush1.bf16.msra.mxu0 0
        %2347 = vmatprep.subr.bf16.mxu0 0
        %2348 = vmatpush1.bf16.msra.mxu0 0
        %2349 = vmatprep.subr.bf16.mxu0 0
        %2350 = vmatpush1.bf16.msra.mxu0 0
        %2351 = vmatprep.subr.bf16.mxu0 0
        %2352 = vmatpush1.bf16.msra.mxu0 0
        %2353 = vmatprep.subr.bf16.mxu0 0
        %2354 = vmatpush1.bf16.msra.mxu0 0
        %2355 = vmatprep.subr.bf16.mxu0 0
        %2356 = vmatpush1.bf16.msra.mxu0 0
        %2357 = vmatprep.subr.bf16.mxu0 0
        %2358 = vmatpush1.bf16.msra.mxu0 0
        %2359 = vmatprep.subr.bf16.mxu0 0
        %2360 = vmatpush1.bf16.msra.mxu0 0
        %2361 = vmatprep.subr.bf16.mxu0 0
        %2362 = vmatpush1.bf16.msra.mxu0 0
        %2363 = vmatprep.subr.bf16.mxu0 0
        %2364 = vmatpush1.bf16.msra.mxu0 0
        %2365 = vmatprep.subr.bf16.mxu0 0
        %2366 = vmatpush1.bf16.msra.mxu0 0
        %2367 = vmatprep.subr.bf16.mxu0 0
        %2368 = vmatpush1.bf16.msra.mxu0 0
        %2369 = vmatprep.subr.bf16.mxu0 0
        %2370 = vmatpush1.bf16.msra.mxu0 0
        %2371 = vmatprep.subr.bf16.mxu0 0
        %2372 = vmatpush1.bf16.msra.mxu0 0
        %2373 = vmatprep.mubr.bf16.mxu0 0
        %2374 = vmatmul.mubr.bf16.gmra.mrb[0].mxu0 %v2336
        %v2375 = vpop.f32.mrb[0].mxu0
        %v2376 = vadd.f32 %v2321, %v2375
        %v2377 = vpop.f32.mrb[0].mxu0
        %v2378 = vpop.f32.mrb[0].mxu0
        %v2379 = vadd.f32 %v2321, %v2378
        %v2380 = vpop.f32.mrb[0].mxu0
        %2381 = vmatprep.mubr.bf16.mxu0 0
        %2382 = vmatmul.mubr.bf16.gmra.mrb[0].mxu0 %v2339
        %v2383 = vpop.f32.mrb[0].mxu0
        %v2384 = vadd.f32 %v2321, %v2383
        %v2385 = vpop.f32.mrb[0].mxu0
        %v2386 = vpop.f32.mrb[0].mxu0
        %v2387 = vpop.f32.mrb[0].mxu0
        %2388 = vdwg.mxu0
        %v2389 = vadd.f32 %v1337, %v2376
        %v2390 = vadd.f32 %v1340, %v2379
        %v2391 = vadd.f32 %v1345, %v2384
        %v2392 = vsel %vm1420, %v2389, 0.0
        %2393 = vadd.xlane.f32.xlu0 %v2392
        %v2394 = vpop.xlane.xlu0 %2393
        %v2395 = vsel %vm1420, %v2390, 0.0
        %2396 = vadd.xlane.f32.xlu0 %v2395
        %v2397 = vpop.xlane.xlu0 %2396
        %v2398 = vsel %vm1420, %v2391, 0.0
        %2399 = vadd.xlane.f32.xlu0 %v2398
        %v2400 = vpop.xlane.xlu0 %2399
        %v2401 = vrcp.pop 32.0
        %v2402 = vmul.f32 %v2394, %v2401
        %v2403 = vmul.f32 %v2397, %v2401
        %v2404 = vmul.f32 %v2400, %v2401
        %v2405 = vsub.f32 %v2389, %v2402
        %v2406 = vsub.f32 %v2390, %v2403
        %v2407 = vsub.f32 %v2391, %v2404
        %v2408 = vmul.f32 %v2405, %v2405
        %v2409 = vmul.f32 %v2406, %v2406
        %v2410 = vmul.f32 %v2407, %v2407
        %v2411 = vsel %vm1420, %v2408, 0.0
        %2412 = vadd.xlane.f32.xlu0 %v2411
        %v2413 = vpop.xlane.xlu0 %2412
        %v2414 = vsel %vm1420, %v2409, 0.0
        %2415 = vadd.xlane.f32.xlu0 %v2414
        %v2416 = vpop.xlane.xlu0 %2415
        %v2417 = vsel %vm1420, %v2410, 0.0
        %2418 = vadd.xlane.f32.xlu0 %v2417
        %v2419 = vpop.xlane.xlu0 %2418
        %v2420 = vmul.f32 %v2413, %v2401
        %v2421 = vmul.f32 %v2416, %v2401
        %v2422 = vmul.f32 %v2419, %v2401
        %v2423 = vadd.f32 %v2420, 1e-05
        %v2424 = vadd.f32 %v2421, 1e-05
        %v2425 = vadd.f32 %v2422, 1e-05
        %v2426 = vrsqrt.pop %v2423
        %v2427 = vrsqrt.pop %v2424
        %v2428 = vrsqrt.pop %v2425
        %v2429 = vmul.f32 %v2405, %v2426
        %v2430 = vmul.f32 %v2406, %v2427
        %v2431 = vmul.f32 %v2407, %v2428
        %v2433 = vlaneseq
        %v2434 = vshrl.u32 %v2433, 7
        %v2435 = vsub.s32 0, %v2434
        %v2436 = vrot.slane %v1374, %v2435
        %v2438 = vmul.f32 %v2429, %v2436
        %v2439 = vmul.f32 %v2430, %v2436
        %v2440 = vmul.f32 %v2431, %v2436
        %v2442 = vlaneseq
        %v2443 = vshrl.u32 %v2442, 7
        %v2444 = vsub.s32 0, %v2443
        %v2445 = vrot.slane %v1375, %v2444
        %v2447 = vadd.f32 %v2438, %v2445
        %v2448 = vadd.f32 %v2439, %v2445
        %v2449 = vadd.f32 %v2440, %v2445
        %v2450 = vpack.c.bf16 %v2448, %v2447
        %v2451 = vpack.c.bf16 %v2449, %v2449
        %v2453 = vlaneseq
        %v2454 = vshrl.u32 %v2453, 7
        %v2455 = vsub.s32 0, %v2454
        %v2456 = vrot.slane %v1382, %v2455
        %v2462 = vunpack.c.l.b16 %v1378
        %v2463 = vunpack.c.l.b16 %v1379
        %v2464 = vunpack.c.l.b16 %v1380
        %v2465 = vunpack.c.l.b16 %v1381
        %v2466 = vpack.c.b16 %v2463, %v2462
        %v2467 = vpack.c.b16 %v2465, %v2464
        %v2471 = vsel %vm1420, %v2450, 0
        %v2474 = vsel %vm1420, %v2451, 0
        %2476 = vmatprep.subr.bf16.mxu0 0
        %2477 = vmatpush1.bf16.msra.mxu0 %v2466
        %2478 = vmatprep.subr.bf16.mxu0 0
        %2479 = vmatpush1.bf16.msra.mxu0 %v2467
        %2480 = vmatprep.subr.bf16.mxu0 0
        %2481 = vmatpush1.bf16.msra.mxu0 0
        %2482 = vmatprep.subr.bf16.mxu0 0
        %2483 = vmatpush1.bf16.msra.mxu0 0
        %2484 = vmatprep.subr.bf16.mxu0 0
        %2485 = vmatpush1.bf16.msra.mxu0 0
        %2486 = vmatprep.subr.bf16.mxu0 0
        %2487 = vmatpush1.bf16.msra.mxu0 0
        %2488 = vmatprep.subr.bf16.mxu0 0
        %2489 = vmatpush1.bf16.msra.mxu0 0
        %2490 = vmatprep.subr.bf16.mxu0 0
        %2491 = vmatpush1.bf16.msra.mxu0 0
        %2492 = vmatprep.subr.bf16.mxu0 0
        %2493 = vmatpush1.bf16.msra.mxu0 0
        %2494 = vmatprep.subr.bf16.mxu0 0
        %2495 = vmatpush1.bf16.msra.mxu0 0
        %2496 = vmatprep.subr.bf16.mxu0 0
        %2497 = vmatpush1.bf16.msra.mxu0 0
        %2498 = vmatprep.subr.bf16.mxu0 0
        %2499 = vmatpush1.bf16.msra.mxu0 0
        %2500 = vmatprep.subr.bf16.mxu0 0
        %2501 = vmatpush1.bf16.msra.mxu0 0
        %2502 = vmatprep.subr.bf16.mxu0 0
        %2503 = vmatpush1.bf16.msra.mxu0 0
        %2504 = vmatprep.subr.bf16.mxu0 0
        %2505 = vmatpush1.bf16.msra.mxu0 0
        %2506 = vmatprep.subr.bf16.mxu0 0
        %2507 = vmatpush1.bf16.msra.mxu0 0
        %2508 = vmatprep.mubr.bf16.mxu0 0
        %2509 = vmatmul.mubr.bf16.gmra.mrb[0].mxu0 %v2471
        %v2510 = vpop.f32.mrb[0].mxu0
        %v2511 = vadd.f32 %v2456, %v2510
        %v2512 = vpop.f32.mrb[0].mxu0
        %v2513 = vpop.f32.mrb[0].mxu0
        %v2514 = vadd.f32 %v2456, %v2513
        %v2515 = vpop.f32.mrb[0].mxu0
        %2516 = vmatprep.mubr.bf16.mxu0 0
        %2517 = vmatmul.mubr.bf16.gmra.mrb[0].mxu0 %v2474
        %v2518 = vpop.f32.mrb[0].mxu0
        %v2519 = vadd.f32 %v2456, %v2518
        %v2520 = vpop.f32.mrb[0].mxu0
        %v2521 = vpop.f32.mrb[0].mxu0
        %v2522 = vpop.f32.mrb[0].mxu0
        %2523 = vdwg.mxu0
        %v2524 = vmax.f32 %v2511, 0.0
        %v2525 = vmax.f32 %v2514, 0.0
        %v2526 = vmax.f32 %v2519, 0.0
        %v2527 = vpack.c.bf16 %v2525, %v2524
        %v2528 = vpack.c.bf16 %v2526, %v2526
        %v2530 = vlaneseq
        %v2531 = vshrl.u32 %v2530, 7
        %v2532 = vsub.s32 0, %v2531
        %v2533 = vrot.slane %v1399, %v2532
        %v2551 = vunpack.c.l.b16 %v1383
        %v2552 = vunpack.c.l.b16 %v1384
        %v2553 = vunpack.c.l.b16 %v1385
        %v2554 = vunpack.c.l.b16 %v1386
        %v2555 = vunpack.c.l.b16 %v1387
        %v2556 = vunpack.c.l.b16 %v1388
        %v2557 = vunpack.c.l.b16 %v1389
        %v2558 = vunpack.c.l.b16 %v1390
        %v2559 = vunpack.c.l.b16 %v1391
        %v2560 = vunpack.c.l.b16 %v1392
        %v2561 = vunpack.c.l.b16 %v1393
        %v2562 = vunpack.c.l.b16 %v1394
        %v2563 = vunpack.c.l.b16 %v1395
        %v2564 = vunpack.c.l.b16 %v1396
        %v2565 = vunpack.c.l.b16 %v1397
        %v2566 = vunpack.c.l.b16 %v1398
        %v2567 = vpack.c.b16 %v2552, %v2551
        %v2568 = vpack.c.b16 %v2554, %v2553
        %v2569 = vpack.c.b16 %v2556, %v2555
        %v2570 = vpack.c.b16 %v2558, %v2557
        %v2571 = vpack.c.b16 %v2560, %v2559
        %v2572 = vpack.c.b16 %v2562, %v2561
        %v2573 = vpack.c.b16 %v2564, %v2563
        %v2574 = vpack.c.b16 %v2566, %v2565
        %2583 = vmatprep.subr.bf16.mxu0 0
        %2584 = vmatpush1.bf16.msra.mxu0 %v2567
        %2585 = vmatprep.subr.bf16.mxu0 0
        %2586 = vmatpush1.bf16.msra.mxu0 %v2568
        %2587 = vmatprep.subr.bf16.mxu0 0
        %2588 = vmatpush1.bf16.msra.mxu0 %v2569
        %2589 = vmatprep.subr.bf16.mxu0 0
        %2590 = vmatpush1.bf16.msra.mxu0 %v2570
        %2591 = vmatprep.subr.bf16.mxu0 0
        %2592 = vmatpush1.bf16.msra.mxu0 %v2571
        %2593 = vmatprep.subr.bf16.mxu0 0
        %2594 = vmatpush1.bf16.msra.mxu0 %v2572
        %2595 = vmatprep.subr.bf16.mxu0 0
        %2596 = vmatpush1.bf16.msra.mxu0 %v2573
        %2597 = vmatprep.subr.bf16.mxu0 0
        %2598 = vmatpush1.bf16.msra.mxu0 %v2574
        %2599 = vmatprep.subr.bf16.mxu0 0
        %2600 = vmatpush1.bf16.msra.mxu0 0
        %2601 = vmatprep.subr.bf16.mxu0 0
        %2602 = vmatpush1.bf16.msra.mxu0 0
        %2603 = vmatprep.subr.bf16.mxu0 0
        %2604 = vmatpush1.bf16.msra.mxu0 0
        %2605 = vmatprep.subr.bf16.mxu0 0
        %2606 = vmatpush1.bf16.msra.mxu0 0
        %2607 = vmatprep.subr.bf16.mxu0 0
        %2608 = vmatpush1.bf16.msra.mxu0 0
        %2609 = vmatprep.subr.bf16.mxu0 0
        %2610 = vmatpush1.bf16.msra.mxu0 0
        %2611 = vmatprep.subr.bf16.mxu0 0
        %2612 = vmatpush1.bf16.msra.mxu0 0
        %2613 = vmatprep.subr.bf16.mxu0 0
        %2614 = vmatpush1.bf16.msra.mxu0 0
        %2615 = vmatprep.mubr.bf16.mxu0 0
        %2616 = vmatmul.mubr.bf16.gmra.mrb[0].mxu0 %v2527
        %v2617 = vpop.f32.mrb[0].mxu0
        %v2618 = vadd.f32 %v2533, %v2617
        %v2619 = vpop.f32.mrb[0].mxu0
        %v2620 = vpop.f32.mrb[0].mxu0
        %v2621 = vadd.f32 %v2533, %v2620
        %v2622 = vpop.f32.mrb[0].mxu0
        %2623 = vmatprep.mubr.bf16.mxu0 0
        %2624 = vmatmul.mubr.bf16.gmra.mrb[0].mxu0 %v2528
        %v2625 = vpop.f32.mrb[0].mxu0
        %v2626 = vadd.f32 %v2533, %v2625
        %v2627 = vpop.f32.mrb[0].mxu0
        %v2628 = vpop.f32.mrb[0].mxu0
        %v2629 = vpop.f32.mrb[0].mxu0
        %2630 = vdwg.mxu0
        %v2631 = vadd.f32 %v2447, %v2618
        %v2632 = vadd.f32 %v2448, %v2621
        %v2633 = vadd.f32 %v2449, %v2626
        %v2634 = vsel %vm1420, %v2631, 0.0
        %2635 = vadd.xlane.f32.xlu0 %v2634
        %v2636 = vpop.xlane.xlu0 %2635
        %v2637 = vsel %vm1420, %v2632, 0.0
        %2638 = vadd.xlane.f32.xlu0 %v2637
        %v2639 = vpop.xlane.xlu0 %2638
        %v2640 = vsel %vm1420, %v2633, 0.0
        %2641 = vadd.xlane.f32.xlu0 %v2640
        %v2642 = vpop.xlane.xlu0 %2641
        %v2643 = vmul.f32 %v2636, %v2401
        %v2644 = vmul.f32 %v2639, %v2401
        %v2645 = vmul.f32 %v2642, %v2401
        %v2646 = vsub.f32 %v2631, %v2643
        %v2647 = vsub.f32 %v2632, %v2644
        %v2648 = vsub.f32 %v2633, %v2645
        %v2649 = vmul.f32 %v2646, %v2646
        %v2650 = vmul.f32 %v2647, %v2647
        %v2651 = vmul.f32 %v2648, %v2648
        %v2652 = vsel %vm1420, %v2649, 0.0
        %2653 = vadd.xlane.f32.xlu0 %v2652
        %v2654 = vpop.xlane.xlu0 %2653
        %v2655 = vsel %vm1420, %v2650, 0.0
        %2656 = vadd.xlane.f32.xlu0 %v2655
        %v2657 = vpop.xlane.xlu0 %2656
        %v2658 = vsel %vm1420, %v2651, 0.0
        %2659 = vadd.xlane.f32.xlu0 %v2658
        %v2660 = vpop.xlane.xlu0 %2659
        %v2661 = vmul.f32 %v2654, %v2401
        %v2662 = vmul.f32 %v2657, %v2401
        %v2663 = vmul.f32 %v2660, %v2401
        %v2664 = vadd.f32 %v2661, 1e-05
        %v2665 = vadd.f32 %v2662, 1e-05
        %v2666 = vadd.f32 %v2663, 1e-05
        %v2667 = vrsqrt.pop %v2664
        %v2668 = vrsqrt.pop %v2665
        %v2669 = vrsqrt.pop %v2666
        %v2670 = vmul.f32 %v2646, %v2667
        %v2671 = vmul.f32 %v2647, %v2668
        %v2672 = vmul.f32 %v2648, %v2669
        %v2674 = vlaneseq
        %v2675 = vshrl.u32 %v2674, 7
        %v2676 = vsub.s32 0, %v2675
        %v2677 = vrot.slane %v1376, %v2676
        %v2679 = vmul.f32 %v2670, %v2677
        %v2680 = vmul.f32 %v2671, %v2677
        %v2681 = vmul.f32 %v2672, %v2677
        %v2683 = vlaneseq
        %v2684 = vshrl.u32 %v2683, 7
        %v2685 = vsub.s32 0, %v2684
        %v2686 = vrot.slane %v1377, %v2685
        %v2688 = vadd.f32 %v2679, %v2686
        %v2689 = vadd.f32 %v2680, %v2686
        %v2690 = vadd.f32 %v2681, %v2686
        %v2691 = vld [vmem:[%s39] sm:$0xf]
        %v2692 = vld [vmem:[%s39 + $0x4] sm:$0xf]
        %v2693 = vld [vmem:[%s39 + $0x8] sm:$0xf]
        %v2694 = vld [vmem:[%s39 + $0xc] sm:$0xf]
        %v2695 = vld [vmem:[%s41] sm:$0x1]
        %v2696 = vld [vmem:[%s43] sm:$0xf]
        %v2697 = vld [vmem:[%s43 + $0x4] sm:$0xf]
        %v2698 = vld [vmem:[%s43 + $0x8] sm:$0xf]
        %v2699 = vld [vmem:[%s43 + $0xc] sm:$0xf]
        %v2700 = vld [vmem:[%s45] sm:$0x1]
        %v2701 = vld [vmem:[%s47] sm:$0xf]
        %v2702 = vld [vmem:[%s47 + $0x4] sm:$0xf]
        %v2703 = vld [vmem:[%s47 + $0x8] sm:$0xf]
        %v2704 = vld [vmem:[%s47 + $0xc] sm:$0xf]
        %v2705 = vld [vmem:[%s49] sm:$0x1]
        %v2706 = vld [vmem:[%s51] sm:$0xf]
        %v2707 = vld [vmem:[%s51 + $0x4] sm:$0xf]
        %v2708 = vld [vmem:[%s51 + $0x8] sm:$0xf]
        %v2709 = vld [vmem:[%s51 + $0xc] sm:$0xf]
        %v2710 = vld [vmem:[%s53] sm:$0x1]
        %v2711 = vld [vmem:[%s55] sm:$0x1]
        %v2712 = vld [vmem:[%s57] sm:$0x1]
        %v2713 = vld [vmem:[%s59] sm:$0x1]
        %v2714 = vld [vmem:[%s61] sm:$0x1]
        %v2715 = vld [vmem:[%s63] sm:$0xf]
        %v2716 = vld [vmem:[%s63 + $0x4] sm:$0xf]
        %v2717 = vld [vmem:[%s63 + $0x8] sm:$0xf]
        %v2718 = vld [vmem:[%s63 + $0xc] sm:$0xf]
        %v2719 = vld [vmem:[%s65] sm:$0x1]
        %v2720 = vld [vmem:[%s67] sm:$0xf]
        %v2721 = vld [vmem:[%s67 + $0x4] sm:$0xf]
        %v2722 = vld [vmem:[%s67 + $0x8] sm:$0xf]
        %v2723 = vld [vmem:[%s67 + $0xc] sm:$0xf]
        %v2724 = vld [vmem:[%s67 + $0x10] sm:$0xf]
        %v2725 = vld [vmem:[%s67 + $0x14] sm:$0xf]
        %v2726 = vld [vmem:[%s67 + $0x18] sm:$0xf]
        %v2727 = vld [vmem:[%s67 + $0x1c] sm:$0xf]
        %v2728 = vld [vmem:[%s67 + $0x20] sm:$0xf]
        %v2729 = vld [vmem:[%s67 + $0x24] sm:$0xf]
        %v2730 = vld [vmem:[%s67 + $0x28] sm:$0xf]
        %v2731 = vld [vmem:[%s67 + $0x2c] sm:$0xf]
        %v2732 = vld [vmem:[%s67 + $0x30] sm:$0xf]
        %v2733 = vld [vmem:[%s67 + $0x34] sm:$0xf]
        %v2734 = vld [vmem:[%s67 + $0x38] sm:$0xf]
        %v2735 = vld [vmem:[%s67 + $0x3c] sm:$0xf]
        %v2736 = vld [vmem:[%s69] sm:$0x1]
        %v2737 = vpack.c.bf16 %v2689, %v2688
        %v2738 = vpack.c.bf16 %v2690, %v2690
        %v2740 = vlaneseq
        %v2741 = vshrl.u32 %v2740, 7
        %v2742 = vsub.s32 0, %v2741
        %v2743 = vrot.slane %v2695, %v2742
        %v2749 = vunpack.c.l.b16 %v2691
        %v2750 = vunpack.c.l.b16 %v2692
        %v2751 = vunpack.c.l.b16 %v2693
        %v2752 = vunpack.c.l.b16 %v2694
        %v2753 = vpack.c.b16 %v2750, %v2749
        %v2754 = vpack.c.b16 %v2752, %v2751
        %v2758 = vsel %vm1420, %v2737, 0
        %v2761 = vsel %vm1420, %v2738, 0
        %2763 = vmatprep.subr.bf16.mxu0 0
        %2764 = vmatpush1.bf16.msra.mxu0 %v2753
        %2765 = vmatprep.subr.bf16.mxu0 0
        %2766 = vmatpush1.bf16.msra.mxu0 %v2754
        %2767 = vmatprep.subr.bf16.mxu0 0
        %2768 = vmatpush1.bf16.msra.mxu0 0
        %2769 = vmatprep.subr.bf16.mxu0 0
        %2770 = vmatpush1.bf16.msra.mxu0 0
        %2771 = vmatprep.subr.bf16.mxu0 0
        %2772 = vmatpush1.bf16.msra.mxu0 0
        %2773 = vmatprep.subr.bf16.mxu0 0
        %2774 = vmatpush1.bf16.msra.mxu0 0
        %2775 = vmatprep.subr.bf16.mxu0 0
        %2776 = vmatpush1.bf16.msra.mxu0 0
        %2777 = vmatprep.subr.bf16.mxu0 0
        %2778 = vmatpush1.bf16.msra.mxu0 0
        %2779 = vmatprep.subr.bf16.mxu0 0
        %2780 = vmatpush1.bf16.msra.mxu0 0
        %2781 = vmatprep.subr.bf16.mxu0 0
        %2782 = vmatpush1.bf16.msra.mxu0 0
        %2783 = vmatprep.subr.bf16.mxu0 0
        %2784 = vmatpush1.bf16.msra.mxu0 0
        %2785 = vmatprep.subr.bf16.mxu0 0
        %2786 = vmatpush1.bf16.msra.mxu0 0
        %2787 = vmatprep.subr.bf16.mxu0 0
        %2788 = vmatpush1.bf16.msra.mxu0 0
        %2789 = vmatprep.subr.bf16.mxu0 0
        %2790 = vmatpush1.bf16.msra.mxu0 0
        %2791 = vmatprep.subr.bf16.mxu0 0
        %2792 = vmatpush1.bf16.msra.mxu0 0
        %2793 = vmatprep.subr.bf16.mxu0 0
        %2794 = vmatpush1.bf16.msra.mxu0 0
        %2795 = vmatprep.mubr.bf16.mxu0 0
        %2796 = vmatmul.mubr.bf16.gmra.mrb[0].mxu0 %v2758
        %v2797 = vpop.f32.mrb[0].mxu0
        %v2798 = vadd.f32 %v2743, %v2797
        %v2799 = vpop.f32.mrb[0].mxu0
        %v2800 = vpop.f32.mrb[0].mxu0
        %v2801 = vadd.f32 %v2743, %v2800
        %v2802 = vpop.f32.mrb[0].mxu0
        %2803 = vmatprep.mubr.bf16.mxu0 0
        %2804 = vmatmul.mubr.bf16.gmra.mrb[0].mxu0 %v2761
        %v2805 = vpop.f32.mrb[0].mxu0
        %v2806 = vadd.f32 %v2743, %v2805
        %v2807 = vpop.f32.mrb[0].mxu0
        %v2808 = vpop.f32.mrb[0].mxu0
        %v2809 = vpop.f32.mrb[0].mxu0
        %2810 = vdwg.mxu0
        %v2811 = vpack.c.bf16 %v2801, %v2798
        %v2812 = vpack.c.bf16 %v2806, %v2806
        %v2814 = vlaneseq
        %v2815 = vshrl.u32 %v2814, 7
        %v2816 = vsub.s32 0, %v2815
        %v2817 = vrot.slane %v2700, %v2816
        %v2823 = vunpack.c.l.b16 %v2696
        %v2824 = vunpack.c.l.b16 %v2697
        %v2825 = vunpack.c.l.b16 %v2698
        %v2826 = vunpack.c.l.b16 %v2699
        %v2827 = vpack.c.b16 %v2824, %v2823
        %v2828 = vpack.c.b16 %v2826, %v2825
        %2831 = vmatprep.subr.bf16.mxu0 0
        %2832 = vmatpush1.bf16.msra.mxu0 %v2827
        %2833 = vmatprep.subr.bf16.mxu0 0
        %2834 = vmatpush1.bf16.msra.mxu0 %v2828
        %2835 = vmatprep.subr.bf16.mxu0 0
        %2836 = vmatpush1.bf16.msra.mxu0 0
        %2837 = vmatprep.subr.bf16.mxu0 0
        %2838 = vmatpush1.bf16.msra.mxu0 0
        %2839 = vmatprep.subr.bf16.mxu0 0
        %2840 = vmatpush1.bf16.msra.mxu0 0
        %2841 = vmatprep.subr.bf16.mxu0 0
        %2842 = vmatpush1.bf16.msra.mxu0 0
        %2843 = vmatprep.subr.bf16.mxu0 0
        %2844 = vmatpush1.bf16.msra.mxu0 0
        %2845 = vmatprep.subr.bf16.mxu0 0
        %2846 = vmatpush1.bf16.msra.mxu0 0
        %2847 = vmatprep.subr.bf16.mxu0 0
        %2848 = vmatpush1.bf16.msra.mxu0 0
        %2849 = vmatprep.subr.bf16.mxu0 0
        %2850 = vmatpush1.bf16.msra.mxu0 0
        %2851 = vmatprep.subr.bf16.mxu0 0
        %2852 = vmatpush1.bf16.msra.mxu0 0
        %2853 = vmatprep.subr.bf16.mxu0 0
        %2854 = vmatpush1.bf16.msra.mxu0 0
        %2855 = vmatprep.subr.bf16.mxu0 0
        %2856 = vmatpush1.bf16.msra.mxu0 0
        %2857 = vmatprep.subr.bf16.mxu0 0
        %2858 = vmatpush1.bf16.msra.mxu0 0
        %2859 = vmatprep.subr.bf16.mxu0 0
        %2860 = vmatpush1.bf16.msra.mxu0 0
        %2861 = vmatprep.subr.bf16.mxu0 0
        %2862 = vmatpush1.bf16.msra.mxu0 0
        %2863 = vmatprep.mubr.bf16.mxu0 0
        %2864 = vmatmul.mubr.bf16.gmra.mrb[0].mxu0 %v2758
        %v2865 = vpop.f32.mrb[0].mxu0
        %v2866 = vadd.f32 %v2817, %v2865
        %v2867 = vpop.f32.mrb[0].mxu0
        %v2868 = vpop.f32.mrb[0].mxu0
        %v2869 = vadd.f32 %v2817, %v2868
        %v2870 = vpop.f32.mrb[0].mxu0
        %2871 = vmatprep.mubr.bf16.mxu0 0
        %2872 = vmatmul.mubr.bf16.gmra.mrb[0].mxu0 %v2761
        %v2873 = vpop.f32.mrb[0].mxu0
        %v2874 = vadd.f32 %v2817, %v2873
        %v2875 = vpop.f32.mrb[0].mxu0
        %v2876 = vpop.f32.mrb[0].mxu0
        %v2877 = vpop.f32.mrb[0].mxu0
        %2878 = vdwg.mxu0
        %v2879 = vpack.c.bf16 %v2869, %v2866
        %v2880 = vpack.c.bf16 %v2874, %v2874
        %v2882 = vlaneseq
        %v2883 = vshrl.u32 %v2882, 7
        %v2884 = vsub.s32 0, %v2883
        %v2885 = vrot.slane %v2705, %v2884
        %v2891 = vunpack.c.l.b16 %v2701
        %v2892 = vunpack.c.l.b16 %v2702
        %v2893 = vunpack.c.l.b16 %v2703
        %v2894 = vunpack.c.l.b16 %v2704
        %v2895 = vpack.c.b16 %v2892, %v2891
        %v2896 = vpack.c.b16 %v2894, %v2893
        %2899 = vmatprep.subr.bf16.mxu0 0
        %2900 = vmatpush1.bf16.msra.mxu0 %v2895
        %2901 = vmatprep.subr.bf16.mxu0 0
        %2902 = vmatpush1.bf16.msra.mxu0 %v2896
        %2903 = vmatprep.subr.bf16.mxu0 0
        %2904 = vmatpush1.bf16.msra.mxu0 0
        %2905 = vmatprep.subr.bf16.mxu0 0
        %2906 = vmatpush1.bf16.msra.mxu0 0
        %2907 = vmatprep.subr.bf16.mxu0 0
        %2908 = vmatpush1.bf16.msra.mxu0 0
        %2909 = vmatprep.subr.bf16.mxu0 0
        %2910 = vmatpush1.bf16.msra.mxu0 0
        %2911 = vmatprep.subr.bf16.mxu0 0
        %2912 = vmatpush1.bf16.msra.mxu0 0
        %2913 = vmatprep.subr.bf16.mxu0 0
        %2914 = vmatpush1.bf16.msra.mxu0 0
        %2915 = vmatprep.subr.bf16.mxu0 0
        %2916 = vmatpush1.bf16.msra.mxu0 0
        %2917 = vmatprep.subr.bf16.mxu0 0
        %2918 = vmatpush1.bf16.msra.mxu0 0
        %2919 = vmatprep.subr.bf16.mxu0 0
        %2920 = vmatpush1.bf16.msra.mxu0 0
        %2921 = vmatprep.subr.bf16.mxu0 0
        %2922 = vmatpush1.bf16.msra.mxu0 0
        %2923 = vmatprep.subr.bf16.mxu0 0
        %2924 = vmatpush1.bf16.msra.mxu0 0
        %2925 = vmatprep.subr.bf16.mxu0 0
        %2926 = vmatpush1.bf16.msra.mxu0 0
        %2927 = vmatprep.subr.bf16.mxu0 0
        %2928 = vmatpush1.bf16.msra.mxu0 0
        %2929 = vmatprep.subr.bf16.mxu0 0
        %2930 = vmatpush1.bf16.msra.mxu0 0
        %2931 = vmatprep.mubr.bf16.mxu0 0
        %2932 = vmatmul.mubr.bf16.gmra.mrb[0].mxu0 %v2758
        %v2933 = vpop.f32.mrb[0].mxu0
        %v2934 = vadd.f32 %v2885, %v2933
        %v2935 = vpop.f32.mrb[0].mxu0
        %v2936 = vpop.f32.mrb[0].mxu0
        %v2937 = vadd.f32 %v2885, %v2936
        %v2938 = vpop.f32.mrb[0].mxu0
        %2939 = vmatprep.mubr.bf16.mxu0 0
        %2940 = vmatmul.mubr.bf16.gmra.mrb[0].mxu0 %v2761
        %v2941 = vpop.f32.mrb[0].mxu0
        %v2942 = vadd.f32 %v2885, %v2941
        %v2943 = vpop.f32.mrb[0].mxu0
        %v2944 = vpop.f32.mrb[0].mxu0
        %v2945 = vpop.f32.mrb[0].mxu0
        %2946 = vdwg.mxu0
        %v2947 = vpack.c.bf16 %v2937, %v2934
        %v2948 = vpack.c.bf16 %v2942, %v2942
        %2951 = vrot.lane.b32.xlu0 %v2811, 120
        %v2952 = vpop.permute.xlu0 %2951
        %2953 = vrot.lane.b32.xlu0 %v2812, 120
        %v2954 = vpop.permute.xlu0 %2953
        %2955 = vrot.lane.b32.xlu0 %v2811, 112
        %v2956 = vpop.permute.xlu0 %2955
        %2957 = vrot.lane.b32.xlu0 %v2812, 112
        %v2958 = vpop.permute.xlu0 %2957
        %2959 = vrot.lane.b32.xlu0 %v2811, 104
        %v2960 = vpop.permute.xlu0 %2959
        %2961 = vrot.lane.b32.xlu0 %v2812, 104
        %v2962 = vpop.permute.xlu0 %2961
        %2965 = vrot.lane.b32.xlu0 %v2879, 120
        %v2966 = vpop.permute.xlu0 %2965
        %2967 = vrot.lane.b32.xlu0 %v2880, 120
        %v2968 = vpop.permute.xlu0 %2967
        %2969 = vrot.lane.b32.xlu0 %v2879, 112
        %v2970 = vpop.permute.xlu0 %2969
        %2971 = vrot.lane.b32.xlu0 %v2880, 112
        %v2972 = vpop.permute.xlu0 %2971
        %2973 = vrot.lane.b32.xlu0 %v2879, 104
        %v2974 = vpop.permute.xlu0 %2973
        %2975 = vrot.lane.b32.xlu0 %v2880, 104
        %v2976 = vpop.permute.xlu0 %2975
        %2979 = vrot.lane.b32.xlu0 %v2947, 120
        %v2980 = vpop.permute.xlu0 %2979
        %2981 = vrot.lane.b32.xlu0 %v2948, 120
        %v2982 = vpop.permute.xlu0 %2981
        %2984 = vrot.lane.b32.xlu0 %v2947, 112
        %v2985 = vpop.permute.xlu0 %2984
        %2986 = vrot.lane.b32.xlu0 %v2948, 112
        %v2987 = vpop.permute.xlu0 %2986
        %2989 = vrot.lane.b32.xlu0 %v2947, 104
        %v2990 = vpop.permute.xlu0 %2989
        %2991 = vrot.lane.b32.xlu0 %v2948, 104
        %v2992 = vpop.permute.xlu0 %2991
        %v2995 = vsel %vm1658, %v2811, 0
        %v2998 = vsel %vm1658, %v2812, 0
        %v3001 = vsel %vm1658, %v2879, 0
        %v3004 = vsel %vm1658, %v2880, 0
        %3006 = vmatprep.subr.bf16.mxu0 0
        %3007 = vmatpush1.bf16.xpose.msra.mxu0 %v3001
        %3008 = vmatprep.subr.bf16.mxu0 0
        %3009 = vmatpush1.bf16.xpose.msra.mxu0 %v3004
        %3010 = vmatprep.subr.bf16.mxu0 0
        %3011 = vmatpush1.bf16.xpose.msra.mxu0 0
        %3012 = vmatprep.subr.bf16.mxu0 0
        %3013 = vmatpush1.bf16.xpose.msra.mxu0 0
        %3014 = vmatprep.subr.bf16.mxu0 0
        %3015 = vmatpush1.bf16.xpose.msra.mxu0 0
        %3016 = vmatprep.subr.bf16.mxu0 0
        %3017 = vmatpush1.bf16.xpose.msra.mxu0 0
        %3018 = vmatprep.subr.bf16.mxu0 0
        %3019 = vmatpush1.bf16.xpose.msra.mxu0 0
        %3020 = vmatprep.subr.bf16.mxu0 0
        %3021 = vmatpush1.bf16.xpose.msra.mxu0 0
        %3022 = vmatprep.subr.bf16.mxu0 0
        %3023 = vmatpush1.bf16.xpose.msra.mxu0 0
        %3024 = vmatprep.subr.bf16.mxu0 0
        %3025 = vmatpush1.bf16.xpose.msra.mxu0 0
        %3026 = vmatprep.subr.bf16.mxu0 0
        %3027 = vmatpush1.bf16.xpose.msra.mxu0 0
        %3028 = vmatprep.subr.bf16.mxu0 0
        %3029 = vmatpush1.bf16.xpose.msra.mxu0 0
        %3030 = vmatprep.subr.bf16.mxu0 0
        %3031 = vmatpush1.bf16.xpose.msra.mxu0 0
        %3032 = vmatprep.subr.bf16.mxu0 0
        %3033 = vmatpush1.bf16.xpose.msra.mxu0 0
        %3034 = vmatprep.subr.bf16.mxu0 0
        %3035 = vmatpush1.bf16.xpose.msra.mxu0 0
        %3036 = vmatprep.subr.bf16.mxu0 0
        %3037 = vmatpush1.bf16.xpose.msra.mxu0 0
        %3038 = vmatprep.mubr.bf16.mxu0 0
        %3039 = vmatmul.mubr.bf16.gmra.mrb[0].mxu0 %v2995
        %v3040 = vpop.f32.mrb[0].mxu0
        %v3041 = vadd.f32 %v1353, %v3040
        %v3042 = vpop.f32.mrb[0].mxu0
        %v3043 = vpop.f32.mrb[0].mxu0
        %v3044 = vadd.f32 %v1353, %v3043
        %v3045 = vpop.f32.mrb[0].mxu0
        %3046 = vmatprep.mubr.bf16.mxu0 0
        %3047 = vmatmul.mubr.bf16.gmra.mrb[0].mxu0 %v2998
        %v3048 = vpop.f32.mrb[0].mxu0
        %v3049 = vadd.f32 %v1353, %v3048
        %v3050 = vpop.f32.mrb[0].mxu0
        %v3051 = vpop.f32.mrb[0].mxu0
        %v3052 = vpop.f32.mrb[0].mxu0
        %3053 = vdwg.mxu0
        %v3055 = vsel %vm1658, %v2952, 0
        %v3058 = vsel %vm1658, %v2954, 0
        %v3061 = vsel %vm1658, %v2966, 0
        %v3064 = vsel %vm1658, %v2968, 0
        %3066 = vmatprep.subr.bf16.mxu0 0
        %3067 = vmatpush1.bf16.xpose.msra.mxu0 %v3061
        %3068 = vmatprep.subr.bf16.mxu0 0
        %3069 = vmatpush1.bf16.xpose.msra.mxu0 %v3064
        %3070 = vmatprep.subr.bf16.mxu0 0
        %3071 = vmatpush1.bf16.xpose.msra.mxu0 0
        %3072 = vmatprep.subr.bf16.mxu0 0
        %3073 = vmatpush1.bf16.xpose.msra.mxu0 0
        %3074 = vmatprep.subr.bf16.mxu0 0
        %3075 = vmatpush1.bf16.xpose.msra.mxu0 0
        %3076 = vmatprep.subr.bf16.mxu0 0
        %3077 = vmatpush1.bf16.xpose.msra.mxu0 0
        %3078 = vmatprep.subr.bf16.mxu0 0
        %3079 = vmatpush1.bf16.xpose.msra.mxu0 0
        %3080 = vmatprep.subr.bf16.mxu0 0
        %3081 = vmatpush1.bf16.xpose.msra.mxu0 0
        %3082 = vmatprep.subr.bf16.mxu0 0
        %3083 = vmatpush1.bf16.xpose.msra.mxu0 0
        %3084 = vmatprep.subr.bf16.mxu0 0
        %3085 = vmatpush1.bf16.xpose.msra.mxu0 0
        %3086 = vmatprep.subr.bf16.mxu0 0
        %3087 = vmatpush1.bf16.xpose.msra.mxu0 0
        %3088 = vmatprep.subr.bf16.mxu0 0
        %3089 = vmatpush1.bf16.xpose.msra.mxu0 0
        %3090 = vmatprep.subr.bf16.mxu0 0
        %3091 = vmatpush1.bf16.xpose.msra.mxu0 0
        %3092 = vmatprep.subr.bf16.mxu0 0
        %3093 = vmatpush1.bf16.xpose.msra.mxu0 0
        %3094 = vmatprep.subr.bf16.mxu0 0
        %3095 = vmatpush1.bf16.xpose.msra.mxu0 0
        %3096 = vmatprep.subr.bf16.mxu0 0
        %3097 = vmatpush1.bf16.xpose.msra.mxu0 0
        %3098 = vmatprep.mubr.bf16.mxu0 0
        %3099 = vmatmul.mubr.bf16.gmra.mrb[0].mxu0 %v3055
        %v3100 = vpop.f32.mrb[0].mxu0
        %v3101 = vadd.f32 %v1353, %v3100
        %v3102 = vpop.f32.mrb[0].mxu0
        %v3103 = vpop.f32.mrb[0].mxu0
        %v3104 = vadd.f32 %v1353, %v3103
        %v3105 = vpop.f32.mrb[0].mxu0
        %3106 = vmatprep.mubr.bf16.mxu0 0
        %3107 = vmatmul.mubr.bf16.gmra.mrb[0].mxu0 %v3058
        %v3108 = vpop.f32.mrb[0].mxu0
        %v3109 = vadd.f32 %v1353, %v3108
        %v3110 = vpop.f32.mrb[0].mxu0
        %v3111 = vpop.f32.mrb[0].mxu0
        %v3112 = vpop.f32.mrb[0].mxu0
        %3113 = vdwg.mxu0
        %v3115 = vsel %vm1658, %v2956, 0
        %v3118 = vsel %vm1658, %v2958, 0
        %v3121 = vsel %vm1658, %v2970, 0
        %v3124 = vsel %vm1658, %v2972, 0
        %3126 = vmatprep.subr.bf16.mxu0 0
        %3127 = vmatpush1.bf16.xpose.msra.mxu0 %v3121
        %3128 = vmatprep.subr.bf16.mxu0 0
        %3129 = vmatpush1.bf16.xpose.msra.mxu0 %v3124
        %3130 = vmatprep.subr.bf16.mxu0 0
        %3131 = vmatpush1.bf16.xpose.msra.mxu0 0
        %3132 = vmatprep.subr.bf16.mxu0 0
        %3133 = vmatpush1.bf16.xpose.msra.mxu0 0
        %3134 = vmatprep.subr.bf16.mxu0 0
        %3135 = vmatpush1.bf16.xpose.msra.mxu0 0
        %3136 = vmatprep.subr.bf16.mxu0 0
        %3137 = vmatpush1.bf16.xpose.msra.mxu0 0
        %3138 = vmatprep.subr.bf16.mxu0 0
        %3139 = vmatpush1.bf16.xpose.msra.mxu0 0
        %3140 = vmatprep.subr.bf16.mxu0 0
        %3141 = vmatpush1.bf16.xpose.msra.mxu0 0
        %3142 = vmatprep.subr.bf16.mxu0 0
        %3143 = vmatpush1.bf16.xpose.msra.mxu0 0
        %3144 = vmatprep.subr.bf16.mxu0 0
        %3145 = vmatpush1.bf16.xpose.msra.mxu0 0
        %3146 = vmatprep.subr.bf16.mxu0 0
        %3147 = vmatpush1.bf16.xpose.msra.mxu0 0
        %3148 = vmatprep.subr.bf16.mxu0 0
        %3149 = vmatpush1.bf16.xpose.msra.mxu0 0
        %3150 = vmatprep.subr.bf16.mxu0 0
        %3151 = vmatpush1.bf16.xpose.msra.mxu0 0
        %3152 = vmatprep.subr.bf16.mxu0 0
        %3153 = vmatpush1.bf16.xpose.msra.mxu0 0
        %3154 = vmatprep.subr.bf16.mxu0 0
        %3155 = vmatpush1.bf16.xpose.msra.mxu0 0
        %3156 = vmatprep.subr.bf16.mxu0 0
        %3157 = vmatpush1.bf16.xpose.msra.mxu0 0
        %3158 = vmatprep.mubr.bf16.mxu0 0
        %3159 = vmatmul.mubr.bf16.gmra.mrb[0].mxu0 %v3115
        %v3160 = vpop.f32.mrb[0].mxu0
        %v3161 = vadd.f32 %v1353, %v3160
        %v3162 = vpop.f32.mrb[0].mxu0
        %v3163 = vpop.f32.mrb[0].mxu0
        %v3164 = vadd.f32 %v1353, %v3163
        %v3165 = vpop.f32.mrb[0].mxu0
        %3166 = vmatprep.mubr.bf16.mxu0 0
        %3167 = vmatmul.mubr.bf16.gmra.mrb[0].mxu0 %v3118
        %v3168 = vpop.f32.mrb[0].mxu0
        %v3169 = vadd.f32 %v1353, %v3168
        %v3170 = vpop.f32.mrb[0].mxu0
        %v3171 = vpop.f32.mrb[0].mxu0
        %v3172 = vpop.f32.mrb[0].mxu0
        %3173 = vdwg.mxu0
        %v3175 = vsel %vm1658, %v2960, 0
        %v3178 = vsel %vm1658, %v2962, 0
        %v3181 = vsel %vm1658, %v2974, 0
        %v3184 = vsel %vm1658, %v2976, 0
        %3186 = vmatprep.subr.bf16.mxu0 0
        %3187 = vmatpush1.bf16.xpose.msra.mxu0 %v3181
        %3188 = vmatprep.subr.bf16.mxu0 0
        %3189 = vmatpush1.bf16.xpose.msra.mxu0 %v3184
        %3190 = vmatprep.subr.bf16.mxu0 0
        %3191 = vmatpush1.bf16.xpose.msra.mxu0 0
        %3192 = vmatprep.subr.bf16.mxu0 0
        %3193 = vmatpush1.bf16.xpose.msra.mxu0 0
        %3194 = vmatprep.subr.bf16.mxu0 0
        %3195 = vmatpush1.bf16.xpose.msra.mxu0 0
        %3196 = vmatprep.subr.bf16.mxu0 0
        %3197 = vmatpush1.bf16.xpose.msra.mxu0 0
        %3198 = vmatprep.subr.bf16.mxu0 0
        %3199 = vmatpush1.bf16.xpose.msra.mxu0 0
        %3200 = vmatprep.subr.bf16.mxu0 0
        %3201 = vmatpush1.bf16.xpose.msra.mxu0 0
        %3202 = vmatprep.subr.bf16.mxu0 0
        %3203 = vmatpush1.bf16.xpose.msra.mxu0 0
        %3204 = vmatprep.subr.bf16.mxu0 0
        %3205 = vmatpush1.bf16.xpose.msra.mxu0 0
        %3206 = vmatprep.subr.bf16.mxu0 0
        %3207 = vmatpush1.bf16.xpose.msra.mxu0 0
        %3208 = vmatprep.subr.bf16.mxu0 0
        %3209 = vmatpush1.bf16.xpose.msra.mxu0 0
        %3210 = vmatprep.subr.bf16.mxu0 0
        %3211 = vmatpush1.bf16.xpose.msra.mxu0 0
        %3212 = vmatprep.subr.bf16.mxu0 0
        %3213 = vmatpush1.bf16.xpose.msra.mxu0 0
        %3214 = vmatprep.subr.bf16.mxu0 0
        %3215 = vmatpush1.bf16.xpose.msra.mxu0 0
        %3216 = vmatprep.subr.bf16.mxu0 0
        %3217 = vmatpush1.bf16.xpose.msra.mxu0 0
        %3218 = vmatprep.mubr.bf16.mxu0 0
        %3219 = vmatmul.mubr.bf16.gmra.mrb[0].mxu0 %v3175
        %v3220 = vpop.f32.mrb[0].mxu0
        %v3221 = vadd.f32 %v1353, %v3220
        %v3222 = vpop.f32.mrb[0].mxu0
        %v3223 = vpop.f32.mrb[0].mxu0
        %v3224 = vadd.f32 %v1353, %v3223
        %v3225 = vpop.f32.mrb[0].mxu0
        %3226 = vmatprep.mubr.bf16.mxu0 0
        %3227 = vmatmul.mubr.bf16.gmra.mrb[0].mxu0 %v3178
        %v3228 = vpop.f32.mrb[0].mxu0
        %v3229 = vadd.f32 %v1353, %v3228
        %v3230 = vpop.f32.mrb[0].mxu0
        %v3231 = vpop.f32.mrb[0].mxu0
        %v3232 = vpop.f32.mrb[0].mxu0
        %3233 = vdwg.mxu0
        %v3234 = vsel %vm1899, %v3041, -inf
        %3235 = vmax.xlane.f32.xlu0 %v3234
        %v3236 = vpop.xlane.xlu0 %3235
        %v3237 = vsel %vm1899, %v3044, -inf
        %3238 = vmax.xlane.f32.xlu0 %v3237
        %v3239 = vpop.xlane.xlu0 %3238
        %v3240 = vsel %vm1899, %v3049, -inf
        %3241 = vmax.xlane.f32.xlu0 %v3240
        %v3242 = vpop.xlane.xlu0 %3241
        %v3243 = vsel %vm1899, %v3101, -inf
        %3244 = vmax.xlane.f32.xlu0 %v3243
        %v3245 = vpop.xlane.xlu0 %3244
        %v3246 = vsel %vm1899, %v3104, -inf
        %3247 = vmax.xlane.f32.xlu0 %v3246
        %v3248 = vpop.xlane.xlu0 %3247
        %v3249 = vsel %vm1899, %v3109, -inf
        %3250 = vmax.xlane.f32.xlu0 %v3249
        %v3251 = vpop.xlane.xlu0 %3250
        %v3252 = vsel %vm1899, %v3161, -inf
        %3253 = vmax.xlane.f32.xlu0 %v3252
        %v3254 = vpop.xlane.xlu0 %3253
        %v3255 = vsel %vm1899, %v3164, -inf
        %3256 = vmax.xlane.f32.xlu0 %v3255
        %v3257 = vpop.xlane.xlu0 %3256
        %v3258 = vsel %vm1899, %v3169, -inf
        %3259 = vmax.xlane.f32.xlu0 %v3258
        %v3260 = vpop.xlane.xlu0 %3259
        %v3261 = vsel %vm1899, %v3221, -inf
        %3262 = vmax.xlane.f32.xlu0 %v3261
        %v3263 = vpop.xlane.xlu0 %3262
        %v3264 = vsel %vm1899, %v3224, -inf
        %3265 = vmax.xlane.f32.xlu0 %v3264
        %v3266 = vpop.xlane.xlu0 %3265
        %v3267 = vsel %vm1899, %v3229, -inf
        %3268 = vmax.xlane.f32.xlu0 %v3267
        %v3269 = vpop.xlane.xlu0 %3268
        %v3270 = vsub.f32 %v3041, %v3236
        %v3271 = vsub.f32 %v3044, %v3239
        %v3272 = vsub.f32 %v3049, %v3242
        %v3273 = vsub.f32 %v3101, %v3245
        %v3274 = vsub.f32 %v3104, %v3248
        %v3275 = vsub.f32 %v3109, %v3251
        %v3276 = vsub.f32 %v3161, %v3254
        %v3277 = vsub.f32 %v3164, %v3257
        %v3278 = vsub.f32 %v3169, %v3260
        %v3279 = vsub.f32 %v3221, %v3263
        %v3280 = vsub.f32 %v3224, %v3266
        %v3281 = vsub.f32 %v3229, %v3269
        %v3282 = vmul.f32 %v3270, 1.442695
        %v3283 = vpow.pop %v3282
        %v3284 = vmul.f32 %v3271, 1.442695
        %v3285 = vpow.pop %v3284
        %v3286 = vmul.f32 %v3272, 1.442695
        %v3287 = vpow.pop %v3286
        %v3288 = vmul.f32 %v3273, 1.442695
        %v3289 = vpow.pop %v3288
        %v3290 = vmul.f32 %v3274, 1.442695
        %v3291 = vpow.pop %v3290
        %v3292 = vmul.f32 %v3275, 1.442695
        %v3293 = vpow.pop %v3292
        %v3294 = vmul.f32 %v3276, 1.442695
        %v3295 = vpow.pop %v3294
        %v3296 = vmul.f32 %v3277, 1.442695
        %v3297 = vpow.pop %v3296
        %v3298 = vmul.f32 %v3278, 1.442695
        %v3299 = vpow.pop %v3298
        %v3300 = vmul.f32 %v3279, 1.442695
        %v3301 = vpow.pop %v3300
        %v3302 = vmul.f32 %v3280, 1.442695
        %v3303 = vpow.pop %v3302
        %v3304 = vmul.f32 %v3281, 1.442695
        %v3305 = vpow.pop %v3304
        %v3306 = vsel %vm1899, %v3283, 0.0
        %3307 = vadd.xlane.f32.xlu0 %v3306
        %v3308 = vpop.xlane.xlu0 %3307
        %v3309 = vsel %vm1899, %v3285, 0.0
        %3310 = vadd.xlane.f32.xlu0 %v3309
        %v3311 = vpop.xlane.xlu0 %3310
        %v3312 = vsel %vm1899, %v3287, 0.0
        %3313 = vadd.xlane.f32.xlu0 %v3312
        %v3314 = vpop.xlane.xlu0 %3313
        %v3315 = vsel %vm1899, %v3289, 0.0
        %3316 = vadd.xlane.f32.xlu0 %v3315
        %v3317 = vpop.xlane.xlu0 %3316
        %v3318 = vsel %vm1899, %v3291, 0.0
        %3319 = vadd.xlane.f32.xlu0 %v3318
        %v3320 = vpop.xlane.xlu0 %3319
        %v3321 = vsel %vm1899, %v3293, 0.0
        %3322 = vadd.xlane.f32.xlu0 %v3321
        %v3323 = vpop.xlane.xlu0 %3322
        %v3324 = vsel %vm1899, %v3295, 0.0
        %3325 = vadd.xlane.f32.xlu0 %v3324
        %v3326 = vpop.xlane.xlu0 %3325
        %v3327 = vsel %vm1899, %v3297, 0.0
        %3328 = vadd.xlane.f32.xlu0 %v3327
        %v3329 = vpop.xlane.xlu0 %3328
        %v3330 = vsel %vm1899, %v3299, 0.0
        %3331 = vadd.xlane.f32.xlu0 %v3330
        %v3332 = vpop.xlane.xlu0 %3331
        %v3333 = vsel %vm1899, %v3301, 0.0
        %3334 = vadd.xlane.f32.xlu0 %v3333
        %v3335 = vpop.xlane.xlu0 %3334
        %v3336 = vsel %vm1899, %v3303, 0.0
        %3337 = vadd.xlane.f32.xlu0 %v3336
        %v3338 = vpop.xlane.xlu0 %3337
        %v3339 = vsel %vm1899, %v3305, 0.0
        %3340 = vadd.xlane.f32.xlu0 %v3339
        %v3341 = vpop.xlane.xlu0 %3340
        %v3342 = vrcp.pop %v3308
        %v3343 = vrcp.pop %v3311
        %v3344 = vrcp.pop %v3314
        %v3345 = vrcp.pop %v3317
        %v3346 = vrcp.pop %v3320
        %v3347 = vrcp.pop %v3323
        %v3348 = vrcp.pop %v3326
        %v3349 = vrcp.pop %v3329
        %v3350 = vrcp.pop %v3332
        %v3351 = vrcp.pop %v3335
        %v3352 = vrcp.pop %v3338
        %v3353 = vrcp.pop %v3341
        %v3354 = vmul.f32 %v3283, %v3342
        %v3355 = vmul.f32 %v3285, %v3343
        %v3356 = vmul.f32 %v3287, %v3344
        %v3357 = vmul.f32 %v3289, %v3345
        %v3358 = vmul.f32 %v3291, %v3346
        %v3359 = vmul.f32 %v3293, %v3347
        %v3360 = vmul.f32 %v3295, %v3348
        %v3361 = vmul.f32 %v3297, %v3349
        %v3362 = vmul.f32 %v3299, %v3350
        %v3363 = vmul.f32 %v3301, %v3351
        %v3364 = vmul.f32 %v3303, %v3352
        %v3365 = vmul.f32 %v3305, %v3353
        %v3366 = vpack.c.bf16 %v3355, %v3354
        %v3367 = vpack.c.bf16 %v3356, %v3356
        %v3368 = vpack.c.bf16 %v3358, %v3357
        %v3369 = vpack.c.bf16 %v3359, %v3359
        %v3370 = vpack.c.bf16 %v3361, %v3360
        %v3371 = vpack.c.bf16 %v3362, %v3362
        %v3372 = vpack.c.bf16 %v3364, %v3363
        %v3373 = vpack.c.bf16 %v3365, %v3365
        %v3375 = vsel %vm1899, %v3366, 0
        %v3378 = vsel %vm1899, %v3367, 0
        %v3381 = vsel %vm2046, %v2948, 0
        %3383 = vmatprep.subr.bf16.mxu0 0
        %3384 = vmatpush1.bf16.msra.mxu0 %v2947
        %3385 = vmatprep.subr.bf16.mxu0 0
        %3386 = vmatpush1.bf16.msra.mxu0 %v3381
        %3387 = vmatprep.subr.bf16.mxu0 0
        %3388 = vmatpush1.bf16.msra.mxu0 0
        %3389 = vmatprep.subr.bf16.mxu0 0
        %3390 = vmatpush1.bf16.msra.mxu0 0
        %3391 = vmatprep.subr.bf16.mxu0 0
        %3392 = vmatpush1.bf16.msra.mxu0 0
        %3393 = vmatprep.subr.bf16.mxu0 0
        %3394 = vmatpush1.bf16.msra.mxu0 0
        %3395 = vmatprep.subr.bf16.mxu0 0
        %3396 = vmatpush1.bf16.msra.mxu0 0
        %3397 = vmatprep.subr.bf16.mxu0 0
        %3398 = vmatpush1.bf16.msra.mxu0 0
        %3399 = vmatprep.subr.bf16.mxu0 0
        %3400 = vmatpush1.bf16.msra.mxu0 0
        %3401 = vmatprep.subr.bf16.mxu0 0
        %3402 = vmatpush1.bf16.msra.mxu0 0
        %3403 = vmatprep.subr.bf16.mxu0 0
        %3404 = vmatpush1.bf16.msra.mxu0 0
        %3405 = vmatprep.subr.bf16.mxu0 0
        %3406 = vmatpush1.bf16.msra.mxu0 0
        %3407 = vmatprep.subr.bf16.mxu0 0
        %3408 = vmatpush1.bf16.msra.mxu0 0
        %3409 = vmatprep.subr.bf16.mxu0 0
        %3410 = vmatpush1.bf16.msra.mxu0 0
        %3411 = vmatprep.subr.bf16.mxu0 0
        %3412 = vmatpush1.bf16.msra.mxu0 0
        %3413 = vmatprep.subr.bf16.mxu0 0
        %3414 = vmatpush1.bf16.msra.mxu0 0
        %3415 = vmatprep.mubr.bf16.mxu0 0
        %3416 = vmatmul.mubr.bf16.gmra.mrb[0].mxu0 %v3375
        %v3417 = vpop.f32.mrb[0].mxu0
        %v3418 = vadd.f32 0.0, %v3417
        %v3419 = vpop.f32.mrb[0].mxu0
        %v3420 = vpop.f32.mrb[0].mxu0
        %v3421 = vadd.f32 0.0, %v3420
        %v3422 = vpop.f32.mrb[0].mxu0
        %3423 = vmatprep.mubr.bf16.mxu0 0
        %3424 = vmatmul.mubr.bf16.gmra.mrb[0].mxu0 %v3378
        %v3425 = vpop.f32.mrb[0].mxu0
        %v3426 = vadd.f32 0.0, %v3425
        %v3427 = vpop.f32.mrb[0].mxu0
        %v3428 = vpop.f32.mrb[0].mxu0
        %v3429 = vpop.f32.mrb[0].mxu0
        %3430 = vdwg.mxu0
        %v3432 = vsel %vm1899, %v3368, 0
        %v3435 = vsel %vm1899, %v3369, 0
        %v3438 = vsel %vm2046, %v2982, 0
        %3440 = vmatprep.subr.bf16.mxu0 0
        %3441 = vmatpush1.bf16.msra.mxu0 %v2980
        %3442 = vmatprep.subr.bf16.mxu0 0
        %3443 = vmatpush1.bf16.msra.mxu0 %v3438
        %3444 = vmatprep.subr.bf16.mxu0 0
        %3445 = vmatpush1.bf16.msra.mxu0 0
        %3446 = vmatprep.subr.bf16.mxu0 0
        %3447 = vmatpush1.bf16.msra.mxu0 0
        %3448 = vmatprep.subr.bf16.mxu0 0
        %3449 = vmatpush1.bf16.msra.mxu0 0
        %3450 = vmatprep.subr.bf16.mxu0 0
        %3451 = vmatpush1.bf16.msra.mxu0 0
        %3452 = vmatprep.subr.bf16.mxu0 0
        %3453 = vmatpush1.bf16.msra.mxu0 0
        %3454 = vmatprep.subr.bf16.mxu0 0
        %3455 = vmatpush1.bf16.msra.mxu0 0
        %3456 = vmatprep.subr.bf16.mxu0 0
        %3457 = vmatpush1.bf16.msra.mxu0 0
        %3458 = vmatprep.subr.bf16.mxu0 0
        %3459 = vmatpush1.bf16.msra.mxu0 0
        %3460 = vmatprep.subr.bf16.mxu0 0
        %3461 = vmatpush1.bf16.msra.mxu0 0
        %3462 = vmatprep.subr.bf16.mxu0 0
        %3463 = vmatpush1.bf16.msra.mxu0 0
        %3464 = vmatprep.subr.bf16.mxu0 0
        %3465 = vmatpush1.bf16.msra.mxu0 0
        %3466 = vmatprep.subr.bf16.mxu0 0
        %3467 = vmatpush1.bf16.msra.mxu0 0
        %3468 = vmatprep.subr.bf16.mxu0 0
        %3469 = vmatpush1.bf16.msra.mxu0 0
        %3470 = vmatprep.subr.bf16.mxu0 0
        %3471 = vmatpush1.bf16.msra.mxu0 0
        %3472 = vmatprep.mubr.bf16.mxu0 0
        %3473 = vmatmul.mubr.bf16.gmra.mrb[0].mxu0 %v3432
        %v3474 = vpop.f32.mrb[0].mxu0
        %v3475 = vadd.f32 0.0, %v3474
        %v3476 = vpop.f32.mrb[0].mxu0
        %v3477 = vpop.f32.mrb[0].mxu0
        %v3478 = vadd.f32 0.0, %v3477
        %v3479 = vpop.f32.mrb[0].mxu0
        %3480 = vmatprep.mubr.bf16.mxu0 0
        %3481 = vmatmul.mubr.bf16.gmra.mrb[0].mxu0 %v3435
        %v3482 = vpop.f32.mrb[0].mxu0
        %v3483 = vadd.f32 0.0, %v3482
        %v3484 = vpop.f32.mrb[0].mxu0
        %v3485 = vpop.f32.mrb[0].mxu0
        %v3486 = vpop.f32.mrb[0].mxu0
        %3487 = vdwg.mxu0
        %v3489 = vsel %vm1899, %v3370, 0
        %v3492 = vsel %vm1899, %v3371, 0
        %v3495 = vsel %vm2046, %v2987, 0
        %3497 = vmatprep.subr.bf16.mxu0 0
        %3498 = vmatpush1.bf16.msra.mxu0 %v2985
        %3499 = vmatprep.subr.bf16.mxu0 0
        %3500 = vmatpush1.bf16.msra.mxu0 %v3495
        %3501 = vmatprep.subr.bf16.mxu0 0
        %3502 = vmatpush1.bf16.msra.mxu0 0
        %3503 = vmatprep.subr.bf16.mxu0 0
        %3504 = vmatpush1.bf16.msra.mxu0 0
        %3505 = vmatprep.subr.bf16.mxu0 0
        %3506 = vmatpush1.bf16.msra.mxu0 0
        %3507 = vmatprep.subr.bf16.mxu0 0
        %3508 = vmatpush1.bf16.msra.mxu0 0
        %3509 = vmatprep.subr.bf16.mxu0 0
        %3510 = vmatpush1.bf16.msra.mxu0 0
        %3511 = vmatprep.subr.bf16.mxu0 0
        %3512 = vmatpush1.bf16.msra.mxu0 0
        %3513 = vmatprep.subr.bf16.mxu0 0
        %3514 = vmatpush1.bf16.msra.mxu0 0
        %3515 = vmatprep.subr.bf16.mxu0 0
        %3516 = vmatpush1.bf16.msra.mxu0 0
        %3517 = vmatprep.subr.bf16.mxu0 0
        %3518 = vmatpush1.bf16.msra.mxu0 0
        %3519 = vmatprep.subr.bf16.mxu0 0
        %3520 = vmatpush1.bf16.msra.mxu0 0
        %3521 = vmatprep.subr.bf16.mxu0 0
        %3522 = vmatpush1.bf16.msra.mxu0 0
        %3523 = vmatprep.subr.bf16.mxu0 0
        %3524 = vmatpush1.bf16.msra.mxu0 0
        %3525 = vmatprep.subr.bf16.mxu0 0
        %3526 = vmatpush1.bf16.msra.mxu0 0
        %3527 = vmatprep.subr.bf16.mxu0 0
        %3528 = vmatpush1.bf16.msra.mxu0 0
        %3529 = vmatprep.mubr.bf16.mxu0 0
        %3530 = vmatmul.mubr.bf16.gmra.mrb[0].mxu0 %v3489
        %v3531 = vpop.f32.mrb[0].mxu0
        %v3532 = vadd.f32 0.0, %v3531
        %v3533 = vpop.f32.mrb[0].mxu0
        %v3534 = vpop.f32.mrb[0].mxu0
        %v3535 = vadd.f32 0.0, %v3534
        %v3536 = vpop.f32.mrb[0].mxu0
        %3537 = vmatprep.mubr.bf16.mxu0 0
        %3538 = vmatmul.mubr.bf16.gmra.mrb[0].mxu0 %v3492
        %v3539 = vpop.f32.mrb[0].mxu0
        %v3540 = vadd.f32 0.0, %v3539
        %v3541 = vpop.f32.mrb[0].mxu0
        %v3542 = vpop.f32.mrb[0].mxu0
        %v3543 = vpop.f32.mrb[0].mxu0
        %3544 = vdwg.mxu0
        %v3546 = vsel %vm1899, %v3372, 0
        %v3549 = vsel %vm1899, %v3373, 0
        %v3552 = vsel %vm2046, %v2992, 0
        %3554 = vmatprep.subr.bf16.mxu0 0
        %3555 = vmatpush1.bf16.msra.mxu0 %v2990
        %3556 = vmatprep.subr.bf16.mxu0 0
        %3557 = vmatpush1.bf16.msra.mxu0 %v3552
        %3558 = vmatprep.subr.bf16.mxu0 0
        %3559 = vmatpush1.bf16.msra.mxu0 0
        %3560 = vmatprep.subr.bf16.mxu0 0
        %3561 = vmatpush1.bf16.msra.mxu0 0
        %3562 = vmatprep.subr.bf16.mxu0 0
        %3563 = vmatpush1.bf16.msra.mxu0 0
        %3564 = vmatprep.subr.bf16.mxu0 0
        %3565 = vmatpush1.bf16.msra.mxu0 0
        %3566 = vmatprep.subr.bf16.mxu0 0
        %3567 = vmatpush1.bf16.msra.mxu0 0
        %3568 = vmatprep.subr.bf16.mxu0 0
        %3569 = vmatpush1.bf16.msra.mxu0 0
        %3570 = vmatprep.subr.bf16.mxu0 0
        %3571 = vmatpush1.bf16.msra.mxu0 0
        %3572 = vmatprep.subr.bf16.mxu0 0
        %3573 = vmatpush1.bf16.msra.mxu0 0
        %3574 = vmatprep.subr.bf16.mxu0 0
        %3575 = vmatpush1.bf16.msra.mxu0 0
        %3576 = vmatprep.subr.bf16.mxu0 0
        %3577 = vmatpush1.bf16.msra.mxu0 0
        %3578 = vmatprep.subr.bf16.mxu0 0
        %3579 = vmatpush1.bf16.msra.mxu0 0
        %3580 = vmatprep.subr.bf16.mxu0 0
        %3581 = vmatpush1.bf16.msra.mxu0 0
        %3582 = vmatprep.subr.bf16.mxu0 0
        %3583 = vmatpush1.bf16.msra.mxu0 0
        %3584 = vmatprep.subr.bf16.mxu0 0
        %3585 = vmatpush1.bf16.msra.mxu0 0
        %3586 = vmatprep.mubr.bf16.mxu0 0
        %3587 = vmatmul.mubr.bf16.gmra.mrb[0].mxu0 %v3546
        %v3588 = vpop.f32.mrb[0].mxu0
        %v3589 = vadd.f32 0.0, %v3588
        %v3590 = vpop.f32.mrb[0].mxu0
        %v3591 = vpop.f32.mrb[0].mxu0
        %v3592 = vadd.f32 0.0, %v3591
        %v3593 = vpop.f32.mrb[0].mxu0
        %3594 = vmatprep.mubr.bf16.mxu0 0
        %3595 = vmatmul.mubr.bf16.gmra.mrb[0].mxu0 %v3549
        %v3596 = vpop.f32.mrb[0].mxu0
        %v3597 = vadd.f32 0.0, %v3596
        %v3598 = vpop.f32.mrb[0].mxu0
        %v3599 = vpop.f32.mrb[0].mxu0
        %v3600 = vpop.f32.mrb[0].mxu0
        %3601 = vdwg.mxu0
        %3605 = vrot.lane.b32.xlu0 %v3475, 8
        %v3606 = vpop.permute.xlu0 %3605
        %3607 = vrot.lane.b32.xlu0 %v3478, 8
        %v3608 = vpop.permute.xlu0 %3607
        %3609 = vrot.lane.b32.xlu0 %v3483, 8
        %v3610 = vpop.permute.xlu0 %3609
        %3617 = vrot.lane.b32.xlu0 %v3532, 16
        %v3618 = vpop.permute.xlu0 %3617
        %3619 = vrot.lane.b32.xlu0 %v3535, 16
        %v3620 = vpop.permute.xlu0 %3619
        %3621 = vrot.lane.b32.xlu0 %v3540, 16
        %v3622 = vpop.permute.xlu0 %3621
        %3629 = vrot.lane.b32.xlu0 %v3589, 24
        %v3630 = vpop.permute.xlu0 %3629
        %3631 = vrot.lane.b32.xlu0 %v3592, 24
        %v3632 = vpop.permute.xlu0 %3631
        %3633 = vrot.lane.b32.xlu0 %v3597, 24
        %v3634 = vpop.permute.xlu0 %3633
        %v3638 = vsel %vm1658, %v3418, %v3606
        %v3639 = vsel %vm1658, %v3421, %v3608
        %v3640 = vsel %vm1658, %v3426, %v3610
        %v3641 = vsel %vm2308, %v3638, %v3618
        %v3642 = vsel %vm2308, %v3639, %v3620
        %v3643 = vsel %vm2308, %v3640, %v3622
        %v3644 = vsel %vm1899, %v3641, %v3630
        %v3645 = vsel %vm1899, %v3642, %v3632
        %v3646 = vsel %vm1899, %v3643, %v3634
        %v3647 = vpack.c.bf16 %v3645, %v3644
        %v3648 = vpack.c.bf16 %v3646, %v3646
        %v3650 = vlaneseq
        %v3651 = vshrl.u32 %v3650, 7
        %v3652 = vsub.s32 0, %v3651
        %v3653 = vrot.slane %v2710, %v3652
        %v3659 = vunpack.c.l.b16 %v2706
        %v3660 = vunpack.c.l.b16 %v2707
        %v3661 = vunpack.c.l.b16 %v2708
        %v3662 = vunpack.c.l.b16 %v2709
        %v3663 = vpack.c.b16 %v3660, %v3659
        %v3664 = vpack.c.b16 %v3662, %v3661
        %v3668 = vsel %vm1420, %v3647, 0
        %v3671 = vsel %vm1420, %v3648, 0
        %3673 = vmatprep.subr.bf16.mxu0 0
        %3674 = vmatpush1.bf16.msra.mxu0 %v3663
        %3675 = vmatprep.subr.bf16.mxu0 0
        %3676 = vmatpush1.bf16.msra.mxu0 %v3664
        %3677 = vmatprep.subr.bf16.mxu0 0
        %3678 = vmatpush1.bf16.msra.mxu0 0
        %3679 = vmatprep.subr.bf16.mxu0 0
        %3680 = vmatpush1.bf16.msra.mxu0 0
        %3681 = vmatprep.subr.bf16.mxu0 0
        %3682 = vmatpush1.bf16.msra.mxu0 0
        %3683 = vmatprep.subr.bf16.mxu0 0
        %3684 = vmatpush1.bf16.msra.mxu0 0
        %3685 = vmatprep.subr.bf16.mxu0 0
        %3686 = vmatpush1.bf16.msra.mxu0 0
        %3687 = vmatprep.subr.bf16.mxu0 0
        %3688 = vmatpush1.bf16.msra.mxu0 0
        %3689 = vmatprep.subr.bf16.mxu0 0
        %3690 = vmatpush1.bf16.msra.mxu0 0
        %3691 = vmatprep.subr.bf16.mxu0 0
        %3692 = vmatpush1.bf16.msra.mxu0 0
        %3693 = vmatprep.subr.bf16.mxu0 0
        %3694 = vmatpush1.bf16.msra.mxu0 0
        %3695 = vmatprep.subr.bf16.mxu0 0
        %3696 = vmatpush1.bf16.msra.mxu0 0
        %3697 = vmatprep.subr.bf16.mxu0 0
        %3698 = vmatpush1.bf16.msra.mxu0 0
        %3699 = vmatprep.subr.bf16.mxu0 0
        %3700 = vmatpush1.bf16.msra.mxu0 0
        %3701 = vmatprep.subr.bf16.mxu0 0
        %3702 = vmatpush1.bf16.msra.mxu0 0
        %3703 = vmatprep.subr.bf16.mxu0 0
        %3704 = vmatpush1.bf16.msra.mxu0 0
        %3705 = vmatprep.mubr.bf16.mxu0 0
        %3706 = vmatmul.mubr.bf16.gmra.mrb[0].mxu0 %v3668
        %v3707 = vpop.f32.mrb[0].mxu0
        %v3708 = vadd.f32 %v3653, %v3707
        %v3709 = vpop.f32.mrb[0].mxu0
        %v3710 = vpop.f32.mrb[0].mxu0
        %v3711 = vadd.f32 %v3653, %v3710
        %v3712 = vpop.f32.mrb[0].mxu0
        %3713 = vmatprep.mubr.bf16.mxu0 0
        %3714 = vmatmul.mubr.bf16.gmra.mrb[0].mxu0 %v3671
        %v3715 = vpop.f32.mrb[0].mxu0
        %v3716 = vadd.f32 %v3653, %v3715
        %v3717 = vpop.f32.mrb[0].mxu0
        %v3718 = vpop.f32.mrb[0].mxu0
        %v3719 = vpop.f32.mrb[0].mxu0
        %3720 = vdwg.mxu0
        %v3721 = vadd.f32 %v2688, %v3708
        %v3722 = vadd.f32 %v2689, %v3711
        %v3723 = vadd.f32 %v2690, %v3716
        %v3724 = vsel %vm1420, %v3721, 0.0
        %3725 = vadd.xlane.f32.xlu0 %v3724
        %v3726 = vpop.xlane.xlu0 %3725
        %v3727 = vsel %vm1420, %v3722, 0.0
        %3728 = vadd.xlane.f32.xlu0 %v3727
        %v3729 = vpop.xlane.xlu0 %3728
        %v3730 = vsel %vm1420, %v3723, 0.0
        %3731 = vadd.xlane.f32.xlu0 %v3730
        %v3732 = vpop.xlane.xlu0 %3731
        %v3733 = vmul.f32 %v3726, %v2401
        %v3734 = vmul.f32 %v3729, %v2401
        %v3735 = vmul.f32 %v3732, %v2401
        %v3736 = vsub.f32 %v3721, %v3733
        %v3737 = vsub.f32 %v3722, %v3734
        %v3738 = vsub.f32 %v3723, %v3735
        %v3739 = vmul.f32 %v3736, %v3736
        %v3740 = vmul.f32 %v3737, %v3737
        %v3741 = vmul.f32 %v3738, %v3738
        %v3742 = vsel %vm1420, %v3739, 0.0
        %3743 = vadd.xlane.f32.xlu0 %v3742
        %v3744 = vpop.xlane.xlu0 %3743
        %v3745 = vsel %vm1420, %v3740, 0.0
        %3746 = vadd.xlane.f32.xlu0 %v3745
        %v3747 = vpop.xlane.xlu0 %3746
        %v3748 = vsel %vm1420, %v3741, 0.0
        %3749 = vadd.xlane.f32.xlu0 %v3748
        %v3750 = vpop.xlane.xlu0 %3749
        %v3751 = vmul.f32 %v3744, %v2401
        %v3752 = vmul.f32 %v3747, %v2401
        %v3753 = vmul.f32 %v3750, %v2401
        %v3754 = vadd.f32 %v3751, 1e-05
        %v3755 = vadd.f32 %v3752, 1e-05
        %v3756 = vadd.f32 %v3753, 1e-05
        %v3757 = vrsqrt.pop %v3754
        %v3758 = vrsqrt.pop %v3755
        %v3759 = vrsqrt.pop %v3756
        %v3760 = vmul.f32 %v3736, %v3757
        %v3761 = vmul.f32 %v3737, %v3758
        %v3762 = vmul.f32 %v3738, %v3759
        %v3764 = vlaneseq
        %v3765 = vshrl.u32 %v3764, 7
        %v3766 = vsub.s32 0, %v3765
        %v3767 = vrot.slane %v2711, %v3766
        %v3769 = vmul.f32 %v3760, %v3767
        %v3770 = vmul.f32 %v3761, %v3767
        %v3771 = vmul.f32 %v3762, %v3767
        %v3773 = vlaneseq
        %v3774 = vshrl.u32 %v3773, 7
        %v3775 = vsub.s32 0, %v3774
        %v3776 = vrot.slane %v2712, %v3775
        %v3778 = vadd.f32 %v3769, %v3776
        %v3779 = vadd.f32 %v3770, %v3776
        %v3780 = vadd.f32 %v3771, %v3776
        %v3781 = vpack.c.bf16 %v3779, %v3778
        %v3782 = vpack.c.bf16 %v3780, %v3780
        %v3784 = vlaneseq
        %v3785 = vshrl.u32 %v3784, 7
        %v3786 = vsub.s32 0, %v3785
        %v3787 = vrot.slane %v2719, %v3786
        %v3793 = vunpack.c.l.b16 %v2715
        %v3794 = vunpack.c.l.b16 %v2716
        %v3795 = vunpack.c.l.b16 %v2717
        %v3796 = vunpack.c.l.b16 %v2718
        %v3797 = vpack.c.b16 %v3794, %v3793
        %v3798 = vpack.c.b16 %v3796, %v3795
        %v3802 = vsel %vm1420, %v3781, 0
        %v3805 = vsel %vm1420, %v3782, 0
        %3807 = vmatprep.subr.bf16.mxu0 0
        %3808 = vmatpush1.bf16.msra.mxu0 %v3797
        %3809 = vmatprep.subr.bf16.mxu0 0
        %3810 = vmatpush1.bf16.msra.mxu0 %v3798
        %3811 = vmatprep.subr.bf16.mxu0 0
        %3812 = vmatpush1.bf16.msra.mxu0 0
        %3813 = vmatprep.subr.bf16.mxu0 0
        %3814 = vmatpush1.bf16.msra.mxu0 0
        %3815 = vmatprep.subr.bf16.mxu0 0
        %3816 = vmatpush1.bf16.msra.mxu0 0
        %3817 = vmatprep.subr.bf16.mxu0 0
        %3818 = vmatpush1.bf16.msra.mxu0 0
        %3819 = vmatprep.subr.bf16.mxu0 0
        %3820 = vmatpush1.bf16.msra.mxu0 0
        %3821 = vmatprep.subr.bf16.mxu0 0
        %3822 = vmatpush1.bf16.msra.mxu0 0
        %3823 = vmatprep.subr.bf16.mxu0 0
        %3824 = vmatpush1.bf16.msra.mxu0 0
        %3825 = vmatprep.subr.bf16.mxu0 0
        %3826 = vmatpush1.bf16.msra.mxu0 0
        %3827 = vmatprep.subr.bf16.mxu0 0
        %3828 = vmatpush1.bf16.msra.mxu0 0
        %3829 = vmatprep.subr.bf16.mxu0 0
        %3830 = vmatpush1.bf16.msra.mxu0 0
        %3831 = vmatprep.subr.bf16.mxu0 0
        %3832 = vmatpush1.bf16.msra.mxu0 0
        %3833 = vmatprep.subr.bf16.mxu0 0
        %3834 = vmatpush1.bf16.msra.mxu0 0
        %3835 = vmatprep.subr.bf16.mxu0 0
        %3836 = vmatpush1.bf16.msra.mxu0 0
        %3837 = vmatprep.subr.bf16.mxu0 0
        %3838 = vmatpush1.bf16.msra.mxu0 0
        %3839 = vmatprep.mubr.bf16.mxu0 0
        %3840 = vmatmul.mubr.bf16.gmra.mrb[0].mxu0 %v3802
        %v3841 = vpop.f32.mrb[0].mxu0
        %v3842 = vadd.f32 %v3787, %v3841
        %v3843 = vpop.f32.mrb[0].mxu0
        %v3844 = vpop.f32.mrb[0].mxu0
        %v3845 = vadd.f32 %v3787, %v3844
        %v3846 = vpop.f32.mrb[0].mxu0
        %3847 = vmatprep.mubr.bf16.mxu0 0
        %3848 = vmatmul.mubr.bf16.gmra.mrb[0].mxu0 %v3805
        %v3849 = vpop.f32.mrb[0].mxu0
        %v3850 = vadd.f32 %v3787, %v3849
        %v3851 = vpop.f32.mrb[0].mxu0
        %v3852 = vpop.f32.mrb[0].mxu0
        %v3853 = vpop.f32.mrb[0].mxu0
        %3854 = vdwg.mxu0
        %v3855 = vmax.f32 %v3842, 0.0
        %v3856 = vmax.f32 %v3845, 0.0
        %v3857 = vmax.f32 %v3850, 0.0
        %v3858 = vpack.c.bf16 %v3856, %v3855
        %v3859 = vpack.c.bf16 %v3857, %v3857
        %v3861 = vlaneseq
        %v3862 = vshrl.u32 %v3861, 7
        %v3863 = vsub.s32 0, %v3862
        %v3864 = vrot.slane %v2736, %v3863
        %v3882 = vunpack.c.l.b16 %v2720
        %v3883 = vunpack.c.l.b16 %v2721
        %v3884 = vunpack.c.l.b16 %v2722
        %v3885 = vunpack.c.l.b16 %v2723
        %v3886 = vunpack.c.l.b16 %v2724
        %v3887 = vunpack.c.l.b16 %v2725
        %v3888 = vunpack.c.l.b16 %v2726
        %v3889 = vunpack.c.l.b16 %v2727
        %v3890 = vunpack.c.l.b16 %v2728
        %v3891 = vunpack.c.l.b16 %v2729
        %v3892 = vunpack.c.l.b16 %v2730
        %v3893 = vunpack.c.l.b16 %v2731
        %v3894 = vunpack.c.l.b16 %v2732
        %v3895 = vunpack.c.l.b16 %v2733
        %v3896 = vunpack.c.l.b16 %v2734
        %v3897 = vunpack.c.l.b16 %v2735
        %v3898 = vpack.c.b16 %v3883, %v3882
        %v3899 = vpack.c.b16 %v3885, %v3884
        %v3900 = vpack.c.b16 %v3887, %v3886
        %v3901 = vpack.c.b16 %v3889, %v3888
        %v3902 = vpack.c.b16 %v3891, %v3890
        %v3903 = vpack.c.b16 %v3893, %v3892
        %v3904 = vpack.c.b16 %v3895, %v3894
        %v3905 = vpack.c.b16 %v3897, %v3896
        %3914 = vmatprep.subr.bf16.mxu0 0
        %3915 = vmatpush1.bf16.msra.mxu0 %v3898
        %3916 = vmatprep.subr.bf16.mxu0 0
        %3917 = vmatpush1.bf16.msra.mxu0 %v3899
        %3918 = vmatprep.subr.bf16.mxu0 0
        %3919 = vmatpush1.bf16.msra.mxu0 %v3900
        %3920 = vmatprep.subr.bf16.mxu0 0
        %3921 = vmatpush1.bf16.msra.mxu0 %v3901
        %3922 = vmatprep.subr.bf16.mxu0 0
        %3923 = vmatpush1.bf16.msra.mxu0 %v3902
        %3924 = vmatprep.subr.bf16.mxu0 0
        %3925 = vmatpush1.bf16.msra.mxu0 %v3903
        %3926 = vmatprep.subr.bf16.mxu0 0
        %3927 = vmatpush1.bf16.msra.mxu0 %v3904
        %3928 = vmatprep.subr.bf16.mxu0 0
        %3929 = vmatpush1.bf16.msra.mxu0 %v3905
        %3930 = vmatprep.subr.bf16.mxu0 0
        %3931 = vmatpush1.bf16.msra.mxu0 0
        %3932 = vmatprep.subr.bf16.mxu0 0
        %3933 = vmatpush1.bf16.msra.mxu0 0
        %3934 = vmatprep.subr.bf16.mxu0 0
        %3935 = vmatpush1.bf16.msra.mxu0 0
        %3936 = vmatprep.subr.bf16.mxu0 0
        %3937 = vmatpush1.bf16.msra.mxu0 0
        %3938 = vmatprep.subr.bf16.mxu0 0
        %3939 = vmatpush1.bf16.msra.mxu0 0
        %3940 = vmatprep.subr.bf16.mxu0 0
        %3941 = vmatpush1.bf16.msra.mxu0 0
        %3942 = vmatprep.subr.bf16.mxu0 0
        %3943 = vmatpush1.bf16.msra.mxu0 0
        %3944 = vmatprep.subr.bf16.mxu0 0
        %3945 = vmatpush1.bf16.msra.mxu0 0
        %3946 = vmatprep.mubr.bf16.mxu0 0
        %3947 = vmatmul.mubr.bf16.gmra.mrb[0].mxu0 %v3858
        %v3948 = vpop.f32.mrb[0].mxu0
        %v3949 = vadd.f32 %v3864, %v3948
        %v3950 = vpop.f32.mrb[0].mxu0
        %v3951 = vpop.f32.mrb[0].mxu0
        %v3952 = vpop.f32.mrb[0].mxu0
        %3953 = vmatprep.mubr.bf16.mxu0 0
        %3954 = vmatmul.mubr.bf16.gmra.mrb[0].mxu0 %v3859
        %v3955 = vpop.f32.mrb[0].mxu0
        %v3956 = vpop.f32.mrb[0].mxu0
        %v3957 = vpop.f32.mrb[0].mxu0
        %v3958 = vpop.f32.mrb[0].mxu0
        %3959 = vdwg.mxu0
        %v3960 = vadd.f32 %v3778, %v3949
        %v3961 = vsel %vm1420, %v3960, 0.0
        %3962 = vadd.xlane.f32.xlu0 %v3961
        %v3963 = vpop.xlane.xlu0 %3962
        %v3964 = vmul.f32 %v3963, %v2401
        %v3965 = vsub.f32 %v3960, %v3964
        %v3966 = vmul.f32 %v3965, %v3965
        %v3967 = vsel %vm1420, %v3966, 0.0
        %3968 = vadd.xlane.f32.xlu0 %v3967
        %v3969 = vpop.xlane.xlu0 %3968
        %v3970 = vmul.f32 %v3969, %v2401
        %v3971 = vadd.f32 %v3970, 1e-05
        %v3972 = vrsqrt.pop %v3971
        %v3973 = vmul.f32 %v3965, %v3972
        %v3975 = vlaneseq
        %v3976 = vshrl.u32 %v3975, 7
        %v3977 = vsub.s32 0, %v3976
        %v3978 = vrot.slane %v2713, %v3977
        %v3980 = vmul.f32 %v3973, %v3978
        %v3982 = vlaneseq
        %v3983 = vshrl.u32 %v3982, 7
        %v3984 = vsub.s32 0, %v3983
        %v3985 = vrot.slane %v2714, %v3984
        %v3987 = vadd.f32 %v3980, %v3985
        %v3988 = vld [vmem:[%s71] sm:$0x1]
        %v3989 = vld [vmem:[%s73] sm:$0x1]
        %vm3990 = vcmask 253952
        %v3991 = vsel %vm3990, %v3987, 0.0
        %3992 = vadd.xlane.f32.xlu0 %v3991
        %v3993 = vpop.xlane.xlu0 %3992
        %v3994 = vmul.f32 %v3993, %v2401
        %v3995 = vsub.f32 %v3987, %v3994
        %v3996 = vmul.f32 %v3995, %v3995
        %v3997 = vsel %vm3990, %v3996, 0.0
        %3998 = vadd.xlane.f32.xlu0 %v3997
        %v3999 = vpop.xlane.xlu0 %3998
        %v4000 = vmul.f32 %v3999, %v2401
        %v4001 = vadd.f32 %v4000, 1e-05
        %v4002 = vrsqrt.pop %v4001
        %v4003 = vmul.f32 %v3995, %v4002
        %v4004 = vmul.f32 %v4003, %v3988
        %v4005 = vadd.f32 %v4004, %v3989
        %v4006 = vpack.c.bf16 %v4005, %v4005
        %v4007 = vld [vmem:[%s75] sm:$0xf]
        %v4008 = vld [vmem:[%s75 + $0x4] sm:$0xf]
        %v4009 = vld [vmem:[%s75 + $0x8] sm:$0xf]
        %v4010 = vld [vmem:[%s75 + $0xc] sm:$0xf]
        %v4011 = vld [vmem:[%s77] sm:$0x1]
        %v4016 = vunpack.c.l.b16 %v4007
        %v4017 = vunpack.c.l.b16 %v4008
        %v4018 = vunpack.c.l.b16 %v4009
        %v4019 = vunpack.c.l.b16 %v4010
        %v4020 = vpack.c.b16 %v4017, %v4016
        %v4021 = vpack.c.b16 %v4019, %v4018
        %v4025 = vsel %vm1420, %v4006, 0
        %4027 = vmatprep.subr.bf16.mxu0 0
        %4028 = vmatpush1.bf16.msra.mxu0 %v4020
        %4029 = vmatprep.subr.bf16.mxu0 0
        %4030 = vmatpush1.bf16.msra.mxu0 %v4021
        %4031 = vmatprep.subr.bf16.mxu0 0
        %4032 = vmatpush1.bf16.msra.mxu0 0
        %4033 = vmatprep.subr.bf16.mxu0 0
        %4034 = vmatpush1.bf16.msra.mxu0 0
        %4035 = vmatprep.subr.bf16.mxu0 0
        %4036 = vmatpush1.bf16.msra.mxu0 0
        %4037 = vmatprep.subr.bf16.mxu0 0
        %4038 = vmatpush1.bf16.msra.mxu0 0
        %4039 = vmatprep.subr.bf16.mxu0 0
        %4040 = vmatpush1.bf16.msra.mxu0 0
        %4041 = vmatprep.subr.bf16.mxu0 0
        %4042 = vmatpush1.bf16.msra.mxu0 0
        %4043 = vmatprep.subr.bf16.mxu0 0
        %4044 = vmatpush1.bf16.msra.mxu0 0
        %4045 = vmatprep.subr.bf16.mxu0 0
        %4046 = vmatpush1.bf16.msra.mxu0 0
        %4047 = vmatprep.subr.bf16.mxu0 0
        %4048 = vmatpush1.bf16.msra.mxu0 0
        %4049 = vmatprep.subr.bf16.mxu0 0
        %4050 = vmatpush1.bf16.msra.mxu0 0
        %4051 = vmatprep.subr.bf16.mxu0 0
        %4052 = vmatpush1.bf16.msra.mxu0 0
        %4053 = vmatprep.subr.bf16.mxu0 0
        %4054 = vmatpush1.bf16.msra.mxu0 0
        %4055 = vmatprep.subr.bf16.mxu0 0
        %4056 = vmatpush1.bf16.msra.mxu0 0
        %4057 = vmatprep.subr.bf16.mxu0 0
        %4058 = vmatpush1.bf16.msra.mxu0 0
        %4059 = vmatprep.mubr.bf16.mxu0 0
        %4060 = vmatmul.mubr.bf16.gmra.mrb[0].mxu0 %v4025
        %v4061 = vpop.f32.mrb[0].mxu0
        %v4062 = vadd.f32 %v4011, %v4061
        %v4063 = vpop.f32.mrb[0].mxu0
        %v4064 = vpop.f32.mrb[0].mxu0
        %v4065 = vpop.f32.mrb[0].mxu0
        %4066 = vdwg.mxu0
        %vm4067 = vcmask 122880
        %v4068 = vsel %vm4067, %v4062, -inf
        %4069 = vmax.xlane.f32.xlu0 %v4068
        %v4070 = vpop.xlane.xlu0 %4069
        %v4071 = vsub.f32 %v4062, %v4070
        %v4072 = vmul.f32 %v4071, 1.442695
        %v4073 = vpow.pop %v4072
        %v4074 = vsel %vm4067, %v4073, 0.0
        %4075 = vadd.xlane.f32.xlu0 %v4074
        %v4076 = vpop.xlane.xlu0 %4075
        %v4077 = vrcp.pop %v4076
        %v4078 = vmul.f32 %v4073, %v4077
        %4079 = vst.msk [vmem:[%s1235] sm:$0x1] %vm4067, %v4062
        %4080 = vst.msk [vmem:[%s1241] sm:$0x1] %vm4067, %v4078
        %4081 = vst.msk [vmem:[%s1247] sm:$0x1] %vm3990, %v4005
        %s4082 = sand.u32 %s933, 1
        %s4083 = scalar_lea.sflag [#allocation3], %s4082
        %s4084 = sand.u32 %s933, 1
        %s4085 = scalar_lea.vmem [#allocation2], %s4084
        %s4086 = sand.u32 %s101, 1
        %s4087 = scalar_lea.sflag [#allocation5], %s4086
        %s4088 = sand.u32 %s959, 1
        %s4089 = scalar_lea.vmem [#allocation4], %s4088
        %s4090 = sand.u32 %s101, 1
        %s4091 = scalar_lea.sflag [#allocation5], %s4090
        %s4092 = sand.u32 %s985, 1
        %s4093 = scalar_lea.vmem [#allocation6], %s4092
        // Predicated region
        $region177: #{vit_forward.1} parent=175 // pred_check
          %p4094 = pneg %p943
        $region178: #{vit_forward.1} parent=175 // pred_check_branch
          %4096 = sbr.rel (%p4094) target = $region180
        $region179: #{vit_forward.1} parent=175 // pred_region
          %s4098 = ssub.s32 16, 16
          %4099 = vsyncadd %s4083, %s4098
          %s4100 = smul.addr %s101, 16
          %s4101 = scalar_lea.hbm %s79, %s4100
          %s4103 = sshll.u32 %s4085, 4
          %s4104 = int_to_ptr.vmem [resolvable:$true] %s4103
          %4106 = dma.vmem_to_hbm [thread:$0]  %s4104, 16, %s4101, %s4083
        $region180: #{vit_forward.1} parent=175 // pred_fallthru
          _
        // Predicated region
        $region181: #{vit_forward.1} parent=175 // pred_check
          %p4107 = pneg %p969
        $region182: #{vit_forward.1} parent=175 // pred_check_branch
          %4109 = sbr.rel (%p4107) target = $region184
        $region183: #{vit_forward.1} parent=175 // pred_region
          %s4111 = ssub.s32 16, 16
          %4112 = vsyncadd %s4087, %s4111
          %s4113 = smul.addr %s101, 16
          %s4114 = scalar_lea.hbm %s81, %s4113
          %s4116 = sshll.u32 %s4089, 4
          %s4117 = int_to_ptr.vmem [resolvable:$true] %s4116
          %4119 = dma.vmem_to_hbm [thread:$0]  %s4117, 16, %s4114, %s4087
        $region184: #{vit_forward.1} parent=175 // pred_fallthru
          _
        // Predicated region
        $region185: #{vit_forward.1} parent=175 // pred_check
          %p4120 = pneg %p995
        $region186: #{vit_forward.1} parent=175 // pred_check_branch
          %4122 = sbr.rel (%p4120) target = $region188
        $region187: #{vit_forward.1} parent=175 // pred_region
          %s4124 = ssub.s32 16, 16
          %4125 = vsyncadd %s4091, %s4124
          %s4126 = smul.addr %s101, 16
          %s4127 = scalar_lea.hbm %s83, %s4126
          %s4129 = sshll.u32 %s4093, 4
          %s4130 = int_to_ptr.vmem [resolvable:$true] %s4129
          %4132 = dma.vmem_to_hbm [thread:$0]  %s4130, 16, %s4127, %s4091
        $region188: #{vit_forward.1} parent=175 // pred_fallthru
          _
      $region176: #{vit_forward.1} parent=5 // pred_fallthru
        _
      %p4133 = scmp.le.s32.totalorder 2, %s96
      // Predicated region
      $region189: #{vit_forward.1} parent=5 // pred_check
        %p4134 = pneg %p4133
      $region190: #{vit_forward.1} parent=5 // pred_check_branch
        %4136 = sbr.rel (%p4134) target = $region192
      $region191: #{vit_forward.1} parent=5 // pred_region
        %s4137 = ssub.s32 %s96, 2
        // Predicated region
        $region193: #{vit_forward.1} parent=191 // pred_check
          %p4138 = pneg %p949
        $region194: #{vit_forward.1} parent=191 // pred_check_branch
          %4140 = sbr.rel (%p4138) target = $region196
        $region195: #{vit_forward.1} parent=191 // pred_region
          %s4141 = sand.u32 %s934, 1
          %s4142 = scalar_lea.sflag [#allocation3], %s4141
          %s4143 = sand.u32 %s934, 1
          %s4144 = scalar_lea.vmem [#allocation2], %s4143
          %4145 = dma.done %s4142, 16
        $region196: #{vit_forward.1} parent=191 // pred_fallthru
          _
        // Predicated region
        $region197: #{vit_forward.1} parent=191 // pred_check
          %p4146 = pneg %p975
        $region198: #{vit_forward.1} parent=191 // pred_check_branch
          %4148 = sbr.rel (%p4146) target = $region200
        $region199: #{vit_forward.1} parent=191 // pred_region
          %s4149 = sand.u32 %s102, 1
          %s4150 = scalar_lea.sflag [#allocation5], %s4149
          %s4151 = sand.u32 %s960, 1
          %s4152 = scalar_lea.vmem [#allocation4], %s4151
          %4153 = dma.done %s4150, 16
        $region200: #{vit_forward.1} parent=191 // pred_fallthru
          _
        // Predicated region
        $region201: #{vit_forward.1} parent=191 // pred_check
          %p4154 = pneg %p1001
        $region202: #{vit_forward.1} parent=191 // pred_check_branch
          %4156 = sbr.rel (%p4154) target = $region204
        $region203: #{vit_forward.1} parent=191 // pred_region
          %s4157 = sand.u32 %s102, 1
          %s4158 = scalar_lea.sflag [#allocation5], %s4157
          %s4159 = sand.u32 %s986, 1
          %s4160 = scalar_lea.vmem [#allocation6], %s4159
          %4161 = dma.done %s4158, 16
        $region204: #{vit_forward.1} parent=191 // pred_fallthru
          _
      $region192: #{vit_forward.1} parent=5 // pred_fallthru
        _
    $region6: #{vit_forward.1} parent=1 // loop_footer
      %s100 = sadd.s32 1, %s96
    $region7: #{vit_forward.1} parent=1 // loop_footer_branch
      %95 = sbr.rel target = $region3
    $region8: #{vit_forward.1} parent=1 // loop_exit
      _
    %4162 = vsyncpa [#allocation3], 1
    %s4163 = scalar_lea.sflag [#allocation3], 1
    %4164 = vsyncpa %s4163, 1
    %4165 = vsyncpa [#allocation5], 1
    %s4166 = scalar_lea.sflag [#allocation5], 1
    %4167 = vsyncpa %s4166, 1

</llo_original>
